<compile_context>
chip_gen: v5e
topology: v5e:2x2
jax: 0.10.0
libtpu: 0.0.40
codegen_flags: <defaults>
</compile_context>

<pallas_src>
import jax
import jax.numpy as jnp
from jax.experimental import pallas as pl
from jax.experimental.pallas import tpu as pltpu


# ---------------------------------------------------------------------------
# Fused GEMM kernels
# ---------------------------------------------------------------------------
def _mm_leaky_kernel(a_ref, b_ref, o_ref):
    # Single full-K pass GEMM + LeakyReLU(0.2) epilogue (layer 1).
    y = jnp.dot(a_ref[...], b_ref[...], preferred_element_type=jnp.float32)
    o_ref[...] = jnp.where(y > 0, y, 0.2 * y).astype(o_ref.dtype)


def _mm_bn_leaky_kernel(a_ref, b_ref, g_ref, bt_ref, o_ref):
    # Full-M, full-K GEMM for one output-channel tile.  Training-mode
    # BatchNorm2d statistics over (N, H, W) == axis 0 of the (M, Cout) matrix,
    # biased variance, eps=1e-5, then LeakyReLU(0.2).  All fused.
    y = jnp.dot(a_ref[...], b_ref[...], preferred_element_type=jnp.float32)
    mean = jnp.mean(y, axis=0, keepdims=True)
    var = jnp.mean(jnp.square(y - mean), axis=0, keepdims=True)
    z = (y - mean) * jax.lax.rsqrt(var + 1e-5) * g_ref[...] + bt_ref[...]
    o_ref[...] = jnp.where(z > 0, z, 0.2 * z).astype(o_ref.dtype)


def _final_dot_sigmoid_kernel(x_ref, w_ref, o_ref):
    # conv6 has a 1-wide output: compute it as a VPU multiply + lane reduction
    # (no 1-lane MXU tile, no masked matmul output), with sigmoid fused.
    x = x_ref[...].astype(jnp.float32)             # (N, K)
    w = w_ref[...].astype(jnp.float32)             # (1, K)
    s = jnp.sum(x * w, axis=1, keepdims=True)      # (N, 1)
    o_ref[...] = jax.nn.sigmoid(s)


# ---------------------------------------------------------------------------
# Glue: im2col + weight reshape (plain JAX; pure data movement, kept in bf16)
# ---------------------------------------------------------------------------
def im2col(x_nhwc, k, stride, pad):
    """Patch matrix (N*Ho*Wo, K*K*C) with column order (kh, kw, cin)."""
    N, H, W, C = x_nhwc.shape
    xp = jnp.pad(x_nhwc, ((0, 0), (pad, pad), (pad, pad), (0, 0)))
    Ho = (H + 2 * pad - k) // stride + 1
    Wo = (W + 2 * pad - k) // stride + 1
    cols = [xp[:, ki:ki + stride * Ho:stride, kj:kj + stride * Wo:stride, :]
            for ki in range(k) for kj in range(k)]
    patches = jnp.stack(cols, axis=3)                  # (N, Ho, Wo, K*K, C)
    return patches.reshape(N * Ho * Wo, k * k * C), (N, Ho, Wo)


def reshape_weight(w_oikk):
    """PyTorch (Cout, Cin, Kh, Kw) -> (Kh*Kw*Cin, Cout), bf16."""
    Cout, Cin, K, _ = w_oikk.shape
    return (jnp.transpose(w_oikk, (2, 3, 1, 0))
            .reshape(K * K * Cin, Cout)
            .astype(jnp.bfloat16))


# ---------------------------------------------------------------------------
# Layer wrappers
# ---------------------------------------------------------------------------
def conv_leaky(x_nhwc, w_oikk, stride, pad, tm_pref=2048):
    """conv2d(bias=False) + LeakyReLU(0.2), fused into one Pallas GEMM."""
    K = w_oikk.shape[2]
    a, (N, Ho, Wo) = im2col(x_nhwc, K, stride, pad)
    a = a.astype(jnp.bfloat16)
    b = reshape_weight(w_oikk)
    M, Kdim = a.shape
    Cout = b.shape[1]
    tm = tm_pref if M % tm_pref == 0 else M
    grid = (M // tm,)
    out = pl.pallas_call(
        _mm_leaky_kernel,
        out_shape=jax.ShapeDtypeStruct((M, Cout), jnp.bfloat16),
        grid_spec=pltpu.PrefetchScalarGridSpec(
            num_scalar_prefetch=0,
            grid=grid,
            in_specs=[
                pl.BlockSpec((tm, Kdim), lambda i: (i, 0)),
                pl.BlockSpec((Kdim, Cout), lambda i: (0, 0)),
            ],
            out_specs=pl.BlockSpec((tm, Cout), lambda i: (i, 0)),
        ),
        compiler_params=pltpu.CompilerParams(
            dimension_semantics=("parallel",)),
    )(a, b)
    return out.reshape(N, Ho, Wo, Cout)


def conv_bn_leaky(x_nhwc, w_oikk, gamma, beta, stride, pad, tn_pref=256):
    """conv2d(bias=False) + BatchNorm2d(train stats) + LeakyReLU(0.2), fused."""
    K = w_oikk.shape[2]
    a, (N, Ho, Wo) = im2col(x_nhwc, K, stride, pad)
    a = a.astype(jnp.bfloat16)
    b = reshape_weight(w_oikk)
    M, Kdim = a.shape
    Cout = b.shape[1]
    tn = tn_pref if Cout % tn_pref == 0 else Cout
    grid = (Cout // tn,)
    g = gamma.reshape(1, -1).astype(jnp.float32)
    bt = beta.reshape(1, -1).astype(jnp.float32)
    out = pl.pallas_call(
        _mm_bn_leaky_kernel,
        out_shape=jax.ShapeDtypeStruct((M, Cout), jnp.bfloat16),
        grid_spec=pltpu.PrefetchScalarGridSpec(
            num_scalar_prefetch=0,
            grid=grid,
            in_specs=[
                pl.BlockSpec((M, Kdim), lambda j: (0, 0)),   # A resident
                pl.BlockSpec((Kdim, tn), lambda j: (0, j)),
                pl.BlockSpec((1, tn), lambda j: (0, j)),
                pl.BlockSpec((1, tn), lambda j: (0, j)),
            ],
            out_specs=pl.BlockSpec((M, tn), lambda j: (0, j)),
        ),
        compiler_params=pltpu.CompilerParams(
            dimension_semantics=("parallel",)),
    )(a, b, g, bt)
    return out.reshape(N, Ho, Wo, Cout)


def final_conv_sigmoid(x_nhwc, w_oikk):
    """conv2d_06 (4x4 valid, Cout=1) + Sigmoid, as a VPU reduce kernel."""
    N = x_nhwc.shape[0]
    x_flat = x_nhwc.reshape(N, -1).astype(jnp.bfloat16)      # (N, Kh*Kw*Cin)
    w_flat = (jnp.transpose(w_oikk[0], (1, 2, 0))            # (Kh, Kw, Cin)
              .reshape(1, -1)
              .astype(jnp.bfloat16))
    out = pl.pallas_call(
        _final_dot_sigmoid_kernel,
        out_shape=jax.ShapeDtypeStruct((N, 1), jnp.float32),
    )(x_flat, w_flat)
    return out.reshape(-1)


# ---------------------------------------------------------------------------
# Full forward pass
# ---------------------------------------------------------------------------
def discriminator_forward(x_nchw, params):
    x = jnp.transpose(x_nchw, (0, 2, 3, 1)).astype(jnp.bfloat16)  # NCHW->NHWC

    # conv2d_01 + leaky_relu_01 (fused)
    x = conv_leaky(x, params["w1"], stride=2, pad=1)

    # conv2d_0{2..5} + batch_norm_2d_0{2..5} + leaky_relu_0{2..5} (fused)
    for i in (2, 3, 4, 5):
        x = conv_bn_leaky(x, params[f"w{i}"], params[f"g{i}"], params[f"b{i}"],
                          stride=2, pad=1)

    # conv2d_06 + sigmoid_06 (fused)  == x.view(-1)
    return final_conv_sigmoid(x, params["w6"])


# ---------------------------------------------------------------------------
if __name__ == "__main__":
    key = jax.random.PRNGKey(0)
    keys = jax.random.split(key, 8)

    # Deterministic synthetic weights (DCGAN-style N(0, 0.02)); BN affine
    # params use the PyTorch defaults (weight=1, bias=0), Conv2d bias=False.
    params = {
        "w1": 0.02 * jax.random.normal(keys[0], (64, 3, 4, 4), jnp.float32),
        "w2": 0.02 * jax.random.normal(keys[1], (128, 64, 4, 4), jnp.float32),
        "w3": 0.02 * jax.random.normal(keys[2], (256, 128, 4, 4), jnp.float32),
        "w4": 0.02 * jax.random.normal(keys[3], (512, 256, 4, 4), jnp.float32),
        "w5": 0.02 * jax.random.normal(keys[4], (1024, 512, 4, 4), jnp.float32),
        "w6": 0.02 * jax.random.normal(keys[5], (1, 1024, 4, 4), jnp.float32),
    }
    for i, c in zip((2, 3, 4, 5), (128, 256, 512, 1024)):
        params[f"g{i}"] = jnp.ones((c,), jnp.float32)
        params[f"b{i}"] = jnp.zeros((c,), jnp.float32)

    # Architecture requires spatial size 128 (5 stride-2 convs then a 4x4
    # valid conv), so the smallest consistent input is (batch=2, 3, 128, 128).
    x = jax.random.normal(keys[6], (2, 3, 128, 128), jnp.float32)

    out = discriminator_forward(x, params)
    out = jax.block_until_ready(out)

    assert out.shape == (2,), out.shape
    assert bool(jnp.all(jnp.isfinite(out)))
    assert bool(jnp.all((out >= 0.0) & (out <= 1.0)))
    print("KERNEL_OK")
</pallas_src>

<mosaic_0001>
module attributes {stable_mosaic.version = 11 : i64} {
  func.func @_mm_leaky_kernel(%arg0: i32, %arg1: memref<2048x48xbf16, #tpu.memory_space<vmem>>, %arg2: memref<48x64xbf16, #tpu.memory_space<vmem>>, %arg3: memref<2048x64xbf16, #tpu.memory_space<vmem>>) attributes {dimension_semantics = [#tpu.dimension_semantics<parallel>], iteration_bounds = array<i64: 4>, scalar_prefetch = 0 : i64, scratch_operands = 0 : i64, tpu.core_type = #tpu.core_type<tc>, window_params = [{transform_indices = @transform_0, window_bounds = array<i64: 2048, 48>}, {pipeline_mode = #tpu.pipeline_mode<synchronous>, transform_indices = @transform_1, window_bounds = array<i64: 48, 64>}, {transform_indices = @transform_2, window_bounds = array<i64: 2048, 64>}]} {
    %c0 = arith.constant 0 : index
    %c0_0 = arith.constant 0 : index
    %0 = vector.load %arg1[%c0, %c0_0] : memref<2048x48xbf16, #tpu.memory_space<vmem>>, vector<2048x48xbf16>
    %c0_1 = arith.constant 0 : index
    %c0_2 = arith.constant 0 : index
    %1 = vector.load %arg2[%c0_1, %c0_2] : memref<48x64xbf16, #tpu.memory_space<vmem>>, vector<48x64xbf16>
    %cst = arith.constant dense<0.000000e+00> : vector<2048x64xf32>
    %2 = tpu.matmul %0, %1, %cst {dimension_numbers = #tpu.dot_dimension_numbers<[1], [0], [0], [1], [0, 0, 1, 1], [], []>} : vector<2048x48xbf16>, vector<48x64xbf16>, vector<2048x64xf32> -> vector<2048x64xf32>
    %cst_3 = arith.constant 0.000000e+00 : f32
    %3 = vector.broadcast %cst_3 : f32 to vector<2048x64xf32>
    %4 = arith.cmpf ogt, %2, %3 : vector<2048x64xf32>
    %cst_4 = arith.constant 2.000000e-01 : f32
    %5 = vector.broadcast %cst_4 : f32 to vector<2048x64xf32>
    %6 = arith.mulf %5, %2 : vector<2048x64xf32>
    %7 = arith.select %4, %2, %6 : vector<2048x64xi1>, vector<2048x64xf32>
    %8 = arith.truncf %7 : vector<2048x64xf32> to vector<2048x64xbf16>
    %c0_5 = arith.constant 0 : index
    %c0_6 = arith.constant 0 : index
    %9 = vector.load %arg3[%c0_5, %c0_6] : memref<2048x64xbf16, #tpu.memory_space<vmem>>, vector<2048x64xbf16>
    tpu.vector_store %arg3[%c0_5, %c0_6], %8 {strides = array<i32>} : memref<2048x64xbf16, #tpu.memory_space<vmem>>, vector<2048x64xbf16>,
    return
  }
  func.func @transform_0(%arg0: i32) -> (i32, i32) {
    %c0_i32 = arith.constant 0 : i32
    %c0_i32_0 = arith.constant 0 : i32
    return %arg0, %c0_i32 : i32, i32
  }
  func.func @transform_1(%arg0: i32) -> (i32, i32) {
    %c0_i32 = arith.constant 0 : i32
    %c0_i32_0 = arith.constant 0 : i32
    %c0_i32_1 = arith.constant 0 : i32
    return %c0_i32, %c0_i32_0 : i32, i32
  }
  func.func @transform_2(%arg0: i32) -> (i32, i32) {
    %c0_i32 = arith.constant 0 : i32
    %c0_i32_0 = arith.constant 0 : i32
    return %arg0, %c0_i32 : i32, i32
  }
}

</mosaic_0001>

<llo_original>
// kernel: tpu_custom_call.1
$region0: #{tpu_custom_call.1}
  #allocation0 [shape = 'u32[]', space=smem, size = 0x4, offset = 0x4, fixed_abs, tag = 'smem constant byte address 0x4 - core index']
  #allocation1 [shape = 'u32[72,128]{1,0:T(1,128)}', space=vmem, size = 0x9000, scoped, tag = 'internal scratch']
  %s0 = inlined_call_operand.vmem [shape: bf16[8192,48], index: 0, kind: input, shape index: {}]
  %s1 = inlined_call_operand.vmem [shape: bf16[48,64], index: 1, kind: input, shape index: {}]
  %s2 = inlined_call_operand.vmem [shape: bf16[8192,64], index: 2, kind: output, shape index: {}]
  %s3 = sld [smem:[#allocation0]]
  $region41: #{tpu_custom_call.1} parent=0
    _
  %s5 = ssub.s32 1, %s3
  %s6 = scalar_select 0, %s5, %s3
  loop: start=0, step=1, limit=6
  $region2: #{tpu_custom_call.1} parent=0 // loop_pre_header
    _
  $region3: #{tpu_custom_call.1} parent=0 // loop_header
    %s8 = sphi 0, %s12
    %p9 = scmp.ge.s32.totalorder %s8, 6
    %s18 = sphi 0, %s20
    %s21 = sphi 0, %s18
    %s22 = sphi 0, %s21
    %s38 = sphi 0, %s22
    %s42 = sphi 0, %s42
    %s44 = sphi 0, %s42
    %s45 = sphi 0, %s44
    %s59 = sphi 0, %s45
    %s65 = sphi 0, %s67
    %s68 = sphi 0, %s65
    %s69 = sphi 0, %s68
    %s85 = sphi 0, %s69
  $region4: #{tpu_custom_call.1} parent=0 // loop_header_branch
    %11 = sbr.rel (%p9) target = $region8
  $region5: #{tpu_custom_call.1} parent=0 // loop_body
    %s13 = ssub.s32 %s8, 1
    %s14 = ssub.s32 %s8, 2
    %s15 = sadd.s32 %s8, 1
    %s16 = ssub.s32 %s8, %s15
    %p17 = scmp.eq.s32.totalorder %s16, 0
    %s19 = sadd.s32 %s18, 1
    %s20 = scalar_select %p17, %s18, %s19
    %p23 = pneg %p17
    %p24 = scmp.eq.s32.totalorder %s8, 3
    %p25 = por %p23, %p24
    %p26 = scmp.ne.s32.totalorder %s18, %s21
    %p27 = scmp.eq.s32.totalorder %s8, 0
    %p28 = por %p26, %p27
    %p29 = scmp.ne.s32.totalorder %s18, %s21
    %p30 = scmp.eq.s32.totalorder %s13, 3
    %p31 = por %p29, %p30
    %p32 = scmp.ne.s32.totalorder %s21, %s22
    %p33 = scmp.eq.s32.totalorder %s13, 0
    %p34 = por %p32, %p33
    %p35 = scmp.ne.s32.totalorder %s21, %s22
    %p36 = scmp.eq.s32.totalorder %s14, 3
    %p37 = por %p35, %p36
    %p39 = scmp.ne.s32.totalorder %s22, %s38
    %p40 = scmp.eq.s32.totalorder %s14, 0
    %p41 = por %p39, %p40
    %s43 = sadd.s32 %s42, 1
    %p46 = scmp.eq.s32.totalorder %s8, 3
    %p47 = scmp.ne.s32.totalorder %s42, %s44
    %p48 = scmp.eq.s32.totalorder %s8, 0
    %p49 = por %p47, %p48
    %p50 = scmp.ne.s32.totalorder %s42, %s44
    %p51 = scmp.eq.s32.totalorder %s13, 3
    %p52 = por %p50, %p51
    %p53 = scmp.ne.s32.totalorder %s44, %s45
    %p54 = scmp.eq.s32.totalorder %s13, 0
    %p55 = por %p53, %p54
    %p56 = scmp.ne.s32.totalorder %s44, %s45
    %p57 = scmp.eq.s32.totalorder %s14, 3
    %p58 = por %p56, %p57
    %p60 = scmp.ne.s32.totalorder %s45, %s59
    %p61 = scmp.eq.s32.totalorder %s14, 0
    %p62 = por %p60, %p61
    %s63 = ssub.s32 %s8, %s15
    %p64 = scmp.eq.s32.totalorder %s63, 0
    %s66 = sadd.s32 %s65, 1
    %s67 = scalar_select %p64, %s65, %s66
    %p70 = pneg %p64
    %p71 = scmp.eq.s32.totalorder %s8, 3
    %p72 = por %p70, %p71
    %p73 = scmp.ne.s32.totalorder %s65, %s68
    %p74 = scmp.eq.s32.totalorder %s8, 0
    %p75 = por %p73, %p74
    %p76 = scmp.ne.s32.totalorder %s65, %s68
    %p77 = scmp.eq.s32.totalorder %s13, 3
    %p78 = por %p76, %p77
    %p79 = scmp.ne.s32.totalorder %s68, %s69
    %p80 = scmp.eq.s32.totalorder %s13, 0
    %p81 = por %p79, %p80
    %p82 = scmp.ne.s32.totalorder %s68, %s69
    %p83 = scmp.eq.s32.totalorder %s14, 3
    %p84 = por %p82, %p83
    %p86 = scmp.ne.s32.totalorder %s69, %s85
    %p87 = scmp.eq.s32.totalorder %s14, 0
    %p88 = por %p86, %p87
    %p89 = scmp.le.s32.totalorder 1, %s8
    %p90 = scmp.lt.s32.totalorder %s8, 5
    %p91 = pnand %p89, %p90
    %p92 = pneg %p91
    // Predicated region
    $region9: #{tpu_custom_call.1} parent=5 // pred_check
      _
    $region10: #{tpu_custom_call.1} parent=5 // pred_check_branch
      %94 = sbr.rel (%p91) target = $region12
    $region11: #{tpu_custom_call.1} parent=5 // pred_region
      %s95 = ssub.s32 %s8, 1
      // Predicated region
      $region13: #{tpu_custom_call.1} parent=11 // pred_check
        %p96 = pneg %p55
      $region14: #{tpu_custom_call.1} parent=11 // pred_check_branch
        %98 = sbr.rel (%p96) target = $region16
      $region15: #{tpu_custom_call.1} parent=11 // pred_region
        _
      $region16: #{tpu_custom_call.1} parent=11 // pred_fallthru
        _
    $region12: #{tpu_custom_call.1} parent=5 // pred_fallthru
      _
    %p99 = scmp.lt.s32.totalorder %s8, 4
    // Predicated region
    $region17: #{tpu_custom_call.1} parent=5 // pred_check
      %p100 = pneg %p99
    $region18: #{tpu_custom_call.1} parent=5 // pred_check_branch
      %102 = sbr.rel (%p100) target = $region20
    $region19: #{tpu_custom_call.1} parent=5 // pred_region
      // Predicated region
      $region21: #{tpu_custom_call.1} parent=19 // pred_check
        %p103 = pneg %p28
      $region22: #{tpu_custom_call.1} parent=19 // pred_check_branch
        %105 = sbr.rel (%p103) target = $region24
      $region23: #{tpu_custom_call.1} parent=19 // pred_region
        %s106 = smul.u32 256, %s8
        %p107 = scmp.lt.s32.totalorder %s106, 1023
        %s108 = scalar_select %p107, %s106, 1023
        %s109 = smul.addr %s108, 4
        %s110 = scalar_lea.vmem %s0, %s109
        %s111 = smul.u32 256, %s8
      $region24: #{tpu_custom_call.1} parent=19 // pred_fallthru
        _
    $region20: #{tpu_custom_call.1} parent=5 // pred_fallthru
      _
    %p112 = scmp.le.s32.totalorder 1, %s8
    %p113 = scmp.lt.s32.totalorder %s8, 5
    %p114 = pnand %p112, %p113
    %p115 = pneg %p114
    // Predicated region
    $region25: #{tpu_custom_call.1} parent=5 // pred_check
      _
    $region26: #{tpu_custom_call.1} parent=5 // pred_check_branch
      %117 = sbr.rel (%p114) target = $region28
    $region27: #{tpu_custom_call.1} parent=5 // pred_region
      %s118 = ssub.s32 %s8, 1
      %s119 = smul.u32 256, %s13
      %p120 = scmp.lt.s32.totalorder %s119, 1023
      %s121 = scalar_select %p120, %s119, 1023
      %s122 = smul.addr %s121, 4
      %s123 = scalar_lea.vmem %s0, %s122
      %p124 = pneg %p34
      %p125 = pneg %p31
      %p126 = pneg %p55
      %p127 = pneg %p52
      %p128 = pneg %p81
      %p129 = pneg %p78
      %s130 = smul.u32 256, %s13
      %p131 = scmp.lt.s32.totalorder %s130, 1023
      %s132 = scalar_select %p131, %s130, 1023
      %s133 = smul.addr %s132, 4
      %s134 = scalar_lea.vmem %s2, %s133
      %s135 = smul.u32 256, %s13
      %p136 = scmp.lt.s32.totalorder %s135, 1023
      %s137 = scalar_select %p136, %s135, 1023
      %s138 = smul.addr %s137, 4
      %s139 = scalar_lea.vmem %s0, %s138
      %s140 = smul.u32 256, %s13
      %s141 = smul.u32 256, %s13
      %p142 = scmp.lt.s32.totalorder %s141, 1023
      %s143 = scalar_select %p142, %s141, 1023
      %s144 = smul.addr %s143, 4
      %s145 = scalar_lea.vmem %s2, %s144
      %s146 = smul.u32 256, %s13
      %v148 = vld [vmem:[%s139] sm:$0xf]
      %v149 = vld [vmem:[%s139 + $0x4] sm:$0xf]
      %v150 = vld [vmem:[%s139 + $0x8] sm:$0xf]
      %v151 = vld [vmem:[%s139 + $0xc] sm:$0xf]
      %v152 = vld [vmem:[%s139 + $0x10] sm:$0xf]
      %v153 = vld [vmem:[%s139 + $0x14] sm:$0xf]
      %v154 = vld [vmem:[%s139 + $0x18] sm:$0xf]
      %v155 = vld [vmem:[%s139 + $0x1c] sm:$0xf]
      %v156 = vld [vmem:[%s139 + $0x20] sm:$0xf]
      %v157 = vld [vmem:[%s139 + $0x24] sm:$0xf]
      %v158 = vld [vmem:[%s139 + $0x28] sm:$0xf]
      %v159 = vld [vmem:[%s139 + $0x2c] sm:$0xf]
      %v160 = vld [vmem:[%s139 + $0x30] sm:$0xf]
      %v161 = vld [vmem:[%s139 + $0x34] sm:$0xf]
      %v162 = vld [vmem:[%s139 + $0x38] sm:$0xf]
      %v163 = vld [vmem:[%s139 + $0x3c] sm:$0xf]
      %v164 = vld [vmem:[%s139 + $0x40] sm:$0xf]
      %v165 = vld [vmem:[%s139 + $0x44] sm:$0xf]
      %v166 = vld [vmem:[%s139 + $0x48] sm:$0xf]
      %v167 = vld [vmem:[%s139 + $0x4c] sm:$0xf]
      %v168 = vld [vmem:[%s139 + $0x50] sm:$0xf]
      %v169 = vld [vmem:[%s139 + $0x54] sm:$0xf]
      %v170 = vld [vmem:[%s139 + $0x58] sm:$0xf]
      %v171 = vld [vmem:[%s139 + $0x5c] sm:$0xf]
      %v172 = vld [vmem:[%s139 + $0x60] sm:$0xf]
      %v173 = vld [vmem:[%s139 + $0x64] sm:$0xf]
      %v174 = vld [vmem:[%s139 + $0x68] sm:$0xf]
      %v175 = vld [vmem:[%s139 + $0x6c] sm:$0xf]
      %v176 = vld [vmem:[%s139 + $0x70] sm:$0xf]
      %v177 = vld [vmem:[%s139 + $0x74] sm:$0xf]
      %v178 = vld [vmem:[%s139 + $0x78] sm:$0xf]
      %v179 = vld [vmem:[%s139 + $0x7c] sm:$0xf]
      %v180 = vld [vmem:[%s139 + $0x80] sm:$0xf]
      %v181 = vld [vmem:[%s139 + $0x84] sm:$0xf]
      %v182 = vld [vmem:[%s139 + $0x88] sm:$0xf]
      %v183 = vld [vmem:[%s139 + $0x8c] sm:$0xf]
      %v184 = vld [vmem:[%s139 + $0x90] sm:$0xf]
      %v185 = vld [vmem:[%s139 + $0x94] sm:$0xf]
      %v186 = vld [vmem:[%s139 + $0x98] sm:$0xf]
      %v187 = vld [vmem:[%s139 + $0x9c] sm:$0xf]
      %v188 = vld [vmem:[%s139 + $0xa0] sm:$0xf]
      %v189 = vld [vmem:[%s139 + $0xa4] sm:$0xf]
      %v190 = vld [vmem:[%s139 + $0xa8] sm:$0xf]
      %v191 = vld [vmem:[%s139 + $0xac] sm:$0xf]
      %v192 = vld [vmem:[%s139 + $0xb0] sm:$0xf]
      %v193 = vld [vmem:[%s139 + $0xb4] sm:$0xf]
      %v194 = vld [vmem:[%s139 + $0xb8] sm:$0xf]
      %v195 = vld [vmem:[%s139 + $0xbc] sm:$0xf]
      %v196 = vld [vmem:[%s139 + $0xc0] sm:$0xf]
      %v197 = vld [vmem:[%s139 + $0xc4] sm:$0xf]
      %v198 = vld [vmem:[%s139 + $0xc8] sm:$0xf]
      %v199 = vld [vmem:[%s139 + $0xcc] sm:$0xf]
      %v200 = vld [vmem:[%s139 + $0xd0] sm:$0xf]
      %v201 = vld [vmem:[%s139 + $0xd4] sm:$0xf]
      %v202 = vld [vmem:[%s139 + $0xd8] sm:$0xf]
      %v203 = vld [vmem:[%s139 + $0xdc] sm:$0xf]
      %v204 = vld [vmem:[%s139 + $0xe0] sm:$0xf]
      %v205 = vld [vmem:[%s139 + $0xe4] sm:$0xf]
      %v206 = vld [vmem:[%s139 + $0xe8] sm:$0xf]
      %v207 = vld [vmem:[%s139 + $0xec] sm:$0xf]
      %v208 = vld [vmem:[%s139 + $0xf0] sm:$0xf]
      %v209 = vld [vmem:[%s139 + $0xf4] sm:$0xf]
      %v210 = vld [vmem:[%s139 + $0xf8] sm:$0xf]
      %v211 = vld [vmem:[%s139 + $0xfc] sm:$0xf]
      %v212 = vld [vmem:[%s139 + $0x100] sm:$0xf]
      %v213 = vld [vmem:[%s139 + $0x104] sm:$0xf]
      %v214 = vld [vmem:[%s139 + $0x108] sm:$0xf]
      %v215 = vld [vmem:[%s139 + $0x10c] sm:$0xf]
      %v216 = vld [vmem:[%s139 + $0x110] sm:$0xf]
      %v217 = vld [vmem:[%s139 + $0x114] sm:$0xf]
      %v218 = vld [vmem:[%s139 + $0x118] sm:$0xf]
      %v219 = vld [vmem:[%s139 + $0x11c] sm:$0xf]
      %v220 = vld [vmem:[%s139 + $0x120] sm:$0xf]
      %v221 = vld [vmem:[%s139 + $0x124] sm:$0xf]
      %v222 = vld [vmem:[%s139 + $0x128] sm:$0xf]
      %v223 = vld [vmem:[%s139 + $0x12c] sm:$0xf]
      %v224 = vld [vmem:[%s139 + $0x130] sm:$0xf]
      %v225 = vld [vmem:[%s139 + $0x134] sm:$0xf]
      %v226 = vld [vmem:[%s139 + $0x138] sm:$0xf]
      %v227 = vld [vmem:[%s139 + $0x13c] sm:$0xf]
      %v228 = vld [vmem:[%s139 + $0x140] sm:$0xf]
      %v229 = vld [vmem:[%s139 + $0x144] sm:$0xf]
      %v230 = vld [vmem:[%s139 + $0x148] sm:$0xf]
      %v231 = vld [vmem:[%s139 + $0x14c] sm:$0xf]
      %v232 = vld [vmem:[%s139 + $0x150] sm:$0xf]
      %v233 = vld [vmem:[%s139 + $0x154] sm:$0xf]
      %v234 = vld [vmem:[%s139 + $0x158] sm:$0xf]
      %v235 = vld [vmem:[%s139 + $0x15c] sm:$0xf]
      %v236 = vld [vmem:[%s139 + $0x160] sm:$0xf]
      %v237 = vld [vmem:[%s139 + $0x164] sm:$0xf]
      %v238 = vld [vmem:[%s139 + $0x168] sm:$0xf]
      %v239 = vld [vmem:[%s139 + $0x16c] sm:$0xf]
      %v240 = vld [vmem:[%s139 + $0x170] sm:$0xf]
      %v241 = vld [vmem:[%s139 + $0x174] sm:$0xf]
      %v242 = vld [vmem:[%s139 + $0x178] sm:$0xf]
      %v243 = vld [vmem:[%s139 + $0x17c] sm:$0xf]
      %v244 = vld [vmem:[%s139 + $0x180] sm:$0xf]
      %v245 = vld [vmem:[%s139 + $0x184] sm:$0xf]
      %v246 = vld [vmem:[%s139 + $0x188] sm:$0xf]
      %v247 = vld [vmem:[%s139 + $0x18c] sm:$0xf]
      %v248 = vld [vmem:[%s139 + $0x190] sm:$0xf]
      %v249 = vld [vmem:[%s139 + $0x194] sm:$0xf]
      %v250 = vld [vmem:[%s139 + $0x198] sm:$0xf]
      %v251 = vld [vmem:[%s139 + $0x19c] sm:$0xf]
      %v252 = vld [vmem:[%s139 + $0x1a0] sm:$0xf]
      %v253 = vld [vmem:[%s139 + $0x1a4] sm:$0xf]
      %v254 = vld [vmem:[%s139 + $0x1a8] sm:$0xf]
      %v255 = vld [vmem:[%s139 + $0x1ac] sm:$0xf]
      %v256 = vld [vmem:[%s139 + $0x1b0] sm:$0xf]
      %v257 = vld [vmem:[%s139 + $0x1b4] sm:$0xf]
      %v258 = vld [vmem:[%s139 + $0x1b8] sm:$0xf]
      %v259 = vld [vmem:[%s139 + $0x1bc] sm:$0xf]
      %v260 = vld [vmem:[%s139 + $0x1c0] sm:$0xf]
      %v261 = vld [vmem:[%s139 + $0x1c4] sm:$0xf]
      %v262 = vld [vmem:[%s139 + $0x1c8] sm:$0xf]
      %v263 = vld [vmem:[%s139 + $0x1cc] sm:$0xf]
      %v264 = vld [vmem:[%s139 + $0x1d0] sm:$0xf]
      %v265 = vld [vmem:[%s139 + $0x1d4] sm:$0xf]
      %v266 = vld [vmem:[%s139 + $0x1d8] sm:$0xf]
      %v267 = vld [vmem:[%s139 + $0x1dc] sm:$0xf]
      %v268 = vld [vmem:[%s139 + $0x1e0] sm:$0xf]
      %v269 = vld [vmem:[%s139 + $0x1e4] sm:$0xf]
      %v270 = vld [vmem:[%s139 + $0x1e8] sm:$0xf]
      %v271 = vld [vmem:[%s139 + $0x1ec] sm:$0xf]
      %v272 = vld [vmem:[%s139 + $0x1f0] sm:$0xf]
      %v273 = vld [vmem:[%s139 + $0x1f4] sm:$0xf]
      %v274 = vld [vmem:[%s139 + $0x1f8] sm:$0xf]
      %v275 = vld [vmem:[%s139 + $0x1fc] sm:$0xf]
      %v276 = vld [vmem:[%s139 + $0x200] sm:$0xf]
      %v277 = vld [vmem:[%s139 + $0x204] sm:$0xf]
      %v278 = vld [vmem:[%s139 + $0x208] sm:$0xf]
      %v279 = vld [vmem:[%s139 + $0x20c] sm:$0xf]
      %v280 = vld [vmem:[%s139 + $0x210] sm:$0xf]
      %v281 = vld [vmem:[%s139 + $0x214] sm:$0xf]
      %v282 = vld [vmem:[%s139 + $0x218] sm:$0xf]
      %v283 = vld [vmem:[%s139 + $0x21c] sm:$0xf]
      %v284 = vld [vmem:[%s139 + $0x220] sm:$0xf]
      %v285 = vld [vmem:[%s139 + $0x224] sm:$0xf]
      %v286 = vld [vmem:[%s139 + $0x228] sm:$0xf]
      %v287 = vld [vmem:[%s139 + $0x22c] sm:$0xf]
      %v288 = vld [vmem:[%s139 + $0x230] sm:$0xf]
      %v289 = vld [vmem:[%s139 + $0x234] sm:$0xf]
      %v290 = vld [vmem:[%s139 + $0x238] sm:$0xf]
      %v291 = vld [vmem:[%s139 + $0x23c] sm:$0xf]
      %v292 = vld [vmem:[%s139 + $0x240] sm:$0xf]
      %v293 = vld [vmem:[%s139 + $0x244] sm:$0xf]
      %v294 = vld [vmem:[%s139 + $0x248] sm:$0xf]
      %v295 = vld [vmem:[%s139 + $0x24c] sm:$0xf]
      %v296 = vld [vmem:[%s139 + $0x250] sm:$0xf]
      %v297 = vld [vmem:[%s139 + $0x254] sm:$0xf]
      %v298 = vld [vmem:[%s139 + $0x258] sm:$0xf]
      %v299 = vld [vmem:[%s139 + $0x25c] sm:$0xf]
      %v300 = vld [vmem:[%s139 + $0x260] sm:$0xf]
      %v301 = vld [vmem:[%s139 + $0x264] sm:$0xf]
      %v302 = vld [vmem:[%s139 + $0x268] sm:$0xf]
      %v303 = vld [vmem:[%s139 + $0x26c] sm:$0xf]
      %v304 = vld [vmem:[%s139 + $0x270] sm:$0xf]
      %v305 = vld [vmem:[%s139 + $0x274] sm:$0xf]
      %v306 = vld [vmem:[%s139 + $0x278] sm:$0xf]
      %v307 = vld [vmem:[%s139 + $0x27c] sm:$0xf]
      %v308 = vld [vmem:[%s139 + $0x280] sm:$0xf]
      %v309 = vld [vmem:[%s139 + $0x284] sm:$0xf]
      %v310 = vld [vmem:[%s139 + $0x288] sm:$0xf]
      %v311 = vld [vmem:[%s139 + $0x28c] sm:$0xf]
      %v312 = vld [vmem:[%s139 + $0x290] sm:$0xf]
      %v313 = vld [vmem:[%s139 + $0x294] sm:$0xf]
      %v314 = vld [vmem:[%s139 + $0x298] sm:$0xf]
      %v315 = vld [vmem:[%s139 + $0x29c] sm:$0xf]
      %v316 = vld [vmem:[%s139 + $0x2a0] sm:$0xf]
      %v317 = vld [vmem:[%s139 + $0x2a4] sm:$0xf]
      %v318 = vld [vmem:[%s139 + $0x2a8] sm:$0xf]
      %v319 = vld [vmem:[%s139 + $0x2ac] sm:$0xf]
      %v320 = vld [vmem:[%s139 + $0x2b0] sm:$0xf]
      %v321 = vld [vmem:[%s139 + $0x2b4] sm:$0xf]
      %v322 = vld [vmem:[%s139 + $0x2b8] sm:$0xf]
      %v323 = vld [vmem:[%s139 + $0x2bc] sm:$0xf]
      %v324 = vld [vmem:[%s139 + $0x2c0] sm:$0xf]
      %v325 = vld [vmem:[%s139 + $0x2c4] sm:$0xf]
      %v326 = vld [vmem:[%s139 + $0x2c8] sm:$0xf]
      %v327 = vld [vmem:[%s139 + $0x2cc] sm:$0xf]
      %v328 = vld [vmem:[%s139 + $0x2d0] sm:$0xf]
      %v329 = vld [vmem:[%s139 + $0x2d4] sm:$0xf]
      %v330 = vld [vmem:[%s139 + $0x2d8] sm:$0xf]
      %v331 = vld [vmem:[%s139 + $0x2dc] sm:$0xf]
      %v332 = vld [vmem:[%s139 + $0x2e0] sm:$0xf]
      %v333 = vld [vmem:[%s139 + $0x2e4] sm:$0xf]
      %v334 = vld [vmem:[%s139 + $0x2e8] sm:$0xf]
      %v335 = vld [vmem:[%s139 + $0x2ec] sm:$0xf]
      %v336 = vld [vmem:[%s139 + $0x2f0] sm:$0xf]
      %v337 = vld [vmem:[%s139 + $0x2f4] sm:$0xf]
      %v338 = vld [vmem:[%s139 + $0x2f8] sm:$0xf]
      %v339 = vld [vmem:[%s139 + $0x2fc] sm:$0xf]
      %v340 = vld [vmem:[%s139 + $0x300] sm:$0xf]
      %v341 = vld [vmem:[%s139 + $0x304] sm:$0xf]
      %v342 = vld [vmem:[%s139 + $0x308] sm:$0xf]
      %v343 = vld [vmem:[%s139 + $0x30c] sm:$0xf]
      %v344 = vld [vmem:[%s139 + $0x310] sm:$0xf]
      %v345 = vld [vmem:[%s139 + $0x314] sm:$0xf]
      %v346 = vld [vmem:[%s139 + $0x318] sm:$0xf]
      %v347 = vld [vmem:[%s139 + $0x31c] sm:$0xf]
      %v348 = vld [vmem:[%s139 + $0x320] sm:$0xf]
      %v349 = vld [vmem:[%s139 + $0x324] sm:$0xf]
      %v350 = vld [vmem:[%s139 + $0x328] sm:$0xf]
      %v351 = vld [vmem:[%s139 + $0x32c] sm:$0xf]
      %v352 = vld [vmem:[%s139 + $0x330] sm:$0xf]
      %v353 = vld [vmem:[%s139 + $0x334] sm:$0xf]
      %v354 = vld [vmem:[%s139 + $0x338] sm:$0xf]
      %v355 = vld [vmem:[%s139 + $0x33c] sm:$0xf]
      %v356 = vld [vmem:[%s139 + $0x340] sm:$0xf]
      %v357 = vld [vmem:[%s139 + $0x344] sm:$0xf]
      %v358 = vld [vmem:[%s139 + $0x348] sm:$0xf]
      %v359 = vld [vmem:[%s139 + $0x34c] sm:$0xf]
      %v360 = vld [vmem:[%s139 + $0x350] sm:$0xf]
      %v361 = vld [vmem:[%s139 + $0x354] sm:$0xf]
      %v362 = vld [vmem:[%s139 + $0x358] sm:$0xf]
      %v363 = vld [vmem:[%s139 + $0x35c] sm:$0xf]
      %v364 = vld [vmem:[%s139 + $0x360] sm:$0xf]
      %v365 = vld [vmem:[%s139 + $0x364] sm:$0xf]
      %v366 = vld [vmem:[%s139 + $0x368] sm:$0xf]
      %v367 = vld [vmem:[%s139 + $0x36c] sm:$0xf]
      %v368 = vld [vmem:[%s139 + $0x370] sm:$0xf]
      %v369 = vld [vmem:[%s139 + $0x374] sm:$0xf]
      %v370 = vld [vmem:[%s139 + $0x378] sm:$0xf]
      %v371 = vld [vmem:[%s139 + $0x37c] sm:$0xf]
      %v372 = vld [vmem:[%s139 + $0x380] sm:$0xf]
      %v373 = vld [vmem:[%s139 + $0x384] sm:$0xf]
      %v374 = vld [vmem:[%s139 + $0x388] sm:$0xf]
      %v375 = vld [vmem:[%s139 + $0x38c] sm:$0xf]
      %v376 = vld [vmem:[%s139 + $0x390] sm:$0xf]
      %v377 = vld [vmem:[%s139 + $0x394] sm:$0xf]
      %v378 = vld [vmem:[%s139 + $0x398] sm:$0xf]
      %v379 = vld [vmem:[%s139 + $0x39c] sm:$0xf]
      %v380 = vld [vmem:[%s139 + $0x3a0] sm:$0xf]
      %v381 = vld [vmem:[%s139 + $0x3a4] sm:$0xf]
      %v382 = vld [vmem:[%s139 + $0x3a8] sm:$0xf]
      %v383 = vld [vmem:[%s139 + $0x3ac] sm:$0xf]
      %v384 = vld [vmem:[%s139 + $0x3b0] sm:$0xf]
      %v385 = vld [vmem:[%s139 + $0x3b4] sm:$0xf]
      %v386 = vld [vmem:[%s139 + $0x3b8] sm:$0xf]
      %v387 = vld [vmem:[%s139 + $0x3bc] sm:$0xf]
      %v388 = vld [vmem:[%s139 + $0x3c0] sm:$0xf]
      %v389 = vld [vmem:[%s139 + $0x3c4] sm:$0xf]
      %v390 = vld [vmem:[%s139 + $0x3c8] sm:$0xf]
      %v391 = vld [vmem:[%s139 + $0x3cc] sm:$0xf]
      %v392 = vld [vmem:[%s139 + $0x3d0] sm:$0xf]
      %v393 = vld [vmem:[%s139 + $0x3d4] sm:$0xf]
      %v394 = vld [vmem:[%s139 + $0x3d8] sm:$0xf]
      %v395 = vld [vmem:[%s139 + $0x3dc] sm:$0xf]
      %v396 = vld [vmem:[%s139 + $0x3e0] sm:$0xf]
      %v397 = vld [vmem:[%s139 + $0x3e4] sm:$0xf]
      %v398 = vld [vmem:[%s139 + $0x3e8] sm:$0xf]
      %v399 = vld [vmem:[%s139 + $0x3ec] sm:$0xf]
      %v400 = vld [vmem:[%s139 + $0x3f0] sm:$0xf]
      %v401 = vld [vmem:[%s139 + $0x3f4] sm:$0xf]
      %v402 = vld [vmem:[%s139 + $0x3f8] sm:$0xf]
      %v403 = vld [vmem:[%s139 + $0x3fc] sm:$0xf]
      %v404 = vld [vmem:[%s1] sm:$0xf]
      %v405 = vld [vmem:[%s1 + $0x4] sm:$0xf]
      %v406 = vld [vmem:[%s1 + $0x8] sm:$0xf]
      %v407 = vld [vmem:[%s1 + $0xc] sm:$0xf]
      %v408 = vld [vmem:[%s1 + $0x10] sm:$0xf]
      %v409 = vld [vmem:[%s1 + $0x14] sm:$0xf]
      %v666 = vunpack.c.l.b16 %v148
      %v667 = vunpack.c.l.b16 %v149
      %v668 = vunpack.c.l.b16 %v150
      %v669 = vunpack.c.l.b16 %v151
      %v670 = vunpack.c.l.b16 %v152
      %v671 = vunpack.c.l.b16 %v153
      %v672 = vunpack.c.l.b16 %v154
      %v673 = vunpack.c.l.b16 %v155
      %v674 = vunpack.c.l.b16 %v156
      %v675 = vunpack.c.l.b16 %v157
      %v676 = vunpack.c.l.b16 %v158
      %v677 = vunpack.c.l.b16 %v159
      %v678 = vunpack.c.l.b16 %v160
      %v679 = vunpack.c.l.b16 %v161
      %v680 = vunpack.c.l.b16 %v162
      %v681 = vunpack.c.l.b16 %v163
      %v682 = vunpack.c.l.b16 %v164
      %v683 = vunpack.c.l.b16 %v165
      %v684 = vunpack.c.l.b16 %v166
      %v685 = vunpack.c.l.b16 %v167
      %v686 = vunpack.c.l.b16 %v168
      %v687 = vunpack.c.l.b16 %v169
      %v688 = vunpack.c.l.b16 %v170
      %v689 = vunpack.c.l.b16 %v171
      %v690 = vunpack.c.l.b16 %v172
      %v691 = vunpack.c.l.b16 %v173
      %v692 = vunpack.c.l.b16 %v174
      %v693 = vunpack.c.l.b16 %v175
      %v694 = vunpack.c.l.b16 %v176
      %v695 = vunpack.c.l.b16 %v177
      %v696 = vunpack.c.l.b16 %v178
      %v697 = vunpack.c.l.b16 %v179
      %v698 = vunpack.c.l.b16 %v180
      %v699 = vunpack.c.l.b16 %v181
      %v700 = vunpack.c.l.b16 %v182
      %v701 = vunpack.c.l.b16 %v183
      %v702 = vunpack.c.l.b16 %v184
      %v703 = vunpack.c.l.b16 %v185
      %v704 = vunpack.c.l.b16 %v186
      %v705 = vunpack.c.l.b16 %v187
      %v706 = vunpack.c.l.b16 %v188
      %v707 = vunpack.c.l.b16 %v189
      %v708 = vunpack.c.l.b16 %v190
      %v709 = vunpack.c.l.b16 %v191
      %v710 = vunpack.c.l.b16 %v192
      %v711 = vunpack.c.l.b16 %v193
      %v712 = vunpack.c.l.b16 %v194
      %v713 = vunpack.c.l.b16 %v195
      %v714 = vunpack.c.l.b16 %v196
      %v715 = vunpack.c.l.b16 %v197
      %v716 = vunpack.c.l.b16 %v198
      %v717 = vunpack.c.l.b16 %v199
      %v718 = vunpack.c.l.b16 %v200
      %v719 = vunpack.c.l.b16 %v201
      %v720 = vunpack.c.l.b16 %v202
      %v721 = vunpack.c.l.b16 %v203
      %v722 = vunpack.c.l.b16 %v204
      %v723 = vunpack.c.l.b16 %v205
      %v724 = vunpack.c.l.b16 %v206
      %v725 = vunpack.c.l.b16 %v207
      %v726 = vunpack.c.l.b16 %v208
      %v727 = vunpack.c.l.b16 %v209
      %v728 = vunpack.c.l.b16 %v210
      %v729 = vunpack.c.l.b16 %v211
      %v730 = vunpack.c.l.b16 %v212
      %v731 = vunpack.c.l.b16 %v213
      %v732 = vunpack.c.l.b16 %v214
      %v733 = vunpack.c.l.b16 %v215
      %v734 = vunpack.c.l.b16 %v216
      %v735 = vunpack.c.l.b16 %v217
      %v736 = vunpack.c.l.b16 %v218
      %v737 = vunpack.c.l.b16 %v219
      %v738 = vunpack.c.l.b16 %v220
      %v739 = vunpack.c.l.b16 %v221
      %v740 = vunpack.c.l.b16 %v222
      %v741 = vunpack.c.l.b16 %v223
      %v742 = vunpack.c.l.b16 %v224
      %v743 = vunpack.c.l.b16 %v225
      %v744 = vunpack.c.l.b16 %v226
      %v745 = vunpack.c.l.b16 %v227
      %v746 = vunpack.c.l.b16 %v228
      %v747 = vunpack.c.l.b16 %v229
      %v748 = vunpack.c.l.b16 %v230
      %v749 = vunpack.c.l.b16 %v231
      %v750 = vunpack.c.l.b16 %v232
      %v751 = vunpack.c.l.b16 %v233
      %v752 = vunpack.c.l.b16 %v234
      %v753 = vunpack.c.l.b16 %v235
      %v754 = vunpack.c.l.b16 %v236
      %v755 = vunpack.c.l.b16 %v237
      %v756 = vunpack.c.l.b16 %v238
      %v757 = vunpack.c.l.b16 %v239
      %v758 = vunpack.c.l.b16 %v240
      %v759 = vunpack.c.l.b16 %v241
      %v760 = vunpack.c.l.b16 %v242
      %v761 = vunpack.c.l.b16 %v243
      %v762 = vunpack.c.l.b16 %v244
      %v763 = vunpack.c.l.b16 %v245
      %v764 = vunpack.c.l.b16 %v246
      %v765 = vunpack.c.l.b16 %v247
      %v766 = vunpack.c.l.b16 %v248
      %v767 = vunpack.c.l.b16 %v249
      %v768 = vunpack.c.l.b16 %v250
      %v769 = vunpack.c.l.b16 %v251
      %v770 = vunpack.c.l.b16 %v252
      %v771 = vunpack.c.l.b16 %v253
      %v772 = vunpack.c.l.b16 %v254
      %v773 = vunpack.c.l.b16 %v255
      %v774 = vunpack.c.l.b16 %v256
      %v775 = vunpack.c.l.b16 %v257
      %v776 = vunpack.c.l.b16 %v258
      %v777 = vunpack.c.l.b16 %v259
      %v778 = vunpack.c.l.b16 %v260
      %v779 = vunpack.c.l.b16 %v261
      %v780 = vunpack.c.l.b16 %v262
      %v781 = vunpack.c.l.b16 %v263
      %v782 = vunpack.c.l.b16 %v264
      %v783 = vunpack.c.l.b16 %v265
      %v784 = vunpack.c.l.b16 %v266
      %v785 = vunpack.c.l.b16 %v267
      %v786 = vunpack.c.l.b16 %v268
      %v787 = vunpack.c.l.b16 %v269
      %v788 = vunpack.c.l.b16 %v270
      %v789 = vunpack.c.l.b16 %v271
      %v790 = vunpack.c.l.b16 %v272
      %v791 = vunpack.c.l.b16 %v273
      %v792 = vunpack.c.l.b16 %v274
      %v793 = vunpack.c.l.b16 %v275
      %v794 = vunpack.c.l.b16 %v276
      %v795 = vunpack.c.l.b16 %v277
      %v796 = vunpack.c.l.b16 %v278
      %v797 = vunpack.c.l.b16 %v279
      %v798 = vunpack.c.l.b16 %v280
      %v799 = vunpack.c.l.b16 %v281
      %v800 = vunpack.c.l.b16 %v282
      %v801 = vunpack.c.l.b16 %v283
      %v802 = vunpack.c.l.b16 %v284
      %v803 = vunpack.c.l.b16 %v285
      %v804 = vunpack.c.l.b16 %v286
      %v805 = vunpack.c.l.b16 %v287
      %v806 = vunpack.c.l.b16 %v288
      %v807 = vunpack.c.l.b16 %v289
      %v808 = vunpack.c.l.b16 %v290
      %v809 = vunpack.c.l.b16 %v291
      %v810 = vunpack.c.l.b16 %v292
      %v811 = vunpack.c.l.b16 %v293
      %v812 = vunpack.c.l.b16 %v294
      %v813 = vunpack.c.l.b16 %v295
      %v814 = vunpack.c.l.b16 %v296
      %v815 = vunpack.c.l.b16 %v297
      %v816 = vunpack.c.l.b16 %v298
      %v817 = vunpack.c.l.b16 %v299
      %v818 = vunpack.c.l.b16 %v300
      %v819 = vunpack.c.l.b16 %v301
      %v820 = vunpack.c.l.b16 %v302
      %v821 = vunpack.c.l.b16 %v303
      %v822 = vunpack.c.l.b16 %v304
      %v823 = vunpack.c.l.b16 %v305
      %v824 = vunpack.c.l.b16 %v306
      %v825 = vunpack.c.l.b16 %v307
      %v826 = vunpack.c.l.b16 %v308
      %v827 = vunpack.c.l.b16 %v309
      %v828 = vunpack.c.l.b16 %v310
      %v829 = vunpack.c.l.b16 %v311
      %v830 = vunpack.c.l.b16 %v312
      %v831 = vunpack.c.l.b16 %v313
      %v832 = vunpack.c.l.b16 %v314
      %v833 = vunpack.c.l.b16 %v315
      %v834 = vunpack.c.l.b16 %v316
      %v835 = vunpack.c.l.b16 %v317
      %v836 = vunpack.c.l.b16 %v318
      %v837 = vunpack.c.l.b16 %v319
      %v838 = vunpack.c.l.b16 %v320
      %v839 = vunpack.c.l.b16 %v321
      %v840 = vunpack.c.l.b16 %v322
      %v841 = vunpack.c.l.b16 %v323
      %v842 = vunpack.c.l.b16 %v324
      %v843 = vunpack.c.l.b16 %v325
      %v844 = vunpack.c.l.b16 %v326
      %v845 = vunpack.c.l.b16 %v327
      %v846 = vunpack.c.l.b16 %v328
      %v847 = vunpack.c.l.b16 %v329
      %v848 = vunpack.c.l.b16 %v330
      %v849 = vunpack.c.l.b16 %v331
      %v850 = vunpack.c.l.b16 %v332
      %v851 = vunpack.c.l.b16 %v333
      %v852 = vunpack.c.l.b16 %v334
      %v853 = vunpack.c.l.b16 %v335
      %v854 = vunpack.c.l.b16 %v336
      %v855 = vunpack.c.l.b16 %v337
      %v856 = vunpack.c.l.b16 %v338
      %v857 = vunpack.c.l.b16 %v339
      %v858 = vunpack.c.l.b16 %v340
      %v859 = vunpack.c.l.b16 %v341
      %v860 = vunpack.c.l.b16 %v342
      %v861 = vunpack.c.l.b16 %v343
      %v862 = vunpack.c.l.b16 %v344
      %v863 = vunpack.c.l.b16 %v345
      %v864 = vunpack.c.l.b16 %v346
      %v865 = vunpack.c.l.b16 %v347
      %v866 = vunpack.c.l.b16 %v348
      %v867 = vunpack.c.l.b16 %v349
      %v868 = vunpack.c.l.b16 %v350
      %v869 = vunpack.c.l.b16 %v351
      %v870 = vunpack.c.l.b16 %v352
      %v871 = vunpack.c.l.b16 %v353
      %v872 = vunpack.c.l.b16 %v354
      %v873 = vunpack.c.l.b16 %v355
      %v874 = vunpack.c.l.b16 %v356
      %v875 = vunpack.c.l.b16 %v357
      %v876 = vunpack.c.l.b16 %v358
      %v877 = vunpack.c.l.b16 %v359
      %v878 = vunpack.c.l.b16 %v360
      %v879 = vunpack.c.l.b16 %v361
      %v880 = vunpack.c.l.b16 %v362
      %v881 = vunpack.c.l.b16 %v363
      %v882 = vunpack.c.l.b16 %v364
      %v883 = vunpack.c.l.b16 %v365
      %v884 = vunpack.c.l.b16 %v366
      %v885 = vunpack.c.l.b16 %v367
      %v886 = vunpack.c.l.b16 %v368
      %v887 = vunpack.c.l.b16 %v369
      %v888 = vunpack.c.l.b16 %v370
      %v889 = vunpack.c.l.b16 %v371
      %v890 = vunpack.c.l.b16 %v372
      %v891 = vunpack.c.l.b16 %v373
      %v892 = vunpack.c.l.b16 %v374
      %v893 = vunpack.c.l.b16 %v375
      %v894 = vunpack.c.l.b16 %v376
      %v895 = vunpack.c.l.b16 %v377
      %v896 = vunpack.c.l.b16 %v378
      %v897 = vunpack.c.l.b16 %v379
      %v898 = vunpack.c.l.b16 %v380
      %v899 = vunpack.c.l.b16 %v381
      %v900 = vunpack.c.l.b16 %v382
      %v901 = vunpack.c.l.b16 %v383
      %v902 = vunpack.c.l.b16 %v384
      %v903 = vunpack.c.l.b16 %v385
      %v904 = vunpack.c.l.b16 %v386
      %v905 = vunpack.c.l.b16 %v387
      %v906 = vunpack.c.l.b16 %v388
      %v907 = vunpack.c.l.b16 %v389
      %v908 = vunpack.c.l.b16 %v390
      %v909 = vunpack.c.l.b16 %v391
      %v910 = vunpack.c.l.b16 %v392
      %v911 = vunpack.c.l.b16 %v393
      %v912 = vunpack.c.l.b16 %v394
      %v913 = vunpack.c.l.b16 %v395
      %v914 = vunpack.c.l.b16 %v396
      %v915 = vunpack.c.l.b16 %v397
      %v916 = vunpack.c.l.b16 %v398
      %v917 = vunpack.c.l.b16 %v399
      %v918 = vunpack.c.l.b16 %v400
      %v919 = vunpack.c.l.b16 %v401
      %v920 = vunpack.c.l.b16 %v402
      %v921 = vunpack.c.l.b16 %v403
      %v922 = vpack.c.b16 %v667, %v666
      %v923 = vpack.c.b16 %v669, %v668
      %v924 = vpack.c.b16 %v671, %v670
      %v925 = vpack.c.b16 %v673, %v672
      %v926 = vpack.c.b16 %v675, %v674
      %v927 = vpack.c.b16 %v677, %v676
      %v928 = vpack.c.b16 %v679, %v678
      %v929 = vpack.c.b16 %v681, %v680
      %v930 = vpack.c.b16 %v683, %v682
      %v931 = vpack.c.b16 %v685, %v684
      %v932 = vpack.c.b16 %v687, %v686
      %v933 = vpack.c.b16 %v689, %v688
      %v934 = vpack.c.b16 %v691, %v690
      %v935 = vpack.c.b16 %v693, %v692
      %v936 = vpack.c.b16 %v695, %v694
      %v937 = vpack.c.b16 %v697, %v696
      %v938 = vpack.c.b16 %v699, %v698
      %v939 = vpack.c.b16 %v701, %v700
      %v940 = vpack.c.b16 %v703, %v702
      %v941 = vpack.c.b16 %v705, %v704
      %v942 = vpack.c.b16 %v707, %v706
      %v943 = vpack.c.b16 %v709, %v708
      %v944 = vpack.c.b16 %v711, %v710
      %v945 = vpack.c.b16 %v713, %v712
      %v946 = vpack.c.b16 %v715, %v714
      %v947 = vpack.c.b16 %v717, %v716
      %v948 = vpack.c.b16 %v719, %v718
      %v949 = vpack.c.b16 %v721, %v720
      %v950 = vpack.c.b16 %v723, %v722
      %v951 = vpack.c.b16 %v725, %v724
      %v952 = vpack.c.b16 %v727, %v726
      %v953 = vpack.c.b16 %v729, %v728
      %v954 = vpack.c.b16 %v731, %v730
      %v955 = vpack.c.b16 %v733, %v732
      %v956 = vpack.c.b16 %v735, %v734
      %v957 = vpack.c.b16 %v737, %v736
      %v958 = vpack.c.b16 %v739, %v738
      %v959 = vpack.c.b16 %v741, %v740
      %v960 = vpack.c.b16 %v743, %v742
      %v961 = vpack.c.b16 %v745, %v744
      %v962 = vpack.c.b16 %v747, %v746
      %v963 = vpack.c.b16 %v749, %v748
      %v964 = vpack.c.b16 %v751, %v750
      %v965 = vpack.c.b16 %v753, %v752
      %v966 = vpack.c.b16 %v755, %v754
      %v967 = vpack.c.b16 %v757, %v756
      %v968 = vpack.c.b16 %v759, %v758
      %v969 = vpack.c.b16 %v761, %v760
      %v970 = vpack.c.b16 %v763, %v762
      %v971 = vpack.c.b16 %v765, %v764
      %v972 = vpack.c.b16 %v767, %v766
      %v973 = vpack.c.b16 %v769, %v768
      %v974 = vpack.c.b16 %v771, %v770
      %v975 = vpack.c.b16 %v773, %v772
      %v976 = vpack.c.b16 %v775, %v774
      %v977 = vpack.c.b16 %v777, %v776
      %v978 = vpack.c.b16 %v779, %v778
      %v979 = vpack.c.b16 %v781, %v780
      %v980 = vpack.c.b16 %v783, %v782
      %v981 = vpack.c.b16 %v785, %v784
      %v982 = vpack.c.b16 %v787, %v786
      %v983 = vpack.c.b16 %v789, %v788
      %v984 = vpack.c.b16 %v791, %v790
      %v985 = vpack.c.b16 %v793, %v792
      %v986 = vpack.c.b16 %v795, %v794
      %v987 = vpack.c.b16 %v797, %v796
      %v988 = vpack.c.b16 %v799, %v798
      %v989 = vpack.c.b16 %v801, %v800
      %v990 = vpack.c.b16 %v803, %v802
      %v991 = vpack.c.b16 %v805, %v804
      %v992 = vpack.c.b16 %v807, %v806
      %v993 = vpack.c.b16 %v809, %v808
      %v994 = vpack.c.b16 %v811, %v810
      %v995 = vpack.c.b16 %v813, %v812
      %v996 = vpack.c.b16 %v815, %v814
      %v997 = vpack.c.b16 %v817, %v816
      %v998 = vpack.c.b16 %v819, %v818
      %v999 = vpack.c.b16 %v821, %v820
      %v1000 = vpack.c.b16 %v823, %v822
      %v1001 = vpack.c.b16 %v825, %v824
      %v1002 = vpack.c.b16 %v827, %v826
      %v1003 = vpack.c.b16 %v829, %v828
      %v1004 = vpack.c.b16 %v831, %v830
      %v1005 = vpack.c.b16 %v833, %v832
      %v1006 = vpack.c.b16 %v835, %v834
      %v1007 = vpack.c.b16 %v837, %v836
      %v1008 = vpack.c.b16 %v839, %v838
      %v1009 = vpack.c.b16 %v841, %v840
      %v1010 = vpack.c.b16 %v843, %v842
      %v1011 = vpack.c.b16 %v845, %v844
      %v1012 = vpack.c.b16 %v847, %v846
      %v1013 = vpack.c.b16 %v849, %v848
      %v1014 = vpack.c.b16 %v851, %v850
      %v1015 = vpack.c.b16 %v853, %v852
      %v1016 = vpack.c.b16 %v855, %v854
      %v1017 = vpack.c.b16 %v857, %v856
      %v1018 = vpack.c.b16 %v859, %v858
      %v1019 = vpack.c.b16 %v861, %v860
      %v1020 = vpack.c.b16 %v863, %v862
      %v1021 = vpack.c.b16 %v865, %v864
      %v1022 = vpack.c.b16 %v867, %v866
      %v1023 = vpack.c.b16 %v869, %v868
      %v1024 = vpack.c.b16 %v871, %v870
      %v1025 = vpack.c.b16 %v873, %v872
      %v1026 = vpack.c.b16 %v875, %v874
      %v1027 = vpack.c.b16 %v877, %v876
      %v1028 = vpack.c.b16 %v879, %v878
      %v1029 = vpack.c.b16 %v881, %v880
      %v1030 = vpack.c.b16 %v883, %v882
      %v1031 = vpack.c.b16 %v885, %v884
      %v1032 = vpack.c.b16 %v887, %v886
      %v1033 = vpack.c.b16 %v889, %v888
      %v1034 = vpack.c.b16 %v891, %v890
      %v1035 = vpack.c.b16 %v893, %v892
      %v1036 = vpack.c.b16 %v895, %v894
      %v1037 = vpack.c.b16 %v897, %v896
      %v1038 = vpack.c.b16 %v899, %v898
      %v1039 = vpack.c.b16 %v901, %v900
      %v1040 = vpack.c.b16 %v903, %v902
      %v1041 = vpack.c.b16 %v905, %v904
      %v1042 = vpack.c.b16 %v907, %v906
      %v1043 = vpack.c.b16 %v909, %v908
      %v1044 = vpack.c.b16 %v911, %v910
      %v1045 = vpack.c.b16 %v913, %v912
      %v1046 = vpack.c.b16 %v915, %v914
      %v1047 = vpack.c.b16 %v917, %v916
      %v1048 = vpack.c.b16 %v919, %v918
      %v1049 = vpack.c.b16 %v921, %v920
      %v1056 = vunpack.c.l.b16 %v404
      %v1057 = vunpack.c.l.b16 %v405
      %v1058 = vunpack.c.l.b16 %v406
      %v1059 = vunpack.c.l.b16 %v407
      %v1060 = vunpack.c.l.b16 %v408
      %v1061 = vunpack.c.l.b16 %v409
      %v1062 = vpack.c.b16 %v1057, %v1056
      %v1063 = vpack.c.b16 %v1059, %v1058
      %v1064 = vpack.c.b16 %v1061, %v1060
      %vm1068 = vcmask 392192
      %v1070 = vsel %vm1068, %v922, 0
      %v1073 = vsel %vm1068, %v923, 0
      %v1076 = vsel %vm1068, %v924, 0
      %v1079 = vsel %vm1068, %v925, 0
      %v1082 = vsel %vm1068, %v926, 0
      %v1085 = vsel %vm1068, %v927, 0
      %v1088 = vsel %vm1068, %v928, 0
      %v1091 = vsel %vm1068, %v929, 0
      %v1094 = vsel %vm1068, %v930, 0
      %v1097 = vsel %vm1068, %v931, 0
      %v1100 = vsel %vm1068, %v932, 0
      %v1103 = vsel %vm1068, %v933, 0
      %v1106 = vsel %vm1068, %v934, 0
      %v1109 = vsel %vm1068, %v935, 0
      %v1112 = vsel %vm1068, %v936, 0
      %v1115 = vsel %vm1068, %v937, 0
      %v1118 = vsel %vm1068, %v938, 0
      %v1121 = vsel %vm1068, %v939, 0
      %v1124 = vsel %vm1068, %v940, 0
      %v1127 = vsel %vm1068, %v941, 0
      %v1130 = vsel %vm1068, %v942, 0
      %v1133 = vsel %vm1068, %v943, 0
      %v1136 = vsel %vm1068, %v944, 0
      %v1139 = vsel %vm1068, %v945, 0
      %v1142 = vsel %vm1068, %v946, 0
      %v1145 = vsel %vm1068, %v947, 0
      %v1148 = vsel %vm1068, %v948, 0
      %v1151 = vsel %vm1068, %v949, 0
      %v1154 = vsel %vm1068, %v950, 0
      %v1157 = vsel %vm1068, %v951, 0
      %v1160 = vsel %vm1068, %v952, 0
      %v1163 = vsel %vm1068, %v953, 0
      %v1166 = vsel %vm1068, %v954, 0
      %v1169 = vsel %vm1068, %v955, 0
      %v1172 = vsel %vm1068, %v956, 0
      %v1175 = vsel %vm1068, %v957, 0
      %v1178 = vsel %vm1068, %v958, 0
      %v1181 = vsel %vm1068, %v959, 0
      %v1184 = vsel %vm1068, %v960, 0
      %v1187 = vsel %vm1068, %v961, 0
      %v1190 = vsel %vm1068, %v962, 0
      %v1193 = vsel %vm1068, %v963, 0
      %v1196 = vsel %vm1068, %v964, 0
      %v1199 = vsel %vm1068, %v965, 0
      %v1202 = vsel %vm1068, %v966, 0
      %v1205 = vsel %vm1068, %v967, 0
      %v1208 = vsel %vm1068, %v968, 0
      %v1211 = vsel %vm1068, %v969, 0
      %v1214 = vsel %vm1068, %v970, 0
      %v1217 = vsel %vm1068, %v971, 0
      %v1220 = vsel %vm1068, %v972, 0
      %v1223 = vsel %vm1068, %v973, 0
      %v1226 = vsel %vm1068, %v974, 0
      %v1229 = vsel %vm1068, %v975, 0
      %v1232 = vsel %vm1068, %v976, 0
      %v1235 = vsel %vm1068, %v977, 0
      %v1238 = vsel %vm1068, %v978, 0
      %v1241 = vsel %vm1068, %v979, 0
      %v1244 = vsel %vm1068, %v980, 0
      %v1247 = vsel %vm1068, %v981, 0
      %v1250 = vsel %vm1068, %v982, 0
      %v1253 = vsel %vm1068, %v983, 0
      %v1256 = vsel %vm1068, %v984, 0
      %v1259 = vsel %vm1068, %v985, 0
      %v1262 = vsel %vm1068, %v986, 0
      %v1265 = vsel %vm1068, %v987, 0
      %v1268 = vsel %vm1068, %v988, 0
      %v1271 = vsel %vm1068, %v989, 0
      %v1274 = vsel %vm1068, %v990, 0
      %v1277 = vsel %vm1068, %v991, 0
      %v1280 = vsel %vm1068, %v992, 0
      %v1283 = vsel %vm1068, %v993, 0
      %v1286 = vsel %vm1068, %v994, 0
      %v1289 = vsel %vm1068, %v995, 0
      %v1292 = vsel %vm1068, %v996, 0
      %v1295 = vsel %vm1068, %v997, 0
      %v1298 = vsel %vm1068, %v998, 0
      %v1301 = vsel %vm1068, %v999, 0
      %v1304 = vsel %vm1068, %v1000, 0
      %v1307 = vsel %vm1068, %v1001, 0
      %v1310 = vsel %vm1068, %v1002, 0
      %v1313 = vsel %vm1068, %v1003, 0
      %v1316 = vsel %vm1068, %v1004, 0
      %v1319 = vsel %vm1068, %v1005, 0
      %v1322 = vsel %vm1068, %v1006, 0
      %v1325 = vsel %vm1068, %v1007, 0
      %v1328 = vsel %vm1068, %v1008, 0
      %v1331 = vsel %vm1068, %v1009, 0
      %v1334 = vsel %vm1068, %v1010, 0
      %v1337 = vsel %vm1068, %v1011, 0
      %v1340 = vsel %vm1068, %v1012, 0
      %v1343 = vsel %vm1068, %v1013, 0
      %v1346 = vsel %vm1068, %v1014, 0
      %v1349 = vsel %vm1068, %v1015, 0
      %v1352 = vsel %vm1068, %v1016, 0
      %v1355 = vsel %vm1068, %v1017, 0
      %v1358 = vsel %vm1068, %v1018, 0
      %v1361 = vsel %vm1068, %v1019, 0
      %v1364 = vsel %vm1068, %v1020, 0
      %v1367 = vsel %vm1068, %v1021, 0
      %v1370 = vsel %vm1068, %v1022, 0
      %v1373 = vsel %vm1068, %v1023, 0
      %v1376 = vsel %vm1068, %v1024, 0
      %v1379 = vsel %vm1068, %v1025, 0
      %v1382 = vsel %vm1068, %v1026, 0
      %v1385 = vsel %vm1068, %v1027, 0
      %v1388 = vsel %vm1068, %v1028, 0
      %v1391 = vsel %vm1068, %v1029, 0
      %v1394 = vsel %vm1068, %v1030, 0
      %v1397 = vsel %vm1068, %v1031, 0
      %v1400 = vsel %vm1068, %v1032, 0
      %v1403 = vsel %vm1068, %v1033, 0
      %v1406 = vsel %vm1068, %v1034, 0
      %v1409 = vsel %vm1068, %v1035, 0
      %v1412 = vsel %vm1068, %v1036, 0
      %v1415 = vsel %vm1068, %v1037, 0
      %v1418 = vsel %vm1068, %v1038, 0
      %v1421 = vsel %vm1068, %v1039, 0
      %v1424 = vsel %vm1068, %v1040, 0
      %v1427 = vsel %vm1068, %v1041, 0
      %v1430 = vsel %vm1068, %v1042, 0
      %v1433 = vsel %vm1068, %v1043, 0
      %v1436 = vsel %vm1068, %v1044, 0
      %v1439 = vsel %vm1068, %v1045, 0
      %v1442 = vsel %vm1068, %v1046, 0
      %v1445 = vsel %vm1068, %v1047, 0
      %v1448 = vsel %vm1068, %v1048, 0
      %v1451 = vsel %vm1068, %v1049, 0
      %1453 = vmatpush.bf16.msra.mxu0 0
      %1454 = vmatpush.bf16.msra.mxu0 0
      %1455 = vmatpush.bf16.msra.mxu0 0
      %1456 = vmatpush.bf16.msra.mxu0 0
      %1457 = vmatpush.bf16.msra.mxu0 0
      %1458 = vmatpush.bf16.msra.mxu0 %v1064
      %1459 = vmatpush.bf16.msra.mxu0 %v1063
      %1460 = vmatpush.bf16.msra.mxu0 %v1062
      %1461 = vmatmul.bf16.gmra.mxu0 %v1070
      %v1462 = vpop.f32.mrf.mxu0
      %v1463 = vadd.f32 0.0, %v1462
      %v1464 = vpop.f32.mrf.mxu0
      %v1465 = vadd.f32 0.0, %v1464
      %1466 = vmatmul.bf16.gmra.mxu0 %v1073
      %v1467 = vpop.f32.mrf.mxu0
      %v1468 = vadd.f32 0.0, %v1467
      %v1469 = vpop.f32.mrf.mxu0
      %v1470 = vadd.f32 0.0, %v1469
      %1471 = vmatmul.bf16.gmra.mxu0 %v1076
      %v1472 = vpop.f32.mrf.mxu0
      %v1473 = vadd.f32 0.0, %v1472
      %v1474 = vpop.f32.mrf.mxu0
      %v1475 = vadd.f32 0.0, %v1474
      %1476 = vmatmul.bf16.gmra.mxu0 %v1079
      %v1477 = vpop.f32.mrf.mxu0
      %v1478 = vadd.f32 0.0, %v1477
      %v1479 = vpop.f32.mrf.mxu0
      %v1480 = vadd.f32 0.0, %v1479
      %1481 = vmatmul.bf16.gmra.mxu0 %v1082
      %v1482 = vpop.f32.mrf.mxu0
      %v1483 = vadd.f32 0.0, %v1482
      %v1484 = vpop.f32.mrf.mxu0
      %v1485 = vadd.f32 0.0, %v1484
      %1486 = vmatmul.bf16.gmra.mxu0 %v1085
      %v1487 = vpop.f32.mrf.mxu0
      %v1488 = vadd.f32 0.0, %v1487
      %v1489 = vpop.f32.mrf.mxu0
      %v1490 = vadd.f32 0.0, %v1489
      %1491 = vmatmul.bf16.gmra.mxu0 %v1088
      %v1492 = vpop.f32.mrf.mxu0
      %v1493 = vadd.f32 0.0, %v1492
      %v1494 = vpop.f32.mrf.mxu0
      %v1495 = vadd.f32 0.0, %v1494
      %1496 = vmatmul.bf16.gmra.mxu0 %v1091
      %v1497 = vpop.f32.mrf.mxu0
      %v1498 = vadd.f32 0.0, %v1497
      %v1499 = vpop.f32.mrf.mxu0
      %v1500 = vadd.f32 0.0, %v1499
      %1501 = vmatmul.bf16.gmra.mxu0 %v1094
      %v1502 = vpop.f32.mrf.mxu0
      %v1503 = vadd.f32 0.0, %v1502
      %v1504 = vpop.f32.mrf.mxu0
      %v1505 = vadd.f32 0.0, %v1504
      %1506 = vmatmul.bf16.gmra.mxu0 %v1097
      %v1507 = vpop.f32.mrf.mxu0
      %v1508 = vadd.f32 0.0, %v1507
      %v1509 = vpop.f32.mrf.mxu0
      %v1510 = vadd.f32 0.0, %v1509
      %1511 = vmatmul.bf16.gmra.mxu0 %v1100
      %v1512 = vpop.f32.mrf.mxu0
      %v1513 = vadd.f32 0.0, %v1512
      %v1514 = vpop.f32.mrf.mxu0
      %v1515 = vadd.f32 0.0, %v1514
      %1516 = vmatmul.bf16.gmra.mxu0 %v1103
      %v1517 = vpop.f32.mrf.mxu0
      %v1518 = vadd.f32 0.0, %v1517
      %v1519 = vpop.f32.mrf.mxu0
      %v1520 = vadd.f32 0.0, %v1519
      %1521 = vmatmul.bf16.gmra.mxu0 %v1106
      %v1522 = vpop.f32.mrf.mxu0
      %v1523 = vadd.f32 0.0, %v1522
      %v1524 = vpop.f32.mrf.mxu0
      %v1525 = vadd.f32 0.0, %v1524
      %1526 = vmatmul.bf16.gmra.mxu0 %v1109
      %v1527 = vpop.f32.mrf.mxu0
      %v1528 = vadd.f32 0.0, %v1527
      %v1529 = vpop.f32.mrf.mxu0
      %v1530 = vadd.f32 0.0, %v1529
      %1531 = vmatmul.bf16.gmra.mxu0 %v1112
      %v1532 = vpop.f32.mrf.mxu0
      %v1533 = vadd.f32 0.0, %v1532
      %v1534 = vpop.f32.mrf.mxu0
      %v1535 = vadd.f32 0.0, %v1534
      %1536 = vmatmul.bf16.gmra.mxu0 %v1115
      %v1537 = vpop.f32.mrf.mxu0
      %v1538 = vadd.f32 0.0, %v1537
      %v1539 = vpop.f32.mrf.mxu0
      %v1540 = vadd.f32 0.0, %v1539
      %1541 = vmatmul.bf16.gmra.mxu0 %v1118
      %v1542 = vpop.f32.mrf.mxu0
      %v1543 = vadd.f32 0.0, %v1542
      %v1544 = vpop.f32.mrf.mxu0
      %v1545 = vadd.f32 0.0, %v1544
      %1546 = vmatmul.bf16.gmra.mxu0 %v1121
      %v1547 = vpop.f32.mrf.mxu0
      %v1548 = vadd.f32 0.0, %v1547
      %v1549 = vpop.f32.mrf.mxu0
      %v1550 = vadd.f32 0.0, %v1549
      %1551 = vmatmul.bf16.gmra.mxu0 %v1124
      %v1552 = vpop.f32.mrf.mxu0
      %v1553 = vadd.f32 0.0, %v1552
      %v1554 = vpop.f32.mrf.mxu0
      %v1555 = vadd.f32 0.0, %v1554
      %1556 = vmatmul.bf16.gmra.mxu0 %v1127
      %v1557 = vpop.f32.mrf.mxu0
      %v1558 = vadd.f32 0.0, %v1557
      %v1559 = vpop.f32.mrf.mxu0
      %v1560 = vadd.f32 0.0, %v1559
      %1561 = vmatmul.bf16.gmra.mxu0 %v1130
      %v1562 = vpop.f32.mrf.mxu0
      %v1563 = vadd.f32 0.0, %v1562
      %v1564 = vpop.f32.mrf.mxu0
      %v1565 = vadd.f32 0.0, %v1564
      %1566 = vmatmul.bf16.gmra.mxu0 %v1133
      %v1567 = vpop.f32.mrf.mxu0
      %v1568 = vadd.f32 0.0, %v1567
      %v1569 = vpop.f32.mrf.mxu0
      %v1570 = vadd.f32 0.0, %v1569
      %1571 = vmatmul.bf16.gmra.mxu0 %v1136
      %v1572 = vpop.f32.mrf.mxu0
      %v1573 = vadd.f32 0.0, %v1572
      %v1574 = vpop.f32.mrf.mxu0
      %v1575 = vadd.f32 0.0, %v1574
      %1576 = vmatmul.bf16.gmra.mxu0 %v1139
      %v1577 = vpop.f32.mrf.mxu0
      %v1578 = vadd.f32 0.0, %v1577
      %v1579 = vpop.f32.mrf.mxu0
      %v1580 = vadd.f32 0.0, %v1579
      %1581 = vmatmul.bf16.gmra.mxu0 %v1142
      %v1582 = vpop.f32.mrf.mxu0
      %v1583 = vadd.f32 0.0, %v1582
      %v1584 = vpop.f32.mrf.mxu0
      %v1585 = vadd.f32 0.0, %v1584
      %1586 = vmatmul.bf16.gmra.mxu0 %v1145
      %v1587 = vpop.f32.mrf.mxu0
      %v1588 = vadd.f32 0.0, %v1587
      %v1589 = vpop.f32.mrf.mxu0
      %v1590 = vadd.f32 0.0, %v1589
      %1591 = vmatmul.bf16.gmra.mxu0 %v1148
      %v1592 = vpop.f32.mrf.mxu0
      %v1593 = vadd.f32 0.0, %v1592
      %v1594 = vpop.f32.mrf.mxu0
      %v1595 = vadd.f32 0.0, %v1594
      %1596 = vmatmul.bf16.gmra.mxu0 %v1151
      %v1597 = vpop.f32.mrf.mxu0
      %v1598 = vadd.f32 0.0, %v1597
      %v1599 = vpop.f32.mrf.mxu0
      %v1600 = vadd.f32 0.0, %v1599
      %1601 = vmatmul.bf16.gmra.mxu0 %v1154
      %v1602 = vpop.f32.mrf.mxu0
      %v1603 = vadd.f32 0.0, %v1602
      %v1604 = vpop.f32.mrf.mxu0
      %v1605 = vadd.f32 0.0, %v1604
      %1606 = vmatmul.bf16.gmra.mxu0 %v1157
      %v1607 = vpop.f32.mrf.mxu0
      %v1608 = vadd.f32 0.0, %v1607
      %v1609 = vpop.f32.mrf.mxu0
      %v1610 = vadd.f32 0.0, %v1609
      %1611 = vmatmul.bf16.gmra.mxu0 %v1160
      %v1612 = vpop.f32.mrf.mxu0
      %v1613 = vadd.f32 0.0, %v1612
      %v1614 = vpop.f32.mrf.mxu0
      %v1615 = vadd.f32 0.0, %v1614
      %1616 = vmatmul.bf16.gmra.mxu0 %v1163
      %v1617 = vpop.f32.mrf.mxu0
      %v1618 = vadd.f32 0.0, %v1617
      %v1619 = vpop.f32.mrf.mxu0
      %v1620 = vadd.f32 0.0, %v1619
      %1621 = vmatmul.bf16.gmra.mxu0 %v1166
      %v1622 = vpop.f32.mrf.mxu0
      %v1623 = vadd.f32 0.0, %v1622
      %v1624 = vpop.f32.mrf.mxu0
      %v1625 = vadd.f32 0.0, %v1624
      %1626 = vmatmul.bf16.gmra.mxu0 %v1169
      %v1627 = vpop.f32.mrf.mxu0
      %v1628 = vadd.f32 0.0, %v1627
      %v1629 = vpop.f32.mrf.mxu0
      %v1630 = vadd.f32 0.0, %v1629
      %1631 = vmatmul.bf16.gmra.mxu0 %v1172
      %v1632 = vpop.f32.mrf.mxu0
      %v1633 = vadd.f32 0.0, %v1632
      %v1634 = vpop.f32.mrf.mxu0
      %v1635 = vadd.f32 0.0, %v1634
      %1636 = vmatmul.bf16.gmra.mxu0 %v1175
      %v1637 = vpop.f32.mrf.mxu0
      %v1638 = vadd.f32 0.0, %v1637
      %v1639 = vpop.f32.mrf.mxu0
      %v1640 = vadd.f32 0.0, %v1639
      %1641 = vmatmul.bf16.gmra.mxu0 %v1178
      %v1642 = vpop.f32.mrf.mxu0
      %v1643 = vadd.f32 0.0, %v1642
      %v1644 = vpop.f32.mrf.mxu0
      %v1645 = vadd.f32 0.0, %v1644
      %1646 = vmatmul.bf16.gmra.mxu0 %v1181
      %v1647 = vpop.f32.mrf.mxu0
      %v1648 = vadd.f32 0.0, %v1647
      %v1649 = vpop.f32.mrf.mxu0
      %v1650 = vadd.f32 0.0, %v1649
      %1651 = vmatmul.bf16.gmra.mxu0 %v1184
      %v1652 = vpop.f32.mrf.mxu0
      %v1653 = vadd.f32 0.0, %v1652
      %v1654 = vpop.f32.mrf.mxu0
      %v1655 = vadd.f32 0.0, %v1654
      %1656 = vmatmul.bf16.gmra.mxu0 %v1187
      %v1657 = vpop.f32.mrf.mxu0
      %v1658 = vadd.f32 0.0, %v1657
      %v1659 = vpop.f32.mrf.mxu0
      %v1660 = vadd.f32 0.0, %v1659
      %1661 = vmatmul.bf16.gmra.mxu0 %v1190
      %v1662 = vpop.f32.mrf.mxu0
      %v1663 = vadd.f32 0.0, %v1662
      %v1664 = vpop.f32.mrf.mxu0
      %v1665 = vadd.f32 0.0, %v1664
      %1666 = vmatmul.bf16.gmra.mxu0 %v1193
      %v1667 = vpop.f32.mrf.mxu0
      %v1668 = vadd.f32 0.0, %v1667
      %v1669 = vpop.f32.mrf.mxu0
      %v1670 = vadd.f32 0.0, %v1669
      %1671 = vmatmul.bf16.gmra.mxu0 %v1196
      %v1672 = vpop.f32.mrf.mxu0
      %v1673 = vadd.f32 0.0, %v1672
      %v1674 = vpop.f32.mrf.mxu0
      %v1675 = vadd.f32 0.0, %v1674
      %1676 = vmatmul.bf16.gmra.mxu0 %v1199
      %v1677 = vpop.f32.mrf.mxu0
      %v1678 = vadd.f32 0.0, %v1677
      %v1679 = vpop.f32.mrf.mxu0
      %v1680 = vadd.f32 0.0, %v1679
      %1681 = vmatmul.bf16.gmra.mxu0 %v1202
      %v1682 = vpop.f32.mrf.mxu0
      %v1683 = vadd.f32 0.0, %v1682
      %v1684 = vpop.f32.mrf.mxu0
      %v1685 = vadd.f32 0.0, %v1684
      %1686 = vmatmul.bf16.gmra.mxu0 %v1205
      %v1687 = vpop.f32.mrf.mxu0
      %v1688 = vadd.f32 0.0, %v1687
      %v1689 = vpop.f32.mrf.mxu0
      %v1690 = vadd.f32 0.0, %v1689
      %1691 = vmatmul.bf16.gmra.mxu0 %v1208
      %v1692 = vpop.f32.mrf.mxu0
      %v1693 = vadd.f32 0.0, %v1692
      %v1694 = vpop.f32.mrf.mxu0
      %v1695 = vadd.f32 0.0, %v1694
      %1696 = vmatmul.bf16.gmra.mxu0 %v1211
      %v1697 = vpop.f32.mrf.mxu0
      %v1698 = vadd.f32 0.0, %v1697
      %v1699 = vpop.f32.mrf.mxu0
      %v1700 = vadd.f32 0.0, %v1699
      %1701 = vmatmul.bf16.gmra.mxu0 %v1214
      %v1702 = vpop.f32.mrf.mxu0
      %v1703 = vadd.f32 0.0, %v1702
      %v1704 = vpop.f32.mrf.mxu0
      %v1705 = vadd.f32 0.0, %v1704
      %1706 = vmatmul.bf16.gmra.mxu0 %v1217
      %v1707 = vpop.f32.mrf.mxu0
      %v1708 = vadd.f32 0.0, %v1707
      %v1709 = vpop.f32.mrf.mxu0
      %v1710 = vadd.f32 0.0, %v1709
      %1711 = vmatmul.bf16.gmra.mxu0 %v1220
      %v1712 = vpop.f32.mrf.mxu0
      %v1713 = vadd.f32 0.0, %v1712
      %v1714 = vpop.f32.mrf.mxu0
      %v1715 = vadd.f32 0.0, %v1714
      %1716 = vmatmul.bf16.gmra.mxu0 %v1223
      %v1717 = vpop.f32.mrf.mxu0
      %v1718 = vadd.f32 0.0, %v1717
      %v1719 = vpop.f32.mrf.mxu0
      %v1720 = vadd.f32 0.0, %v1719
      %1721 = vmatmul.bf16.gmra.mxu0 %v1226
      %v1722 = vpop.f32.mrf.mxu0
      %v1723 = vadd.f32 0.0, %v1722
      %v1724 = vpop.f32.mrf.mxu0
      %v1725 = vadd.f32 0.0, %v1724
      %1726 = vmatmul.bf16.gmra.mxu0 %v1229
      %v1727 = vpop.f32.mrf.mxu0
      %v1728 = vadd.f32 0.0, %v1727
      %v1729 = vpop.f32.mrf.mxu0
      %v1730 = vadd.f32 0.0, %v1729
      %1731 = vmatmul.bf16.gmra.mxu0 %v1232
      %v1732 = vpop.f32.mrf.mxu0
      %v1733 = vadd.f32 0.0, %v1732
      %v1734 = vpop.f32.mrf.mxu0
      %v1735 = vadd.f32 0.0, %v1734
      %1736 = vmatmul.bf16.gmra.mxu0 %v1235
      %v1737 = vpop.f32.mrf.mxu0
      %v1738 = vadd.f32 0.0, %v1737
      %v1739 = vpop.f32.mrf.mxu0
      %v1740 = vadd.f32 0.0, %v1739
      %1741 = vmatmul.bf16.gmra.mxu0 %v1238
      %v1742 = vpop.f32.mrf.mxu0
      %v1743 = vadd.f32 0.0, %v1742
      %v1744 = vpop.f32.mrf.mxu0
      %v1745 = vadd.f32 0.0, %v1744
      %1746 = vmatmul.bf16.gmra.mxu0 %v1241
      %v1747 = vpop.f32.mrf.mxu0
      %v1748 = vadd.f32 0.0, %v1747
      %v1749 = vpop.f32.mrf.mxu0
      %v1750 = vadd.f32 0.0, %v1749
      %1751 = vmatmul.bf16.gmra.mxu0 %v1244
      %v1752 = vpop.f32.mrf.mxu0
      %v1753 = vadd.f32 0.0, %v1752
      %v1754 = vpop.f32.mrf.mxu0
      %v1755 = vadd.f32 0.0, %v1754
      %1756 = vmatmul.bf16.gmra.mxu0 %v1247
      %v1757 = vpop.f32.mrf.mxu0
      %v1758 = vadd.f32 0.0, %v1757
      %v1759 = vpop.f32.mrf.mxu0
      %v1760 = vadd.f32 0.0, %v1759
      %1761 = vmatmul.bf16.gmra.mxu0 %v1250
      %v1762 = vpop.f32.mrf.mxu0
      %v1763 = vadd.f32 0.0, %v1762
      %v1764 = vpop.f32.mrf.mxu0
      %v1765 = vadd.f32 0.0, %v1764
      %1766 = vmatmul.bf16.gmra.mxu0 %v1253
      %v1767 = vpop.f32.mrf.mxu0
      %v1768 = vadd.f32 0.0, %v1767
      %v1769 = vpop.f32.mrf.mxu0
      %v1770 = vadd.f32 0.0, %v1769
      %1771 = vmatmul.bf16.gmra.mxu0 %v1256
      %v1772 = vpop.f32.mrf.mxu0
      %v1773 = vadd.f32 0.0, %v1772
      %v1774 = vpop.f32.mrf.mxu0
      %v1775 = vadd.f32 0.0, %v1774
      %1776 = vmatmul.bf16.gmra.mxu0 %v1259
      %v1777 = vpop.f32.mrf.mxu0
      %v1778 = vadd.f32 0.0, %v1777
      %v1779 = vpop.f32.mrf.mxu0
      %v1780 = vadd.f32 0.0, %v1779
      %1781 = vmatmul.bf16.gmra.mxu0 %v1262
      %v1782 = vpop.f32.mrf.mxu0
      %v1783 = vadd.f32 0.0, %v1782
      %v1784 = vpop.f32.mrf.mxu0
      %v1785 = vadd.f32 0.0, %v1784
      %1786 = vmatmul.bf16.gmra.mxu0 %v1265
      %v1787 = vpop.f32.mrf.mxu0
      %v1788 = vadd.f32 0.0, %v1787
      %v1789 = vpop.f32.mrf.mxu0
      %v1790 = vadd.f32 0.0, %v1789
      %1791 = vmatmul.bf16.gmra.mxu0 %v1268
      %v1792 = vpop.f32.mrf.mxu0
      %v1793 = vadd.f32 0.0, %v1792
      %v1794 = vpop.f32.mrf.mxu0
      %v1795 = vadd.f32 0.0, %v1794
      %1796 = vmatmul.bf16.gmra.mxu0 %v1271
      %v1797 = vpop.f32.mrf.mxu0
      %v1798 = vadd.f32 0.0, %v1797
      %v1799 = vpop.f32.mrf.mxu0
      %v1800 = vadd.f32 0.0, %v1799
      %1801 = vmatmul.bf16.gmra.mxu0 %v1274
      %v1802 = vpop.f32.mrf.mxu0
      %v1803 = vadd.f32 0.0, %v1802
      %v1804 = vpop.f32.mrf.mxu0
      %v1805 = vadd.f32 0.0, %v1804
      %1806 = vmatmul.bf16.gmra.mxu0 %v1277
      %v1807 = vpop.f32.mrf.mxu0
      %v1808 = vadd.f32 0.0, %v1807
      %v1809 = vpop.f32.mrf.mxu0
      %v1810 = vadd.f32 0.0, %v1809
      %1811 = vmatmul.bf16.gmra.mxu0 %v1280
      %v1812 = vpop.f32.mrf.mxu0
      %v1813 = vadd.f32 0.0, %v1812
      %v1814 = vpop.f32.mrf.mxu0
      %v1815 = vadd.f32 0.0, %v1814
      %1816 = vmatmul.bf16.gmra.mxu0 %v1283
      %v1817 = vpop.f32.mrf.mxu0
      %v1818 = vadd.f32 0.0, %v1817
      %v1819 = vpop.f32.mrf.mxu0
      %v1820 = vadd.f32 0.0, %v1819
      %1821 = vmatmul.bf16.gmra.mxu0 %v1286
      %v1822 = vpop.f32.mrf.mxu0
      %v1823 = vadd.f32 0.0, %v1822
      %v1824 = vpop.f32.mrf.mxu0
      %v1825 = vadd.f32 0.0, %v1824
      %1826 = vmatmul.bf16.gmra.mxu0 %v1289
      %v1827 = vpop.f32.mrf.mxu0
      %v1828 = vadd.f32 0.0, %v1827
      %v1829 = vpop.f32.mrf.mxu0
      %v1830 = vadd.f32 0.0, %v1829
      %1831 = vmatmul.bf16.gmra.mxu0 %v1292
      %v1832 = vpop.f32.mrf.mxu0
      %v1833 = vadd.f32 0.0, %v1832
      %v1834 = vpop.f32.mrf.mxu0
      %v1835 = vadd.f32 0.0, %v1834
      %1836 = vmatmul.bf16.gmra.mxu0 %v1295
      %v1837 = vpop.f32.mrf.mxu0
      %v1838 = vadd.f32 0.0, %v1837
      %v1839 = vpop.f32.mrf.mxu0
      %v1840 = vadd.f32 0.0, %v1839
      %1841 = vmatmul.bf16.gmra.mxu0 %v1298
      %v1842 = vpop.f32.mrf.mxu0
      %v1843 = vadd.f32 0.0, %v1842
      %v1844 = vpop.f32.mrf.mxu0
      %v1845 = vadd.f32 0.0, %v1844
      %1846 = vmatmul.bf16.gmra.mxu0 %v1301
      %v1847 = vpop.f32.mrf.mxu0
      %v1848 = vadd.f32 0.0, %v1847
      %v1849 = vpop.f32.mrf.mxu0
      %v1850 = vadd.f32 0.0, %v1849
      %1851 = vmatmul.bf16.gmra.mxu0 %v1304
      %v1852 = vpop.f32.mrf.mxu0
      %v1853 = vadd.f32 0.0, %v1852
      %v1854 = vpop.f32.mrf.mxu0
      %v1855 = vadd.f32 0.0, %v1854
      %1856 = vmatmul.bf16.gmra.mxu0 %v1307
      %v1857 = vpop.f32.mrf.mxu0
      %v1858 = vadd.f32 0.0, %v1857
      %v1859 = vpop.f32.mrf.mxu0
      %v1860 = vadd.f32 0.0, %v1859
      %1861 = vmatmul.bf16.gmra.mxu0 %v1310
      %v1862 = vpop.f32.mrf.mxu0
      %v1863 = vadd.f32 0.0, %v1862
      %v1864 = vpop.f32.mrf.mxu0
      %v1865 = vadd.f32 0.0, %v1864
      %1866 = vmatmul.bf16.gmra.mxu0 %v1313
      %v1867 = vpop.f32.mrf.mxu0
      %v1868 = vadd.f32 0.0, %v1867
      %v1869 = vpop.f32.mrf.mxu0
      %v1870 = vadd.f32 0.0, %v1869
      %1871 = vmatmul.bf16.gmra.mxu0 %v1316
      %v1872 = vpop.f32.mrf.mxu0
      %v1873 = vadd.f32 0.0, %v1872
      %v1874 = vpop.f32.mrf.mxu0
      %v1875 = vadd.f32 0.0, %v1874
      %1876 = vmatmul.bf16.gmra.mxu0 %v1319
      %v1877 = vpop.f32.mrf.mxu0
      %v1878 = vadd.f32 0.0, %v1877
      %v1879 = vpop.f32.mrf.mxu0
      %v1880 = vadd.f32 0.0, %v1879
      %1881 = vmatmul.bf16.gmra.mxu0 %v1322
      %v1882 = vpop.f32.mrf.mxu0
      %v1883 = vadd.f32 0.0, %v1882
      %v1884 = vpop.f32.mrf.mxu0
      %v1885 = vadd.f32 0.0, %v1884
      %1886 = vmatmul.bf16.gmra.mxu0 %v1325
      %v1887 = vpop.f32.mrf.mxu0
      %v1888 = vadd.f32 0.0, %v1887
      %v1889 = vpop.f32.mrf.mxu0
      %v1890 = vadd.f32 0.0, %v1889
      %1891 = vmatmul.bf16.gmra.mxu0 %v1328
      %v1892 = vpop.f32.mrf.mxu0
      %v1893 = vadd.f32 0.0, %v1892
      %v1894 = vpop.f32.mrf.mxu0
      %v1895 = vadd.f32 0.0, %v1894
      %1896 = vmatmul.bf16.gmra.mxu0 %v1331
      %v1897 = vpop.f32.mrf.mxu0
      %v1898 = vadd.f32 0.0, %v1897
      %v1899 = vpop.f32.mrf.mxu0
      %v1900 = vadd.f32 0.0, %v1899
      %1901 = vmatmul.bf16.gmra.mxu0 %v1334
      %v1902 = vpop.f32.mrf.mxu0
      %v1903 = vadd.f32 0.0, %v1902
      %v1904 = vpop.f32.mrf.mxu0
      %v1905 = vadd.f32 0.0, %v1904
      %1906 = vmatmul.bf16.gmra.mxu0 %v1337
      %v1907 = vpop.f32.mrf.mxu0
      %v1908 = vadd.f32 0.0, %v1907
      %v1909 = vpop.f32.mrf.mxu0
      %v1910 = vadd.f32 0.0, %v1909
      %1911 = vmatmul.bf16.gmra.mxu0 %v1340
      %v1912 = vpop.f32.mrf.mxu0
      %v1913 = vadd.f32 0.0, %v1912
      %v1914 = vpop.f32.mrf.mxu0
      %v1915 = vadd.f32 0.0, %v1914
      %1916 = vmatmul.bf16.gmra.mxu0 %v1343
      %v1917 = vpop.f32.mrf.mxu0
      %v1918 = vadd.f32 0.0, %v1917
      %v1919 = vpop.f32.mrf.mxu0
      %v1920 = vadd.f32 0.0, %v1919
      %1921 = vmatmul.bf16.gmra.mxu0 %v1346
      %v1922 = vpop.f32.mrf.mxu0
      %v1923 = vadd.f32 0.0, %v1922
      %v1924 = vpop.f32.mrf.mxu0
      %v1925 = vadd.f32 0.0, %v1924
      %1926 = vmatmul.bf16.gmra.mxu0 %v1349
      %v1927 = vpop.f32.mrf.mxu0
      %v1928 = vadd.f32 0.0, %v1927
      %v1929 = vpop.f32.mrf.mxu0
      %v1930 = vadd.f32 0.0, %v1929
      %1931 = vmatmul.bf16.gmra.mxu0 %v1352
      %v1932 = vpop.f32.mrf.mxu0
      %v1933 = vadd.f32 0.0, %v1932
      %v1934 = vpop.f32.mrf.mxu0
      %v1935 = vadd.f32 0.0, %v1934
      %1936 = vmatmul.bf16.gmra.mxu0 %v1355
      %v1937 = vpop.f32.mrf.mxu0
      %v1938 = vadd.f32 0.0, %v1937
      %v1939 = vpop.f32.mrf.mxu0
      %v1940 = vadd.f32 0.0, %v1939
      %1941 = vmatmul.bf16.gmra.mxu0 %v1358
      %v1942 = vpop.f32.mrf.mxu0
      %v1943 = vadd.f32 0.0, %v1942
      %v1944 = vpop.f32.mrf.mxu0
      %v1945 = vadd.f32 0.0, %v1944
      %1946 = vmatmul.bf16.gmra.mxu0 %v1361
      %v1947 = vpop.f32.mrf.mxu0
      %v1948 = vadd.f32 0.0, %v1947
      %v1949 = vpop.f32.mrf.mxu0
      %v1950 = vadd.f32 0.0, %v1949
      %1951 = vmatmul.bf16.gmra.mxu0 %v1364
      %v1952 = vpop.f32.mrf.mxu0
      %v1953 = vadd.f32 0.0, %v1952
      %v1954 = vpop.f32.mrf.mxu0
      %v1955 = vadd.f32 0.0, %v1954
      %1956 = vmatmul.bf16.gmra.mxu0 %v1367
      %v1957 = vpop.f32.mrf.mxu0
      %v1958 = vadd.f32 0.0, %v1957
      %v1959 = vpop.f32.mrf.mxu0
      %v1960 = vadd.f32 0.0, %v1959
      %1961 = vmatmul.bf16.gmra.mxu0 %v1370
      %v1962 = vpop.f32.mrf.mxu0
      %v1963 = vadd.f32 0.0, %v1962
      %v1964 = vpop.f32.mrf.mxu0
      %v1965 = vadd.f32 0.0, %v1964
      %1966 = vmatmul.bf16.gmra.mxu0 %v1373
      %v1967 = vpop.f32.mrf.mxu0
      %v1968 = vadd.f32 0.0, %v1967
      %v1969 = vpop.f32.mrf.mxu0
      %v1970 = vadd.f32 0.0, %v1969
      %1971 = vmatmul.bf16.gmra.mxu0 %v1376
      %v1972 = vpop.f32.mrf.mxu0
      %v1973 = vadd.f32 0.0, %v1972
      %v1974 = vpop.f32.mrf.mxu0
      %v1975 = vadd.f32 0.0, %v1974
      %1976 = vmatmul.bf16.gmra.mxu0 %v1379
      %v1977 = vpop.f32.mrf.mxu0
      %v1978 = vadd.f32 0.0, %v1977
      %v1979 = vpop.f32.mrf.mxu0
      %v1980 = vadd.f32 0.0, %v1979
      %1981 = vmatmul.bf16.gmra.mxu0 %v1382
      %v1982 = vpop.f32.mrf.mxu0
      %v1983 = vadd.f32 0.0, %v1982
      %v1984 = vpop.f32.mrf.mxu0
      %v1985 = vadd.f32 0.0, %v1984
      %1986 = vmatmul.bf16.gmra.mxu0 %v1385
      %v1987 = vpop.f32.mrf.mxu0
      %v1988 = vadd.f32 0.0, %v1987
      %v1989 = vpop.f32.mrf.mxu0
      %v1990 = vadd.f32 0.0, %v1989
      %1991 = vmatmul.bf16.gmra.mxu0 %v1388
      %v1992 = vpop.f32.mrf.mxu0
      %v1993 = vadd.f32 0.0, %v1992
      %v1994 = vpop.f32.mrf.mxu0
      %v1995 = vadd.f32 0.0, %v1994
      %1996 = vmatmul.bf16.gmra.mxu0 %v1391
      %v1997 = vpop.f32.mrf.mxu0
      %v1998 = vadd.f32 0.0, %v1997
      %v1999 = vpop.f32.mrf.mxu0
      %v2000 = vadd.f32 0.0, %v1999
      %2001 = vmatmul.bf16.gmra.mxu0 %v1394
      %v2002 = vpop.f32.mrf.mxu0
      %v2003 = vadd.f32 0.0, %v2002
      %v2004 = vpop.f32.mrf.mxu0
      %v2005 = vadd.f32 0.0, %v2004
      %2006 = vmatmul.bf16.gmra.mxu0 %v1397
      %v2007 = vpop.f32.mrf.mxu0
      %v2008 = vadd.f32 0.0, %v2007
      %v2009 = vpop.f32.mrf.mxu0
      %v2010 = vadd.f32 0.0, %v2009
      %2011 = vmatmul.bf16.gmra.mxu0 %v1400
      %v2012 = vpop.f32.mrf.mxu0
      %v2013 = vadd.f32 0.0, %v2012
      %v2014 = vpop.f32.mrf.mxu0
      %v2015 = vadd.f32 0.0, %v2014
      %2016 = vmatmul.bf16.gmra.mxu0 %v1403
      %v2017 = vpop.f32.mrf.mxu0
      %v2018 = vadd.f32 0.0, %v2017
      %v2019 = vpop.f32.mrf.mxu0
      %v2020 = vadd.f32 0.0, %v2019
      %2021 = vmatmul.bf16.gmra.mxu0 %v1406
      %v2022 = vpop.f32.mrf.mxu0
      %v2023 = vadd.f32 0.0, %v2022
      %v2024 = vpop.f32.mrf.mxu0
      %v2025 = vadd.f32 0.0, %v2024
      %2026 = vmatmul.bf16.gmra.mxu0 %v1409
      %v2027 = vpop.f32.mrf.mxu0
      %v2028 = vadd.f32 0.0, %v2027
      %v2029 = vpop.f32.mrf.mxu0
      %v2030 = vadd.f32 0.0, %v2029
      %2031 = vmatmul.bf16.gmra.mxu0 %v1412
      %v2032 = vpop.f32.mrf.mxu0
      %v2033 = vadd.f32 0.0, %v2032
      %v2034 = vpop.f32.mrf.mxu0
      %v2035 = vadd.f32 0.0, %v2034
      %2036 = vmatmul.bf16.gmra.mxu0 %v1415
      %v2037 = vpop.f32.mrf.mxu0
      %v2038 = vadd.f32 0.0, %v2037
      %v2039 = vpop.f32.mrf.mxu0
      %v2040 = vadd.f32 0.0, %v2039
      %2041 = vmatmul.bf16.gmra.mxu0 %v1418
      %v2042 = vpop.f32.mrf.mxu0
      %v2043 = vadd.f32 0.0, %v2042
      %v2044 = vpop.f32.mrf.mxu0
      %v2045 = vadd.f32 0.0, %v2044
      %2046 = vmatmul.bf16.gmra.mxu0 %v1421
      %v2047 = vpop.f32.mrf.mxu0
      %v2048 = vadd.f32 0.0, %v2047
      %v2049 = vpop.f32.mrf.mxu0
      %v2050 = vadd.f32 0.0, %v2049
      %2051 = vmatmul.bf16.gmra.mxu0 %v1424
      %v2052 = vpop.f32.mrf.mxu0
      %v2053 = vadd.f32 0.0, %v2052
      %v2054 = vpop.f32.mrf.mxu0
      %v2055 = vadd.f32 0.0, %v2054
      %2056 = vmatmul.bf16.gmra.mxu0 %v1427
      %v2057 = vpop.f32.mrf.mxu0
      %v2058 = vadd.f32 0.0, %v2057
      %v2059 = vpop.f32.mrf.mxu0
      %v2060 = vadd.f32 0.0, %v2059
      %2061 = vmatmul.bf16.gmra.mxu0 %v1430
      %v2062 = vpop.f32.mrf.mxu0
      %v2063 = vadd.f32 0.0, %v2062
      %v2064 = vpop.f32.mrf.mxu0
      %v2065 = vadd.f32 0.0, %v2064
      %2066 = vmatmul.bf16.gmra.mxu0 %v1433
      %v2067 = vpop.f32.mrf.mxu0
      %v2068 = vadd.f32 0.0, %v2067
      %v2069 = vpop.f32.mrf.mxu0
      %v2070 = vadd.f32 0.0, %v2069
      %2071 = vmatmul.bf16.gmra.mxu0 %v1436
      %v2072 = vpop.f32.mrf.mxu0
      %v2073 = vadd.f32 0.0, %v2072
      %v2074 = vpop.f32.mrf.mxu0
      %v2075 = vadd.f32 0.0, %v2074
      %2076 = vmatmul.bf16.gmra.mxu0 %v1439
      %v2077 = vpop.f32.mrf.mxu0
      %v2078 = vadd.f32 0.0, %v2077
      %v2079 = vpop.f32.mrf.mxu0
      %v2080 = vadd.f32 0.0, %v2079
      %2081 = vmatmul.bf16.gmra.mxu0 %v1442
      %v2082 = vpop.f32.mrf.mxu0
      %v2083 = vadd.f32 0.0, %v2082
      %v2084 = vpop.f32.mrf.mxu0
      %v2085 = vadd.f32 0.0, %v2084
      %2086 = vmatmul.bf16.gmra.mxu0 %v1445
      %v2087 = vpop.f32.mrf.mxu0
      %v2088 = vadd.f32 0.0, %v2087
      %v2089 = vpop.f32.mrf.mxu0
      %v2090 = vadd.f32 0.0, %v2089
      %2091 = vmatmul.bf16.gmra.mxu0 %v1448
      %v2092 = vpop.f32.mrf.mxu0
      %v2093 = vadd.f32 0.0, %v2092
      %v2094 = vpop.f32.mrf.mxu0
      %v2095 = vadd.f32 0.0, %v2094
      %2096 = vmatmul.bf16.gmra.mxu0 %v1451
      %v2097 = vpop.f32.mrf.mxu0
      %v2098 = vadd.f32 0.0, %v2097
      %v2099 = vpop.f32.mrf.mxu0
      %v2100 = vadd.f32 0.0, %v2099
      %2101 = vdwg.mxu0
      %vm2102 = vcmp.gt.f32.partialorder %v1463, 0.0
      %vm2103 = vcmp.gt.f32.partialorder %v1465, 0.0
      %vm2104 = vcmp.gt.f32.partialorder %v1468, 0.0
      %vm2105 = vcmp.gt.f32.partialorder %v1470, 0.0
      %vm2106 = vcmp.gt.f32.partialorder %v1473, 0.0
      %vm2107 = vcmp.gt.f32.partialorder %v1475, 0.0
      %vm2108 = vcmp.gt.f32.partialorder %v1478, 0.0
      %vm2109 = vcmp.gt.f32.partialorder %v1480, 0.0
      %vm2110 = vcmp.gt.f32.partialorder %v1483, 0.0
      %vm2111 = vcmp.gt.f32.partialorder %v1485, 0.0
      %vm2112 = vcmp.gt.f32.partialorder %v1488, 0.0
      %vm2113 = vcmp.gt.f32.partialorder %v1490, 0.0
      %vm2114 = vcmp.gt.f32.partialorder %v1493, 0.0
      %vm2115 = vcmp.gt.f32.partialorder %v1495, 0.0
      %vm2116 = vcmp.gt.f32.partialorder %v1498, 0.0
      %vm2117 = vcmp.gt.f32.partialorder %v1500, 0.0
      %vm2118 = vcmp.gt.f32.partialorder %v1503, 0.0
      %vm2119 = vcmp.gt.f32.partialorder %v1505, 0.0
      %vm2120 = vcmp.gt.f32.partialorder %v1508, 0.0
      %vm2121 = vcmp.gt.f32.partialorder %v1510, 0.0
      %vm2122 = vcmp.gt.f32.partialorder %v1513, 0.0
      %vm2123 = vcmp.gt.f32.partialorder %v1515, 0.0
      %vm2124 = vcmp.gt.f32.partialorder %v1518, 0.0
      %vm2125 = vcmp.gt.f32.partialorder %v1520, 0.0
      %vm2126 = vcmp.gt.f32.partialorder %v1523, 0.0
      %vm2127 = vcmp.gt.f32.partialorder %v1525, 0.0
      %vm2128 = vcmp.gt.f32.partialorder %v1528, 0.0
      %vm2129 = vcmp.gt.f32.partialorder %v1530, 0.0
      %vm2130 = vcmp.gt.f32.partialorder %v1533, 0.0
      %vm2131 = vcmp.gt.f32.partialorder %v1535, 0.0
      %vm2132 = vcmp.gt.f32.partialorder %v1538, 0.0
      %vm2133 = vcmp.gt.f32.partialorder %v1540, 0.0
      %vm2134 = vcmp.gt.f32.partialorder %v1543, 0.0
      %vm2135 = vcmp.gt.f32.partialorder %v1545, 0.0
      %vm2136 = vcmp.gt.f32.partialorder %v1548, 0.0
      %vm2137 = vcmp.gt.f32.partialorder %v1550, 0.0
      %vm2138 = vcmp.gt.f32.partialorder %v1553, 0.0
      %vm2139 = vcmp.gt.f32.partialorder %v1555, 0.0
      %vm2140 = vcmp.gt.f32.partialorder %v1558, 0.0
      %vm2141 = vcmp.gt.f32.partialorder %v1560, 0.0
      %vm2142 = vcmp.gt.f32.partialorder %v1563, 0.0
      %vm2143 = vcmp.gt.f32.partialorder %v1565, 0.0
      %vm2144 = vcmp.gt.f32.partialorder %v1568, 0.0
      %vm2145 = vcmp.gt.f32.partialorder %v1570, 0.0
      %vm2146 = vcmp.gt.f32.partialorder %v1573, 0.0
      %vm2147 = vcmp.gt.f32.partialorder %v1575, 0.0
      %vm2148 = vcmp.gt.f32.partialorder %v1578, 0.0
      %vm2149 = vcmp.gt.f32.partialorder %v1580, 0.0
      %vm2150 = vcmp.gt.f32.partialorder %v1583, 0.0
      %vm2151 = vcmp.gt.f32.partialorder %v1585, 0.0
      %vm2152 = vcmp.gt.f32.partialorder %v1588, 0.0
      %vm2153 = vcmp.gt.f32.partialorder %v1590, 0.0
      %vm2154 = vcmp.gt.f32.partialorder %v1593, 0.0
      %vm2155 = vcmp.gt.f32.partialorder %v1595, 0.0
      %vm2156 = vcmp.gt.f32.partialorder %v1598, 0.0
      %vm2157 = vcmp.gt.f32.partialorder %v1600, 0.0
      %vm2158 = vcmp.gt.f32.partialorder %v1603, 0.0
      %vm2159 = vcmp.gt.f32.partialorder %v1605, 0.0
      %vm2160 = vcmp.gt.f32.partialorder %v1608, 0.0
      %vm2161 = vcmp.gt.f32.partialorder %v1610, 0.0
      %vm2162 = vcmp.gt.f32.partialorder %v1613, 0.0
      %vm2163 = vcmp.gt.f32.partialorder %v1615, 0.0
      %vm2164 = vcmp.gt.f32.partialorder %v1618, 0.0
      %vm2165 = vcmp.gt.f32.partialorder %v1620, 0.0
      %vm2166 = vcmp.gt.f32.partialorder %v1623, 0.0
      %vm2167 = vcmp.gt.f32.partialorder %v1625, 0.0
      %vm2168 = vcmp.gt.f32.partialorder %v1628, 0.0
      %vm2169 = vcmp.gt.f32.partialorder %v1630, 0.0
      %vm2170 = vcmp.gt.f32.partialorder %v1633, 0.0
      %vm2171 = vcmp.gt.f32.partialorder %v1635, 0.0
      %vm2172 = vcmp.gt.f32.partialorder %v1638, 0.0
      %vm2173 = vcmp.gt.f32.partialorder %v1640, 0.0
      %vm2174 = vcmp.gt.f32.partialorder %v1643, 0.0
      %vm2175 = vcmp.gt.f32.partialorder %v1645, 0.0
      %vm2176 = vcmp.gt.f32.partialorder %v1648, 0.0
      %vm2177 = vcmp.gt.f32.partialorder %v1650, 0.0
      %vm2178 = vcmp.gt.f32.partialorder %v1653, 0.0
      %vm2179 = vcmp.gt.f32.partialorder %v1655, 0.0
      %vm2180 = vcmp.gt.f32.partialorder %v1658, 0.0
      %vm2181 = vcmp.gt.f32.partialorder %v1660, 0.0
      %vm2182 = vcmp.gt.f32.partialorder %v1663, 0.0
      %vm2183 = vcmp.gt.f32.partialorder %v1665, 0.0
      %vm2184 = vcmp.gt.f32.partialorder %v1668, 0.0
      %vm2185 = vcmp.gt.f32.partialorder %v1670, 0.0
      %vm2186 = vcmp.gt.f32.partialorder %v1673, 0.0
      %vm2187 = vcmp.gt.f32.partialorder %v1675, 0.0
      %vm2188 = vcmp.gt.f32.partialorder %v1678, 0.0
      %vm2189 = vcmp.gt.f32.partialorder %v1680, 0.0
      %vm2190 = vcmp.gt.f32.partialorder %v1683, 0.0
      %vm2191 = vcmp.gt.f32.partialorder %v1685, 0.0
      %vm2192 = vcmp.gt.f32.partialorder %v1688, 0.0
      %vm2193 = vcmp.gt.f32.partialorder %v1690, 0.0
      %vm2194 = vcmp.gt.f32.partialorder %v1693, 0.0
      %vm2195 = vcmp.gt.f32.partialorder %v1695, 0.0
      %vm2196 = vcmp.gt.f32.partialorder %v1698, 0.0
      %vm2197 = vcmp.gt.f32.partialorder %v1700, 0.0
      %vm2198 = vcmp.gt.f32.partialorder %v1703, 0.0
      %vm2199 = vcmp.gt.f32.partialorder %v1705, 0.0
      %vm2200 = vcmp.gt.f32.partialorder %v1708, 0.0
      %vm2201 = vcmp.gt.f32.partialorder %v1710, 0.0
      %vm2202 = vcmp.gt.f32.partialorder %v1713, 0.0
      %vm2203 = vcmp.gt.f32.partialorder %v1715, 0.0
      %vm2204 = vcmp.gt.f32.partialorder %v1718, 0.0
      %vm2205 = vcmp.gt.f32.partialorder %v1720, 0.0
      %vm2206 = vcmp.gt.f32.partialorder %v1723, 0.0
      %vm2207 = vcmp.gt.f32.partialorder %v1725, 0.0
      %vm2208 = vcmp.gt.f32.partialorder %v1728, 0.0
      %vm2209 = vcmp.gt.f32.partialorder %v1730, 0.0
      %vm2210 = vcmp.gt.f32.partialorder %v1733, 0.0
      %vm2211 = vcmp.gt.f32.partialorder %v1735, 0.0
      %vm2212 = vcmp.gt.f32.partialorder %v1738, 0.0
      %vm2213 = vcmp.gt.f32.partialorder %v1740, 0.0
      %vm2214 = vcmp.gt.f32.partialorder %v1743, 0.0
      %vm2215 = vcmp.gt.f32.partialorder %v1745, 0.0
      %vm2216 = vcmp.gt.f32.partialorder %v1748, 0.0
      %vm2217 = vcmp.gt.f32.partialorder %v1750, 0.0
      %vm2218 = vcmp.gt.f32.partialorder %v1753, 0.0
      %vm2219 = vcmp.gt.f32.partialorder %v1755, 0.0
      %vm2220 = vcmp.gt.f32.partialorder %v1758, 0.0
      %vm2221 = vcmp.gt.f32.partialorder %v1760, 0.0
      %vm2222 = vcmp.gt.f32.partialorder %v1763, 0.0
      %vm2223 = vcmp.gt.f32.partialorder %v1765, 0.0
      %vm2224 = vcmp.gt.f32.partialorder %v1768, 0.0
      %vm2225 = vcmp.gt.f32.partialorder %v1770, 0.0
      %vm2226 = vcmp.gt.f32.partialorder %v1773, 0.0
      %vm2227 = vcmp.gt.f32.partialorder %v1775, 0.0
      %vm2228 = vcmp.gt.f32.partialorder %v1778, 0.0
      %vm2229 = vcmp.gt.f32.partialorder %v1780, 0.0
      %vm2230 = vcmp.gt.f32.partialorder %v1783, 0.0
      %vm2231 = vcmp.gt.f32.partialorder %v1785, 0.0
      %vm2232 = vcmp.gt.f32.partialorder %v1788, 0.0
      %vm2233 = vcmp.gt.f32.partialorder %v1790, 0.0
      %vm2234 = vcmp.gt.f32.partialorder %v1793, 0.0
      %vm2235 = vcmp.gt.f32.partialorder %v1795, 0.0
      %vm2236 = vcmp.gt.f32.partialorder %v1798, 0.0
      %vm2237 = vcmp.gt.f32.partialorder %v1800, 0.0
      %vm2238 = vcmp.gt.f32.partialorder %v1803, 0.0
      %vm2239 = vcmp.gt.f32.partialorder %v1805, 0.0
      %vm2240 = vcmp.gt.f32.partialorder %v1808, 0.0
      %vm2241 = vcmp.gt.f32.partialorder %v1810, 0.0
      %vm2242 = vcmp.gt.f32.partialorder %v1813, 0.0
      %vm2243 = vcmp.gt.f32.partialorder %v1815, 0.0
      %vm2244 = vcmp.gt.f32.partialorder %v1818, 0.0
      %vm2245 = vcmp.gt.f32.partialorder %v1820, 0.0
      %vm2246 = vcmp.gt.f32.partialorder %v1823, 0.0
      %vm2247 = vcmp.gt.f32.partialorder %v1825, 0.0
      %vm2248 = vcmp.gt.f32.partialorder %v1828, 0.0
      %vm2249 = vcmp.gt.f32.partialorder %v1830, 0.0
      %vm2250 = vcmp.gt.f32.partialorder %v1833, 0.0
      %vm2251 = vcmp.gt.f32.partialorder %v1835, 0.0
      %vm2252 = vcmp.gt.f32.partialorder %v1838, 0.0
      %vm2253 = vcmp.gt.f32.partialorder %v1840, 0.0
      %vm2254 = vcmp.gt.f32.partialorder %v1843, 0.0
      %vm2255 = vcmp.gt.f32.partialorder %v1845, 0.0
      %vm2256 = vcmp.gt.f32.partialorder %v1848, 0.0
      %vm2257 = vcmp.gt.f32.partialorder %v1850, 0.0
      %vm2258 = vcmp.gt.f32.partialorder %v1853, 0.0
      %vm2259 = vcmp.gt.f32.partialorder %v1855, 0.0
      %vm2260 = vcmp.gt.f32.partialorder %v1858, 0.0
      %vm2261 = vcmp.gt.f32.partialorder %v1860, 0.0
      %vm2262 = vcmp.gt.f32.partialorder %v1863, 0.0
      %vm2263 = vcmp.gt.f32.partialorder %v1865, 0.0
      %vm2264 = vcmp.gt.f32.partialorder %v1868, 0.0
      %vm2265 = vcmp.gt.f32.partialorder %v1870, 0.0
      %vm2266 = vcmp.gt.f32.partialorder %v1873, 0.0
      %vm2267 = vcmp.gt.f32.partialorder %v1875, 0.0
      %vm2268 = vcmp.gt.f32.partialorder %v1878, 0.0
      %vm2269 = vcmp.gt.f32.partialorder %v1880, 0.0
      %vm2270 = vcmp.gt.f32.partialorder %v1883, 0.0
      %vm2271 = vcmp.gt.f32.partialorder %v1885, 0.0
      %vm2272 = vcmp.gt.f32.partialorder %v1888, 0.0
      %vm2273 = vcmp.gt.f32.partialorder %v1890, 0.0
      %vm2274 = vcmp.gt.f32.partialorder %v1893, 0.0
      %vm2275 = vcmp.gt.f32.partialorder %v1895, 0.0
      %vm2276 = vcmp.gt.f32.partialorder %v1898, 0.0
      %vm2277 = vcmp.gt.f32.partialorder %v1900, 0.0
      %vm2278 = vcmp.gt.f32.partialorder %v1903, 0.0
      %vm2279 = vcmp.gt.f32.partialorder %v1905, 0.0
      %vm2280 = vcmp.gt.f32.partialorder %v1908, 0.0
      %vm2281 = vcmp.gt.f32.partialorder %v1910, 0.0
      %vm2282 = vcmp.gt.f32.partialorder %v1913, 0.0
      %vm2283 = vcmp.gt.f32.partialorder %v1915, 0.0
      %vm2284 = vcmp.gt.f32.partialorder %v1918, 0.0
      %vm2285 = vcmp.gt.f32.partialorder %v1920, 0.0
      %vm2286 = vcmp.gt.f32.partialorder %v1923, 0.0
      %vm2287 = vcmp.gt.f32.partialorder %v1925, 0.0
      %vm2288 = vcmp.gt.f32.partialorder %v1928, 0.0
      %vm2289 = vcmp.gt.f32.partialorder %v1930, 0.0
      %vm2290 = vcmp.gt.f32.partialorder %v1933, 0.0
      %vm2291 = vcmp.gt.f32.partialorder %v1935, 0.0
      %vm2292 = vcmp.gt.f32.partialorder %v1938, 0.0
      %vm2293 = vcmp.gt.f32.partialorder %v1940, 0.0
      %vm2294 = vcmp.gt.f32.partialorder %v1943, 0.0
      %vm2295 = vcmp.gt.f32.partialorder %v1945, 0.0
      %vm2296 = vcmp.gt.f32.partialorder %v1948, 0.0
      %vm2297 = vcmp.gt.f32.partialorder %v1950, 0.0
      %vm2298 = vcmp.gt.f32.partialorder %v1953, 0.0
      %vm2299 = vcmp.gt.f32.partialorder %v1955, 0.0
      %vm2300 = vcmp.gt.f32.partialorder %v1958, 0.0
      %vm2301 = vcmp.gt.f32.partialorder %v1960, 0.0
      %vm2302 = vcmp.gt.f32.partialorder %v1963, 0.0
      %vm2303 = vcmp.gt.f32.partialorder %v1965, 0.0
      %vm2304 = vcmp.gt.f32.partialorder %v1968, 0.0
      %vm2305 = vcmp.gt.f32.partialorder %v1970, 0.0
      %vm2306 = vcmp.gt.f32.partialorder %v1973, 0.0
      %vm2307 = vcmp.gt.f32.partialorder %v1975, 0.0
      %vm2308 = vcmp.gt.f32.partialorder %v1978, 0.0
      %vm2309 = vcmp.gt.f32.partialorder %v1980, 0.0
      %vm2310 = vcmp.gt.f32.partialorder %v1983, 0.0
      %vm2311 = vcmp.gt.f32.partialorder %v1985, 0.0
      %vm2312 = vcmp.gt.f32.partialorder %v1988, 0.0
      %vm2313 = vcmp.gt.f32.partialorder %v1990, 0.0
      %vm2314 = vcmp.gt.f32.partialorder %v1993, 0.0
      %vm2315 = vcmp.gt.f32.partialorder %v1995, 0.0
      %vm2316 = vcmp.gt.f32.partialorder %v1998, 0.0
      %vm2317 = vcmp.gt.f32.partialorder %v2000, 0.0
      %vm2318 = vcmp.gt.f32.partialorder %v2003, 0.0
      %vm2319 = vcmp.gt.f32.partialorder %v2005, 0.0
      %vm2320 = vcmp.gt.f32.partialorder %v2008, 0.0
      %vm2321 = vcmp.gt.f32.partialorder %v2010, 0.0
      %vm2322 = vcmp.gt.f32.partialorder %v2013, 0.0
      %vm2323 = vcmp.gt.f32.partialorder %v2015, 0.0
      %vm2324 = vcmp.gt.f32.partialorder %v2018, 0.0
      %vm2325 = vcmp.gt.f32.partialorder %v2020, 0.0
      %vm2326 = vcmp.gt.f32.partialorder %v2023, 0.0
      %vm2327 = vcmp.gt.f32.partialorder %v2025, 0.0
      %vm2328 = vcmp.gt.f32.partialorder %v2028, 0.0
      %vm2329 = vcmp.gt.f32.partialorder %v2030, 0.0
      %vm2330 = vcmp.gt.f32.partialorder %v2033, 0.0
      %vm2331 = vcmp.gt.f32.partialorder %v2035, 0.0
      %vm2332 = vcmp.gt.f32.partialorder %v2038, 0.0
      %vm2333 = vcmp.gt.f32.partialorder %v2040, 0.0
      %vm2334 = vcmp.gt.f32.partialorder %v2043, 0.0
      %vm2335 = vcmp.gt.f32.partialorder %v2045, 0.0
      %vm2336 = vcmp.gt.f32.partialorder %v2048, 0.0
      %vm2337 = vcmp.gt.f32.partialorder %v2050, 0.0
      %vm2338 = vcmp.gt.f32.partialorder %v2053, 0.0
      %vm2339 = vcmp.gt.f32.partialorder %v2055, 0.0
      %vm2340 = vcmp.gt.f32.partialorder %v2058, 0.0
      %vm2341 = vcmp.gt.f32.partialorder %v2060, 0.0
      %vm2342 = vcmp.gt.f32.partialorder %v2063, 0.0
      %vm2343 = vcmp.gt.f32.partialorder %v2065, 0.0
      %vm2344 = vcmp.gt.f32.partialorder %v2068, 0.0
      %vm2345 = vcmp.gt.f32.partialorder %v2070, 0.0
      %vm2346 = vcmp.gt.f32.partialorder %v2073, 0.0
      %vm2347 = vcmp.gt.f32.partialorder %v2075, 0.0
      %vm2348 = vcmp.gt.f32.partialorder %v2078, 0.0
      %vm2349 = vcmp.gt.f32.partialorder %v2080, 0.0
      %vm2350 = vcmp.gt.f32.partialorder %v2083, 0.0
      %vm2351 = vcmp.gt.f32.partialorder %v2085, 0.0
      %vm2352 = vcmp.gt.f32.partialorder %v2088, 0.0
      %vm2353 = vcmp.gt.f32.partialorder %v2090, 0.0
      %vm2354 = vcmp.gt.f32.partialorder %v2093, 0.0
      %vm2355 = vcmp.gt.f32.partialorder %v2095, 0.0
      %vm2356 = vcmp.gt.f32.partialorder %v2098, 0.0
      %vm2357 = vcmp.gt.f32.partialorder %v2100, 0.0
      %v2358 = vmul.f32 %v1463, 0.2
      %v2359 = vmul.f32 %v1465, 0.2
      %v2360 = vmul.f32 %v1468, 0.2
      %v2361 = vmul.f32 %v1470, 0.2
      %v2362 = vmul.f32 %v1473, 0.2
      %v2363 = vmul.f32 %v1475, 0.2
      %v2364 = vmul.f32 %v1478, 0.2
      %v2365 = vmul.f32 %v1480, 0.2
      %v2366 = vmul.f32 %v1483, 0.2
      %v2367 = vmul.f32 %v1485, 0.2
      %v2368 = vmul.f32 %v1488, 0.2
      %v2369 = vmul.f32 %v1490, 0.2
      %v2370 = vmul.f32 %v1493, 0.2
      %v2371 = vmul.f32 %v1495, 0.2
      %v2372 = vmul.f32 %v1498, 0.2
      %v2373 = vmul.f32 %v1500, 0.2
      %v2374 = vmul.f32 %v1503, 0.2
      %v2375 = vmul.f32 %v1505, 0.2
      %v2376 = vmul.f32 %v1508, 0.2
      %v2377 = vmul.f32 %v1510, 0.2
      %v2378 = vmul.f32 %v1513, 0.2
      %v2379 = vmul.f32 %v1515, 0.2
      %v2380 = vmul.f32 %v1518, 0.2
      %v2381 = vmul.f32 %v1520, 0.2
      %v2382 = vmul.f32 %v1523, 0.2
      %v2383 = vmul.f32 %v1525, 0.2
      %v2384 = vmul.f32 %v1528, 0.2
      %v2385 = vmul.f32 %v1530, 0.2
      %v2386 = vmul.f32 %v1533, 0.2
      %v2387 = vmul.f32 %v1535, 0.2
      %v2388 = vmul.f32 %v1538, 0.2
      %v2389 = vmul.f32 %v1540, 0.2
      %v2390 = vmul.f32 %v1543, 0.2
      %v2391 = vmul.f32 %v1545, 0.2
      %v2392 = vmul.f32 %v1548, 0.2
      %v2393 = vmul.f32 %v1550, 0.2
      %v2394 = vmul.f32 %v1553, 0.2
      %v2395 = vmul.f32 %v1555, 0.2
      %v2396 = vmul.f32 %v1558, 0.2
      %v2397 = vmul.f32 %v1560, 0.2
      %v2398 = vmul.f32 %v1563, 0.2
      %v2399 = vmul.f32 %v1565, 0.2
      %v2400 = vmul.f32 %v1568, 0.2
      %v2401 = vmul.f32 %v1570, 0.2
      %v2402 = vmul.f32 %v1573, 0.2
      %v2403 = vmul.f32 %v1575, 0.2
      %v2404 = vmul.f32 %v1578, 0.2
      %v2405 = vmul.f32 %v1580, 0.2
      %v2406 = vmul.f32 %v1583, 0.2
      %v2407 = vmul.f32 %v1585, 0.2
      %v2408 = vmul.f32 %v1588, 0.2
      %v2409 = vmul.f32 %v1590, 0.2
      %v2410 = vmul.f32 %v1593, 0.2
      %v2411 = vmul.f32 %v1595, 0.2
      %v2412 = vmul.f32 %v1598, 0.2
      %v2413 = vmul.f32 %v1600, 0.2
      %v2414 = vmul.f32 %v1603, 0.2
      %v2415 = vmul.f32 %v1605, 0.2
      %v2416 = vmul.f32 %v1608, 0.2
      %v2417 = vmul.f32 %v1610, 0.2
      %v2418 = vmul.f32 %v1613, 0.2
      %v2419 = vmul.f32 %v1615, 0.2
      %v2420 = vmul.f32 %v1618, 0.2
      %v2421 = vmul.f32 %v1620, 0.2
      %v2422 = vmul.f32 %v1623, 0.2
      %v2423 = vmul.f32 %v1625, 0.2
      %v2424 = vmul.f32 %v1628, 0.2
      %v2425 = vmul.f32 %v1630, 0.2
      %v2426 = vmul.f32 %v1633, 0.2
      %v2427 = vmul.f32 %v1635, 0.2
      %v2428 = vmul.f32 %v1638, 0.2
      %v2429 = vmul.f32 %v1640, 0.2
      %v2430 = vmul.f32 %v1643, 0.2
      %v2431 = vmul.f32 %v1645, 0.2
      %v2432 = vmul.f32 %v1648, 0.2
      %v2433 = vmul.f32 %v1650, 0.2
      %v2434 = vmul.f32 %v1653, 0.2
      %v2435 = vmul.f32 %v1655, 0.2
      %v2436 = vmul.f32 %v1658, 0.2
      %v2437 = vmul.f32 %v1660, 0.2
      %v2438 = vmul.f32 %v1663, 0.2
      %v2439 = vmul.f32 %v1665, 0.2
      %v2440 = vmul.f32 %v1668, 0.2
      %v2441 = vmul.f32 %v1670, 0.2
      %v2442 = vmul.f32 %v1673, 0.2
      %v2443 = vmul.f32 %v1675, 0.2
      %v2444 = vmul.f32 %v1678, 0.2
      %v2445 = vmul.f32 %v1680, 0.2
      %v2446 = vmul.f32 %v1683, 0.2
      %v2447 = vmul.f32 %v1685, 0.2
      %v2448 = vmul.f32 %v1688, 0.2
      %v2449 = vmul.f32 %v1690, 0.2
      %v2450 = vmul.f32 %v1693, 0.2
      %v2451 = vmul.f32 %v1695, 0.2
      %v2452 = vmul.f32 %v1698, 0.2
      %v2453 = vmul.f32 %v1700, 0.2
      %v2454 = vmul.f32 %v1703, 0.2
      %v2455 = vmul.f32 %v1705, 0.2
      %v2456 = vmul.f32 %v1708, 0.2
      %v2457 = vmul.f32 %v1710, 0.2
      %v2458 = vmul.f32 %v1713, 0.2
      %v2459 = vmul.f32 %v1715, 0.2
      %v2460 = vmul.f32 %v1718, 0.2
      %v2461 = vmul.f32 %v1720, 0.2
      %v2462 = vmul.f32 %v1723, 0.2
      %v2463 = vmul.f32 %v1725, 0.2
      %v2464 = vmul.f32 %v1728, 0.2
      %v2465 = vmul.f32 %v1730, 0.2
      %v2466 = vmul.f32 %v1733, 0.2
      %v2467 = vmul.f32 %v1735, 0.2
      %v2468 = vmul.f32 %v1738, 0.2
      %v2469 = vmul.f32 %v1740, 0.2
      %v2470 = vmul.f32 %v1743, 0.2
      %v2471 = vmul.f32 %v1745, 0.2
      %v2472 = vmul.f32 %v1748, 0.2
      %v2473 = vmul.f32 %v1750, 0.2
      %v2474 = vmul.f32 %v1753, 0.2
      %v2475 = vmul.f32 %v1755, 0.2
      %v2476 = vmul.f32 %v1758, 0.2
      %v2477 = vmul.f32 %v1760, 0.2
      %v2478 = vmul.f32 %v1763, 0.2
      %v2479 = vmul.f32 %v1765, 0.2
      %v2480 = vmul.f32 %v1768, 0.2
      %v2481 = vmul.f32 %v1770, 0.2
      %v2482 = vmul.f32 %v1773, 0.2
      %v2483 = vmul.f32 %v1775, 0.2
      %v2484 = vmul.f32 %v1778, 0.2
      %v2485 = vmul.f32 %v1780, 0.2
      %v2486 = vmul.f32 %v1783, 0.2
      %v2487 = vmul.f32 %v1785, 0.2
      %v2488 = vmul.f32 %v1788, 0.2
      %v2489 = vmul.f32 %v1790, 0.2
      %v2490 = vmul.f32 %v1793, 0.2
      %v2491 = vmul.f32 %v1795, 0.2
      %v2492 = vmul.f32 %v1798, 0.2
      %v2493 = vmul.f32 %v1800, 0.2
      %v2494 = vmul.f32 %v1803, 0.2
      %v2495 = vmul.f32 %v1805, 0.2
      %v2496 = vmul.f32 %v1808, 0.2
      %v2497 = vmul.f32 %v1810, 0.2
      %v2498 = vmul.f32 %v1813, 0.2
      %v2499 = vmul.f32 %v1815, 0.2
      %v2500 = vmul.f32 %v1818, 0.2
      %v2501 = vmul.f32 %v1820, 0.2
      %v2502 = vmul.f32 %v1823, 0.2
      %v2503 = vmul.f32 %v1825, 0.2
      %v2504 = vmul.f32 %v1828, 0.2
      %v2505 = vmul.f32 %v1830, 0.2
      %v2506 = vmul.f32 %v1833, 0.2
      %v2507 = vmul.f32 %v1835, 0.2
      %v2508 = vmul.f32 %v1838, 0.2
      %v2509 = vmul.f32 %v1840, 0.2
      %v2510 = vmul.f32 %v1843, 0.2
      %v2511 = vmul.f32 %v1845, 0.2
      %v2512 = vmul.f32 %v1848, 0.2
      %v2513 = vmul.f32 %v1850, 0.2
      %v2514 = vmul.f32 %v1853, 0.2
      %v2515 = vmul.f32 %v1855, 0.2
      %v2516 = vmul.f32 %v1858, 0.2
      %v2517 = vmul.f32 %v1860, 0.2
      %v2518 = vmul.f32 %v1863, 0.2
      %v2519 = vmul.f32 %v1865, 0.2
      %v2520 = vmul.f32 %v1868, 0.2
      %v2521 = vmul.f32 %v1870, 0.2
      %v2522 = vmul.f32 %v1873, 0.2
      %v2523 = vmul.f32 %v1875, 0.2
      %v2524 = vmul.f32 %v1878, 0.2
      %v2525 = vmul.f32 %v1880, 0.2
      %v2526 = vmul.f32 %v1883, 0.2
      %v2527 = vmul.f32 %v1885, 0.2
      %v2528 = vmul.f32 %v1888, 0.2
      %v2529 = vmul.f32 %v1890, 0.2
      %v2530 = vmul.f32 %v1893, 0.2
      %v2531 = vmul.f32 %v1895, 0.2
      %v2532 = vmul.f32 %v1898, 0.2
      %v2533 = vmul.f32 %v1900, 0.2
      %v2534 = vmul.f32 %v1903, 0.2
      %v2535 = vmul.f32 %v1905, 0.2
      %v2536 = vmul.f32 %v1908, 0.2
      %v2537 = vmul.f32 %v1910, 0.2
      %v2538 = vmul.f32 %v1913, 0.2
      %v2539 = vmul.f32 %v1915, 0.2
      %v2540 = vmul.f32 %v1918, 0.2
      %v2541 = vmul.f32 %v1920, 0.2
      %v2542 = vmul.f32 %v1923, 0.2
      %v2543 = vmul.f32 %v1925, 0.2
      %v2544 = vmul.f32 %v1928, 0.2
      %v2545 = vmul.f32 %v1930, 0.2
      %v2546 = vmul.f32 %v1933, 0.2
      %v2547 = vmul.f32 %v1935, 0.2
      %v2548 = vmul.f32 %v1938, 0.2
      %v2549 = vmul.f32 %v1940, 0.2
      %v2550 = vmul.f32 %v1943, 0.2
      %v2551 = vmul.f32 %v1945, 0.2
      %v2552 = vmul.f32 %v1948, 0.2
      %v2553 = vmul.f32 %v1950, 0.2
      %v2554 = vmul.f32 %v1953, 0.2
      %v2555 = vmul.f32 %v1955, 0.2
      %v2556 = vmul.f32 %v1958, 0.2
      %v2557 = vmul.f32 %v1960, 0.2
      %v2558 = vmul.f32 %v1963, 0.2
      %v2559 = vmul.f32 %v1965, 0.2
      %v2560 = vmul.f32 %v1968, 0.2
      %v2561 = vmul.f32 %v1970, 0.2
      %v2562 = vmul.f32 %v1973, 0.2
      %v2563 = vmul.f32 %v1975, 0.2
      %v2564 = vmul.f32 %v1978, 0.2
      %v2565 = vmul.f32 %v1980, 0.2
      %v2566 = vmul.f32 %v1983, 0.2
      %v2567 = vmul.f32 %v1985, 0.2
      %v2568 = vmul.f32 %v1988, 0.2
      %v2569 = vmul.f32 %v1990, 0.2
      %v2570 = vmul.f32 %v1993, 0.2
      %v2571 = vmul.f32 %v1995, 0.2
      %v2572 = vmul.f32 %v1998, 0.2
      %v2573 = vmul.f32 %v2000, 0.2
      %v2574 = vmul.f32 %v2003, 0.2
      %v2575 = vmul.f32 %v2005, 0.2
      %v2576 = vmul.f32 %v2008, 0.2
      %v2577 = vmul.f32 %v2010, 0.2
      %v2578 = vmul.f32 %v2013, 0.2
      %v2579 = vmul.f32 %v2015, 0.2
      %v2580 = vmul.f32 %v2018, 0.2
      %v2581 = vmul.f32 %v2020, 0.2
      %v2582 = vmul.f32 %v2023, 0.2
      %v2583 = vmul.f32 %v2025, 0.2
      %v2584 = vmul.f32 %v2028, 0.2
      %v2585 = vmul.f32 %v2030, 0.2
      %v2586 = vmul.f32 %v2033, 0.2
      %v2587 = vmul.f32 %v2035, 0.2
      %v2588 = vmul.f32 %v2038, 0.2
      %v2589 = vmul.f32 %v2040, 0.2
      %v2590 = vmul.f32 %v2043, 0.2
      %v2591 = vmul.f32 %v2045, 0.2
      %v2592 = vmul.f32 %v2048, 0.2
      %v2593 = vmul.f32 %v2050, 0.2
      %v2594 = vmul.f32 %v2053, 0.2
      %v2595 = vmul.f32 %v2055, 0.2
      %v2596 = vmul.f32 %v2058, 0.2
      %v2597 = vmul.f32 %v2060, 0.2
      %v2598 = vmul.f32 %v2063, 0.2
      %v2599 = vmul.f32 %v2065, 0.2
      %v2600 = vmul.f32 %v2068, 0.2
      %v2601 = vmul.f32 %v2070, 0.2
      %v2602 = vmul.f32 %v2073, 0.2
      %v2603 = vmul.f32 %v2075, 0.2
      %v2604 = vmul.f32 %v2078, 0.2
      %v2605 = vmul.f32 %v2080, 0.2
      %v2606 = vmul.f32 %v2083, 0.2
      %v2607 = vmul.f32 %v2085, 0.2
      %v2608 = vmul.f32 %v2088, 0.2
      %v2609 = vmul.f32 %v2090, 0.2
      %v2610 = vmul.f32 %v2093, 0.2
      %v2611 = vmul.f32 %v2095, 0.2
      %v2612 = vmul.f32 %v2098, 0.2
      %v2613 = vmul.f32 %v2100, 0.2
      %v2614 = vsel %vm2102, %v1463, %v2358
      %v2615 = vsel %vm2103, %v1465, %v2359
      %v2616 = vsel %vm2104, %v1468, %v2360
      %v2617 = vsel %vm2105, %v1470, %v2361
      %v2618 = vsel %vm2106, %v1473, %v2362
      %v2619 = vsel %vm2107, %v1475, %v2363
      %v2620 = vsel %vm2108, %v1478, %v2364
      %v2621 = vsel %vm2109, %v1480, %v2365
      %v2622 = vsel %vm2110, %v1483, %v2366
      %v2623 = vsel %vm2111, %v1485, %v2367
      %v2624 = vsel %vm2112, %v1488, %v2368
      %v2625 = vsel %vm2113, %v1490, %v2369
      %v2626 = vsel %vm2114, %v1493, %v2370
      %v2627 = vsel %vm2115, %v1495, %v2371
      %v2628 = vsel %vm2116, %v1498, %v2372
      %v2629 = vsel %vm2117, %v1500, %v2373
      %v2630 = vsel %vm2118, %v1503, %v2374
      %v2631 = vsel %vm2119, %v1505, %v2375
      %v2632 = vsel %vm2120, %v1508, %v2376
      %v2633 = vsel %vm2121, %v1510, %v2377
      %v2634 = vsel %vm2122, %v1513, %v2378
      %v2635 = vsel %vm2123, %v1515, %v2379
      %v2636 = vsel %vm2124, %v1518, %v2380
      %v2637 = vsel %vm2125, %v1520, %v2381
      %v2638 = vsel %vm2126, %v1523, %v2382
      %v2639 = vsel %vm2127, %v1525, %v2383
      %v2640 = vsel %vm2128, %v1528, %v2384
      %v2641 = vsel %vm2129, %v1530, %v2385
      %v2642 = vsel %vm2130, %v1533, %v2386
      %v2643 = vsel %vm2131, %v1535, %v2387
      %v2644 = vsel %vm2132, %v1538, %v2388
      %v2645 = vsel %vm2133, %v1540, %v2389
      %v2646 = vsel %vm2134, %v1543, %v2390
      %v2647 = vsel %vm2135, %v1545, %v2391
      %v2648 = vsel %vm2136, %v1548, %v2392
      %v2649 = vsel %vm2137, %v1550, %v2393
      %v2650 = vsel %vm2138, %v1553, %v2394
      %v2651 = vsel %vm2139, %v1555, %v2395
      %v2652 = vsel %vm2140, %v1558, %v2396
      %v2653 = vsel %vm2141, %v1560, %v2397
      %v2654 = vsel %vm2142, %v1563, %v2398
      %v2655 = vsel %vm2143, %v1565, %v2399
      %v2656 = vsel %vm2144, %v1568, %v2400
      %v2657 = vsel %vm2145, %v1570, %v2401
      %v2658 = vsel %vm2146, %v1573, %v2402
      %v2659 = vsel %vm2147, %v1575, %v2403
      %v2660 = vsel %vm2148, %v1578, %v2404
      %v2661 = vsel %vm2149, %v1580, %v2405
      %v2662 = vsel %vm2150, %v1583, %v2406
      %v2663 = vsel %vm2151, %v1585, %v2407
      %v2664 = vsel %vm2152, %v1588, %v2408
      %v2665 = vsel %vm2153, %v1590, %v2409
      %v2666 = vsel %vm2154, %v1593, %v2410
      %v2667 = vsel %vm2155, %v1595, %v2411
      %v2668 = vsel %vm2156, %v1598, %v2412
      %v2669 = vsel %vm2157, %v1600, %v2413
      %v2670 = vsel %vm2158, %v1603, %v2414
      %v2671 = vsel %vm2159, %v1605, %v2415
      %v2672 = vsel %vm2160, %v1608, %v2416
      %v2673 = vsel %vm2161, %v1610, %v2417
      %v2674 = vsel %vm2162, %v1613, %v2418
      %v2675 = vsel %vm2163, %v1615, %v2419
      %v2676 = vsel %vm2164, %v1618, %v2420
      %v2677 = vsel %vm2165, %v1620, %v2421
      %v2678 = vsel %vm2166, %v1623, %v2422
      %v2679 = vsel %vm2167, %v1625, %v2423
      %v2680 = vsel %vm2168, %v1628, %v2424
      %v2681 = vsel %vm2169, %v1630, %v2425
      %v2682 = vsel %vm2170, %v1633, %v2426
      %v2683 = vsel %vm2171, %v1635, %v2427
      %v2684 = vsel %vm2172, %v1638, %v2428
      %v2685 = vsel %vm2173, %v1640, %v2429
      %v2686 = vsel %vm2174, %v1643, %v2430
      %v2687 = vsel %vm2175, %v1645, %v2431
      %v2688 = vsel %vm2176, %v1648, %v2432
      %v2689 = vsel %vm2177, %v1650, %v2433
      %v2690 = vsel %vm2178, %v1653, %v2434
      %v2691 = vsel %vm2179, %v1655, %v2435
      %v2692 = vsel %vm2180, %v1658, %v2436
      %v2693 = vsel %vm2181, %v1660, %v2437
      %v2694 = vsel %vm2182, %v1663, %v2438
      %v2695 = vsel %vm2183, %v1665, %v2439
      %v2696 = vsel %vm2184, %v1668, %v2440
      %v2697 = vsel %vm2185, %v1670, %v2441
      %v2698 = vsel %vm2186, %v1673, %v2442
      %v2699 = vsel %vm2187, %v1675, %v2443
      %v2700 = vsel %vm2188, %v1678, %v2444
      %v2701 = vsel %vm2189, %v1680, %v2445
      %v2702 = vsel %vm2190, %v1683, %v2446
      %v2703 = vsel %vm2191, %v1685, %v2447
      %v2704 = vsel %vm2192, %v1688, %v2448
      %v2705 = vsel %vm2193, %v1690, %v2449
      %v2706 = vsel %vm2194, %v1693, %v2450
      %v2707 = vsel %vm2195, %v1695, %v2451
      %v2708 = vsel %vm2196, %v1698, %v2452
      %v2709 = vsel %vm2197, %v1700, %v2453
      %v2710 = vsel %vm2198, %v1703, %v2454
      %v2711 = vsel %vm2199, %v1705, %v2455
      %v2712 = vsel %vm2200, %v1708, %v2456
      %v2713 = vsel %vm2201, %v1710, %v2457
      %v2714 = vsel %vm2202, %v1713, %v2458
      %v2715 = vsel %vm2203, %v1715, %v2459
      %v2716 = vsel %vm2204, %v1718, %v2460
      %v2717 = vsel %vm2205, %v1720, %v2461
      %v2718 = vsel %vm2206, %v1723, %v2462
      %v2719 = vsel %vm2207, %v1725, %v2463
      %v2720 = vsel %vm2208, %v1728, %v2464
      %v2721 = vsel %vm2209, %v1730, %v2465
      %v2722 = vsel %vm2210, %v1733, %v2466
      %v2723 = vsel %vm2211, %v1735, %v2467
      %v2724 = vsel %vm2212, %v1738, %v2468
      %v2725 = vsel %vm2213, %v1740, %v2469
      %v2726 = vsel %vm2214, %v1743, %v2470
      %v2727 = vsel %vm2215, %v1745, %v2471
      %v2728 = vsel %vm2216, %v1748, %v2472
      %v2729 = vsel %vm2217, %v1750, %v2473
      %v2730 = vsel %vm2218, %v1753, %v2474
      %v2731 = vsel %vm2219, %v1755, %v2475
      %v2732 = vsel %vm2220, %v1758, %v2476
      %v2733 = vsel %vm2221, %v1760, %v2477
      %v2734 = vsel %vm2222, %v1763, %v2478
      %v2735 = vsel %vm2223, %v1765, %v2479
      %v2736 = vsel %vm2224, %v1768, %v2480
      %v2737 = vsel %vm2225, %v1770, %v2481
      %v2738 = vsel %vm2226, %v1773, %v2482
      %v2739 = vsel %vm2227, %v1775, %v2483
      %v2740 = vsel %vm2228, %v1778, %v2484
      %v2741 = vsel %vm2229, %v1780, %v2485
      %v2742 = vsel %vm2230, %v1783, %v2486
      %v2743 = vsel %vm2231, %v1785, %v2487
      %v2744 = vsel %vm2232, %v1788, %v2488
      %v2745 = vsel %vm2233, %v1790, %v2489
      %v2746 = vsel %vm2234, %v1793, %v2490
      %v2747 = vsel %vm2235, %v1795, %v2491
      %v2748 = vsel %vm2236, %v1798, %v2492
      %v2749 = vsel %vm2237, %v1800, %v2493
      %v2750 = vsel %vm2238, %v1803, %v2494
      %v2751 = vsel %vm2239, %v1805, %v2495
      %v2752 = vsel %vm2240, %v1808, %v2496
      %v2753 = vsel %vm2241, %v1810, %v2497
      %v2754 = vsel %vm2242, %v1813, %v2498
      %v2755 = vsel %vm2243, %v1815, %v2499
      %v2756 = vsel %vm2244, %v1818, %v2500
      %v2757 = vsel %vm2245, %v1820, %v2501
      %v2758 = vsel %vm2246, %v1823, %v2502
      %v2759 = vsel %vm2247, %v1825, %v2503
      %v2760 = vsel %vm2248, %v1828, %v2504
      %v2761 = vsel %vm2249, %v1830, %v2505
      %v2762 = vsel %vm2250, %v1833, %v2506
      %v2763 = vsel %vm2251, %v1835, %v2507
      %v2764 = vsel %vm2252, %v1838, %v2508
      %v2765 = vsel %vm2253, %v1840, %v2509
      %v2766 = vsel %vm2254, %v1843, %v2510
      %v2767 = vsel %vm2255, %v1845, %v2511
      %v2768 = vsel %vm2256, %v1848, %v2512
      %v2769 = vsel %vm2257, %v1850, %v2513
      %v2770 = vsel %vm2258, %v1853, %v2514
      %v2771 = vsel %vm2259, %v1855, %v2515
      %v2772 = vsel %vm2260, %v1858, %v2516
      %v2773 = vsel %vm2261, %v1860, %v2517
      %v2774 = vsel %vm2262, %v1863, %v2518
      %v2775 = vsel %vm2263, %v1865, %v2519
      %v2776 = vsel %vm2264, %v1868, %v2520
      %v2777 = vsel %vm2265, %v1870, %v2521
      %v2778 = vsel %vm2266, %v1873, %v2522
      %v2779 = vsel %vm2267, %v1875, %v2523
      %v2780 = vsel %vm2268, %v1878, %v2524
      %v2781 = vsel %vm2269, %v1880, %v2525
      %v2782 = vsel %vm2270, %v1883, %v2526
      %v2783 = vsel %vm2271, %v1885, %v2527
      %v2784 = vsel %vm2272, %v1888, %v2528
      %v2785 = vsel %vm2273, %v1890, %v2529
      %v2786 = vsel %vm2274, %v1893, %v2530
      %v2787 = vsel %vm2275, %v1895, %v2531
      %v2788 = vsel %vm2276, %v1898, %v2532
      %v2789 = vsel %vm2277, %v1900, %v2533
      %v2790 = vsel %vm2278, %v1903, %v2534
      %v2791 = vsel %vm2279, %v1905, %v2535
      %v2792 = vsel %vm2280, %v1908, %v2536
      %v2793 = vsel %vm2281, %v1910, %v2537
      %v2794 = vsel %vm2282, %v1913, %v2538
      %v2795 = vsel %vm2283, %v1915, %v2539
      %v2796 = vsel %vm2284, %v1918, %v2540
      %v2797 = vsel %vm2285, %v1920, %v2541
      %v2798 = vsel %vm2286, %v1923, %v2542
      %v2799 = vsel %vm2287, %v1925, %v2543
      %v2800 = vsel %vm2288, %v1928, %v2544
      %v2801 = vsel %vm2289, %v1930, %v2545
      %v2802 = vsel %vm2290, %v1933, %v2546
      %v2803 = vsel %vm2291, %v1935, %v2547
      %v2804 = vsel %vm2292, %v1938, %v2548
      %v2805 = vsel %vm2293, %v1940, %v2549
      %v2806 = vsel %vm2294, %v1943, %v2550
      %v2807 = vsel %vm2295, %v1945, %v2551
      %v2808 = vsel %vm2296, %v1948, %v2552
      %v2809 = vsel %vm2297, %v1950, %v2553
      %v2810 = vsel %vm2298, %v1953, %v2554
      %v2811 = vsel %vm2299, %v1955, %v2555
      %v2812 = vsel %vm2300, %v1958, %v2556
      %v2813 = vsel %vm2301, %v1960, %v2557
      %v2814 = vsel %vm2302, %v1963, %v2558
      %v2815 = vsel %vm2303, %v1965, %v2559
      %v2816 = vsel %vm2304, %v1968, %v2560
      %v2817 = vsel %vm2305, %v1970, %v2561
      %v2818 = vsel %vm2306, %v1973, %v2562
      %v2819 = vsel %vm2307, %v1975, %v2563
      %v2820 = vsel %vm2308, %v1978, %v2564
      %v2821 = vsel %vm2309, %v1980, %v2565
      %v2822 = vsel %vm2310, %v1983, %v2566
      %v2823 = vsel %vm2311, %v1985, %v2567
      %v2824 = vsel %vm2312, %v1988, %v2568
      %v2825 = vsel %vm2313, %v1990, %v2569
      %v2826 = vsel %vm2314, %v1993, %v2570
      %v2827 = vsel %vm2315, %v1995, %v2571
      %v2828 = vsel %vm2316, %v1998, %v2572
      %v2829 = vsel %vm2317, %v2000, %v2573
      %v2830 = vsel %vm2318, %v2003, %v2574
      %v2831 = vsel %vm2319, %v2005, %v2575
      %v2832 = vsel %vm2320, %v2008, %v2576
      %v2833 = vsel %vm2321, %v2010, %v2577
      %v2834 = vsel %vm2322, %v2013, %v2578
      %v2835 = vsel %vm2323, %v2015, %v2579
      %v2836 = vsel %vm2324, %v2018, %v2580
      %v2837 = vsel %vm2325, %v2020, %v2581
      %v2838 = vsel %vm2326, %v2023, %v2582
      %v2839 = vsel %vm2327, %v2025, %v2583
      %v2840 = vsel %vm2328, %v2028, %v2584
      %v2841 = vsel %vm2329, %v2030, %v2585
      %v2842 = vsel %vm2330, %v2033, %v2586
      %v2843 = vsel %vm2331, %v2035, %v2587
      %v2844 = vsel %vm2332, %v2038, %v2588
      %v2845 = vsel %vm2333, %v2040, %v2589
      %v2846 = vsel %vm2334, %v2043, %v2590
      %v2847 = vsel %vm2335, %v2045, %v2591
      %v2848 = vsel %vm2336, %v2048, %v2592
      %v2849 = vsel %vm2337, %v2050, %v2593
      %v2850 = vsel %vm2338, %v2053, %v2594
      %v2851 = vsel %vm2339, %v2055, %v2595
      %v2852 = vsel %vm2340, %v2058, %v2596
      %v2853 = vsel %vm2341, %v2060, %v2597
      %v2854 = vsel %vm2342, %v2063, %v2598
      %v2855 = vsel %vm2343, %v2065, %v2599
      %v2856 = vsel %vm2344, %v2068, %v2600
      %v2857 = vsel %vm2345, %v2070, %v2601
      %v2858 = vsel %vm2346, %v2073, %v2602
      %v2859 = vsel %vm2347, %v2075, %v2603
      %v2860 = vsel %vm2348, %v2078, %v2604
      %v2861 = vsel %vm2349, %v2080, %v2605
      %v2862 = vsel %vm2350, %v2083, %v2606
      %v2863 = vsel %vm2351, %v2085, %v2607
      %v2864 = vsel %vm2352, %v2088, %v2608
      %v2865 = vsel %vm2353, %v2090, %v2609
      %v2866 = vsel %vm2354, %v2093, %v2610
      %v2867 = vsel %vm2355, %v2095, %v2611
      %v2868 = vsel %vm2356, %v2098, %v2612
      %v2869 = vsel %vm2357, %v2100, %v2613
      %v2870 = vpack.c.bf16 %v2614, %v2614
      %v2871 = vpack.c.bf16 %v2615, %v2615
      %v2872 = vpack.c.bf16 %v2616, %v2616
      %v2873 = vpack.c.bf16 %v2617, %v2617
      %v2874 = vpack.c.bf16 %v2618, %v2618
      %v2875 = vpack.c.bf16 %v2619, %v2619
      %v2876 = vpack.c.bf16 %v2620, %v2620
      %v2877 = vpack.c.bf16 %v2621, %v2621
      %v2878 = vpack.c.bf16 %v2622, %v2622
      %v2879 = vpack.c.bf16 %v2623, %v2623
      %v2880 = vpack.c.bf16 %v2624, %v2624
      %v2881 = vpack.c.bf16 %v2625, %v2625
      %v2882 = vpack.c.bf16 %v2626, %v2626
      %v2883 = vpack.c.bf16 %v2627, %v2627
      %v2884 = vpack.c.bf16 %v2628, %v2628
      %v2885 = vpack.c.bf16 %v2629, %v2629
      %v2886 = vpack.c.bf16 %v2630, %v2630
      %v2887 = vpack.c.bf16 %v2631, %v2631
      %v2888 = vpack.c.bf16 %v2632, %v2632
      %v2889 = vpack.c.bf16 %v2633, %v2633
      %v2890 = vpack.c.bf16 %v2634, %v2634
      %v2891 = vpack.c.bf16 %v2635, %v2635
      %v2892 = vpack.c.bf16 %v2636, %v2636
      %v2893 = vpack.c.bf16 %v2637, %v2637
      %v2894 = vpack.c.bf16 %v2638, %v2638
      %v2895 = vpack.c.bf16 %v2639, %v2639
      %v2896 = vpack.c.bf16 %v2640, %v2640
      %v2897 = vpack.c.bf16 %v2641, %v2641
      %v2898 = vpack.c.bf16 %v2642, %v2642
      %v2899 = vpack.c.bf16 %v2643, %v2643
      %v2900 = vpack.c.bf16 %v2644, %v2644
      %v2901 = vpack.c.bf16 %v2645, %v2645
      %v2902 = vpack.c.bf16 %v2646, %v2646
      %v2903 = vpack.c.bf16 %v2647, %v2647
      %v2904 = vpack.c.bf16 %v2648, %v2648
      %v2905 = vpack.c.bf16 %v2649, %v2649
      %v2906 = vpack.c.bf16 %v2650, %v2650
      %v2907 = vpack.c.bf16 %v2651, %v2651
      %v2908 = vpack.c.bf16 %v2652, %v2652
      %v2909 = vpack.c.bf16 %v2653, %v2653
      %v2910 = vpack.c.bf16 %v2654, %v2654
      %v2911 = vpack.c.bf16 %v2655, %v2655
      %v2912 = vpack.c.bf16 %v2656, %v2656
      %v2913 = vpack.c.bf16 %v2657, %v2657
      %v2914 = vpack.c.bf16 %v2658, %v2658
      %v2915 = vpack.c.bf16 %v2659, %v2659
      %v2916 = vpack.c.bf16 %v2660, %v2660
      %v2917 = vpack.c.bf16 %v2661, %v2661
      %v2918 = vpack.c.bf16 %v2662, %v2662
      %v2919 = vpack.c.bf16 %v2663, %v2663
      %v2920 = vpack.c.bf16 %v2664, %v2664
      %v2921 = vpack.c.bf16 %v2665, %v2665
      %v2922 = vpack.c.bf16 %v2666, %v2666
      %v2923 = vpack.c.bf16 %v2667, %v2667
      %v2924 = vpack.c.bf16 %v2668, %v2668
      %v2925 = vpack.c.bf16 %v2669, %v2669
      %v2926 = vpack.c.bf16 %v2670, %v2670
      %v2927 = vpack.c.bf16 %v2671, %v2671
      %v2928 = vpack.c.bf16 %v2672, %v2672
      %v2929 = vpack.c.bf16 %v2673, %v2673
      %v2930 = vpack.c.bf16 %v2674, %v2674
      %v2931 = vpack.c.bf16 %v2675, %v2675
      %v2932 = vpack.c.bf16 %v2676, %v2676
      %v2933 = vpack.c.bf16 %v2677, %v2677
      %v2934 = vpack.c.bf16 %v2678, %v2678
      %v2935 = vpack.c.bf16 %v2679, %v2679
      %v2936 = vpack.c.bf16 %v2680, %v2680
      %v2937 = vpack.c.bf16 %v2681, %v2681
      %v2938 = vpack.c.bf16 %v2682, %v2682
      %v2939 = vpack.c.bf16 %v2683, %v2683
      %v2940 = vpack.c.bf16 %v2684, %v2684
      %v2941 = vpack.c.bf16 %v2685, %v2685
      %v2942 = vpack.c.bf16 %v2686, %v2686
      %v2943 = vpack.c.bf16 %v2687, %v2687
      %v2944 = vpack.c.bf16 %v2688, %v2688
      %v2945 = vpack.c.bf16 %v2689, %v2689
      %v2946 = vpack.c.bf16 %v2690, %v2690
      %v2947 = vpack.c.bf16 %v2691, %v2691
      %v2948 = vpack.c.bf16 %v2692, %v2692
      %v2949 = vpack.c.bf16 %v2693, %v2693
      %v2950 = vpack.c.bf16 %v2694, %v2694
      %v2951 = vpack.c.bf16 %v2695, %v2695
      %v2952 = vpack.c.bf16 %v2696, %v2696
      %v2953 = vpack.c.bf16 %v2697, %v2697
      %v2954 = vpack.c.bf16 %v2698, %v2698
      %v2955 = vpack.c.bf16 %v2699, %v2699
      %v2956 = vpack.c.bf16 %v2700, %v2700
      %v2957 = vpack.c.bf16 %v2701, %v2701
      %v2958 = vpack.c.bf16 %v2702, %v2702
      %v2959 = vpack.c.bf16 %v2703, %v2703
      %v2960 = vpack.c.bf16 %v2704, %v2704
      %v2961 = vpack.c.bf16 %v2705, %v2705
      %v2962 = vpack.c.bf16 %v2706, %v2706
      %v2963 = vpack.c.bf16 %v2707, %v2707
      %v2964 = vpack.c.bf16 %v2708, %v2708
      %v2965 = vpack.c.bf16 %v2709, %v2709
      %v2966 = vpack.c.bf16 %v2710, %v2710
      %v2967 = vpack.c.bf16 %v2711, %v2711
      %v2968 = vpack.c.bf16 %v2712, %v2712
      %v2969 = vpack.c.bf16 %v2713, %v2713
      %v2970 = vpack.c.bf16 %v2714, %v2714
      %v2971 = vpack.c.bf16 %v2715, %v2715
      %v2972 = vpack.c.bf16 %v2716, %v2716
      %v2973 = vpack.c.bf16 %v2717, %v2717
      %v2974 = vpack.c.bf16 %v2718, %v2718
      %v2975 = vpack.c.bf16 %v2719, %v2719
      %v2976 = vpack.c.bf16 %v2720, %v2720
      %v2977 = vpack.c.bf16 %v2721, %v2721
      %v2978 = vpack.c.bf16 %v2722, %v2722
      %v2979 = vpack.c.bf16 %v2723, %v2723
      %v2980 = vpack.c.bf16 %v2724, %v2724
      %v2981 = vpack.c.bf16 %v2725, %v2725
      %v2982 = vpack.c.bf16 %v2726, %v2726
      %v2983 = vpack.c.bf16 %v2727, %v2727
      %v2984 = vpack.c.bf16 %v2728, %v2728
      %v2985 = vpack.c.bf16 %v2729, %v2729
      %v2986 = vpack.c.bf16 %v2730, %v2730
      %v2987 = vpack.c.bf16 %v2731, %v2731
      %v2988 = vpack.c.bf16 %v2732, %v2732
      %v2989 = vpack.c.bf16 %v2733, %v2733
      %v2990 = vpack.c.bf16 %v2734, %v2734
      %v2991 = vpack.c.bf16 %v2735, %v2735
      %v2992 = vpack.c.bf16 %v2736, %v2736
      %v2993 = vpack.c.bf16 %v2737, %v2737
      %v2994 = vpack.c.bf16 %v2738, %v2738
      %v2995 = vpack.c.bf16 %v2739, %v2739
      %v2996 = vpack.c.bf16 %v2740, %v2740
      %v2997 = vpack.c.bf16 %v2741, %v2741
      %v2998 = vpack.c.bf16 %v2742, %v2742
      %v2999 = vpack.c.bf16 %v2743, %v2743
      %v3000 = vpack.c.bf16 %v2744, %v2744
      %v3001 = vpack.c.bf16 %v2745, %v2745
      %v3002 = vpack.c.bf16 %v2746, %v2746
      %v3003 = vpack.c.bf16 %v2747, %v2747
      %v3004 = vpack.c.bf16 %v2748, %v2748
      %v3005 = vpack.c.bf16 %v2749, %v2749
      %v3006 = vpack.c.bf16 %v2750, %v2750
      %v3007 = vpack.c.bf16 %v2751, %v2751
      %v3008 = vpack.c.bf16 %v2752, %v2752
      %v3009 = vpack.c.bf16 %v2753, %v2753
      %v3010 = vpack.c.bf16 %v2754, %v2754
      %v3011 = vpack.c.bf16 %v2755, %v2755
      %v3012 = vpack.c.bf16 %v2756, %v2756
      %v3013 = vpack.c.bf16 %v2757, %v2757
      %v3014 = vpack.c.bf16 %v2758, %v2758
      %v3015 = vpack.c.bf16 %v2759, %v2759
      %v3016 = vpack.c.bf16 %v2760, %v2760
      %v3017 = vpack.c.bf16 %v2761, %v2761
      %v3018 = vpack.c.bf16 %v2762, %v2762
      %v3019 = vpack.c.bf16 %v2763, %v2763
      %v3020 = vpack.c.bf16 %v2764, %v2764
      %v3021 = vpack.c.bf16 %v2765, %v2765
      %v3022 = vpack.c.bf16 %v2766, %v2766
      %v3023 = vpack.c.bf16 %v2767, %v2767
      %v3024 = vpack.c.bf16 %v2768, %v2768
      %v3025 = vpack.c.bf16 %v2769, %v2769
      %v3026 = vpack.c.bf16 %v2770, %v2770
      %v3027 = vpack.c.bf16 %v2771, %v2771
      %v3028 = vpack.c.bf16 %v2772, %v2772
      %v3029 = vpack.c.bf16 %v2773, %v2773
      %v3030 = vpack.c.bf16 %v2774, %v2774
      %v3031 = vpack.c.bf16 %v2775, %v2775
      %v3032 = vpack.c.bf16 %v2776, %v2776
      %v3033 = vpack.c.bf16 %v2777, %v2777
      %v3034 = vpack.c.bf16 %v2778, %v2778
      %v3035 = vpack.c.bf16 %v2779, %v2779
      %v3036 = vpack.c.bf16 %v2780, %v2780
      %v3037 = vpack.c.bf16 %v2781, %v2781
      %v3038 = vpack.c.bf16 %v2782, %v2782
      %v3039 = vpack.c.bf16 %v2783, %v2783
      %v3040 = vpack.c.bf16 %v2784, %v2784
      %v3041 = vpack.c.bf16 %v2785, %v2785
      %v3042 = vpack.c.bf16 %v2786, %v2786
      %v3043 = vpack.c.bf16 %v2787, %v2787
      %v3044 = vpack.c.bf16 %v2788, %v2788
      %v3045 = vpack.c.bf16 %v2789, %v2789
      %v3046 = vpack.c.bf16 %v2790, %v2790
      %v3047 = vpack.c.bf16 %v2791, %v2791
      %v3048 = vpack.c.bf16 %v2792, %v2792
      %v3049 = vpack.c.bf16 %v2793, %v2793
      %v3050 = vpack.c.bf16 %v2794, %v2794
      %v3051 = vpack.c.bf16 %v2795, %v2795
      %v3052 = vpack.c.bf16 %v2796, %v2796
      %v3053 = vpack.c.bf16 %v2797, %v2797
      %v3054 = vpack.c.bf16 %v2798, %v2798
      %v3055 = vpack.c.bf16 %v2799, %v2799
      %v3056 = vpack.c.bf16 %v2800, %v2800
      %v3057 = vpack.c.bf16 %v2801, %v2801
      %v3058 = vpack.c.bf16 %v2802, %v2802
      %v3059 = vpack.c.bf16 %v2803, %v2803
      %v3060 = vpack.c.bf16 %v2804, %v2804
      %v3061 = vpack.c.bf16 %v2805, %v2805
      %v3062 = vpack.c.bf16 %v2806, %v2806
      %v3063 = vpack.c.bf16 %v2807, %v2807
      %v3064 = vpack.c.bf16 %v2808, %v2808
      %v3065 = vpack.c.bf16 %v2809, %v2809
      %v3066 = vpack.c.bf16 %v2810, %v2810
      %v3067 = vpack.c.bf16 %v2811, %v2811
      %v3068 = vpack.c.bf16 %v2812, %v2812
      %v3069 = vpack.c.bf16 %v2813, %v2813
      %v3070 = vpack.c.bf16 %v2814, %v2814
      %v3071 = vpack.c.bf16 %v2815, %v2815
      %v3072 = vpack.c.bf16 %v2816, %v2816
      %v3073 = vpack.c.bf16 %v2817, %v2817
      %v3074 = vpack.c.bf16 %v2818, %v2818
      %v3075 = vpack.c.bf16 %v2819, %v2819
      %v3076 = vpack.c.bf16 %v2820, %v2820
      %v3077 = vpack.c.bf16 %v2821, %v2821
      %v3078 = vpack.c.bf16 %v2822, %v2822
      %v3079 = vpack.c.bf16 %v2823, %v2823
      %v3080 = vpack.c.bf16 %v2824, %v2824
      %v3081 = vpack.c.bf16 %v2825, %v2825
      %v3082 = vpack.c.bf16 %v2826, %v2826
      %v3083 = vpack.c.bf16 %v2827, %v2827
      %v3084 = vpack.c.bf16 %v2828, %v2828
      %v3085 = vpack.c.bf16 %v2829, %v2829
      %v3086 = vpack.c.bf16 %v2830, %v2830
      %v3087 = vpack.c.bf16 %v2831, %v2831
      %v3088 = vpack.c.bf16 %v2832, %v2832
      %v3089 = vpack.c.bf16 %v2833, %v2833
      %v3090 = vpack.c.bf16 %v2834, %v2834
      %v3091 = vpack.c.bf16 %v2835, %v2835
      %v3092 = vpack.c.bf16 %v2836, %v2836
      %v3093 = vpack.c.bf16 %v2837, %v2837
      %v3094 = vpack.c.bf16 %v2838, %v2838
      %v3095 = vpack.c.bf16 %v2839, %v2839
      %v3096 = vpack.c.bf16 %v2840, %v2840
      %v3097 = vpack.c.bf16 %v2841, %v2841
      %v3098 = vpack.c.bf16 %v2842, %v2842
      %v3099 = vpack.c.bf16 %v2843, %v2843
      %v3100 = vpack.c.bf16 %v2844, %v2844
      %v3101 = vpack.c.bf16 %v2845, %v2845
      %v3102 = vpack.c.bf16 %v2846, %v2846
      %v3103 = vpack.c.bf16 %v2847, %v2847
      %v3104 = vpack.c.bf16 %v2848, %v2848
      %v3105 = vpack.c.bf16 %v2849, %v2849
      %v3106 = vpack.c.bf16 %v2850, %v2850
      %v3107 = vpack.c.bf16 %v2851, %v2851
      %v3108 = vpack.c.bf16 %v2852, %v2852
      %v3109 = vpack.c.bf16 %v2853, %v2853
      %v3110 = vpack.c.bf16 %v2854, %v2854
      %v3111 = vpack.c.bf16 %v2855, %v2855
      %v3112 = vpack.c.bf16 %v2856, %v2856
      %v3113 = vpack.c.bf16 %v2857, %v2857
      %v3114 = vpack.c.bf16 %v2858, %v2858
      %v3115 = vpack.c.bf16 %v2859, %v2859
      %v3116 = vpack.c.bf16 %v2860, %v2860
      %v3117 = vpack.c.bf16 %v2861, %v2861
      %v3118 = vpack.c.bf16 %v2862, %v2862
      %v3119 = vpack.c.bf16 %v2863, %v2863
      %v3120 = vpack.c.bf16 %v2864, %v2864
      %v3121 = vpack.c.bf16 %v2865, %v2865
      %v3122 = vpack.c.bf16 %v2866, %v2866
      %v3123 = vpack.c.bf16 %v2867, %v2867
      %v3124 = vpack.c.bf16 %v2868, %v2868
      %v3125 = vpack.c.bf16 %v2869, %v2869
      %vm3126 = vcmask 519168
      %3127 = vst.msk [vmem:[%s145] sm:$0xf] %vm3126, %v2870
      %3128 = vst.msk [vmem:[%s145 + $0x4] sm:$0xf] %vm3126, %v2871
      %3129 = vst.msk [vmem:[%s145 + $0x8] sm:$0xf] %vm3126, %v2872
      %3130 = vst.msk [vmem:[%s145 + $0xc] sm:$0xf] %vm3126, %v2873
      %3131 = vst.msk [vmem:[%s145 + $0x10] sm:$0xf] %vm3126, %v2874
      %3132 = vst.msk [vmem:[%s145 + $0x14] sm:$0xf] %vm3126, %v2875
      %3133 = vst.msk [vmem:[%s145 + $0x18] sm:$0xf] %vm3126, %v2876
      %3134 = vst.msk [vmem:[%s145 + $0x1c] sm:$0xf] %vm3126, %v2877
      %3135 = vst.msk [vmem:[%s145 + $0x20] sm:$0xf] %vm3126, %v2878
      %3136 = vst.msk [vmem:[%s145 + $0x24] sm:$0xf] %vm3126, %v2879
      %3137 = vst.msk [vmem:[%s145 + $0x28] sm:$0xf] %vm3126, %v2880
      %3138 = vst.msk [vmem:[%s145 + $0x2c] sm:$0xf] %vm3126, %v2881
      %3139 = vst.msk [vmem:[%s145 + $0x30] sm:$0xf] %vm3126, %v2882
      %3140 = vst.msk [vmem:[%s145 + $0x34] sm:$0xf] %vm3126, %v2883
      %3141 = vst.msk [vmem:[%s145 + $0x38] sm:$0xf] %vm3126, %v2884
      %3142 = vst.msk [vmem:[%s145 + $0x3c] sm:$0xf] %vm3126, %v2885
      %3143 = vst.msk [vmem:[%s145 + $0x40] sm:$0xf] %vm3126, %v2886
      %3144 = vst.msk [vmem:[%s145 + $0x44] sm:$0xf] %vm3126, %v2887
      %3145 = vst.msk [vmem:[%s145 + $0x48] sm:$0xf] %vm3126, %v2888
      %3146 = vst.msk [vmem:[%s145 + $0x4c] sm:$0xf] %vm3126, %v2889
      %3147 = vst.msk [vmem:[%s145 + $0x50] sm:$0xf] %vm3126, %v2890
      %3148 = vst.msk [vmem:[%s145 + $0x54] sm:$0xf] %vm3126, %v2891
      %3149 = vst.msk [vmem:[%s145 + $0x58] sm:$0xf] %vm3126, %v2892
      %3150 = vst.msk [vmem:[%s145 + $0x5c] sm:$0xf] %vm3126, %v2893
      %3151 = vst.msk [vmem:[%s145 + $0x60] sm:$0xf] %vm3126, %v2894
      %3152 = vst.msk [vmem:[%s145 + $0x64] sm:$0xf] %vm3126, %v2895
      %3153 = vst.msk [vmem:[%s145 + $0x68] sm:$0xf] %vm3126, %v2896
      %3154 = vst.msk [vmem:[%s145 + $0x6c] sm:$0xf] %vm3126, %v2897
      %3155 = vst.msk [vmem:[%s145 + $0x70] sm:$0xf] %vm3126, %v2898
      %3156 = vst.msk [vmem:[%s145 + $0x74] sm:$0xf] %vm3126, %v2899
      %3157 = vst.msk [vmem:[%s145 + $0x78] sm:$0xf] %vm3126, %v2900
      %3158 = vst.msk [vmem:[%s145 + $0x7c] sm:$0xf] %vm3126, %v2901
      %3159 = vst.msk [vmem:[%s145 + $0x80] sm:$0xf] %vm3126, %v2902
      %3160 = vst.msk [vmem:[%s145 + $0x84] sm:$0xf] %vm3126, %v2903
      %3161 = vst.msk [vmem:[%s145 + $0x88] sm:$0xf] %vm3126, %v2904
      %3162 = vst.msk [vmem:[%s145 + $0x8c] sm:$0xf] %vm3126, %v2905
      %3163 = vst.msk [vmem:[%s145 + $0x90] sm:$0xf] %vm3126, %v2906
      %3164 = vst.msk [vmem:[%s145 + $0x94] sm:$0xf] %vm3126, %v2907
      %3165 = vst.msk [vmem:[%s145 + $0x98] sm:$0xf] %vm3126, %v2908
      %3166 = vst.msk [vmem:[%s145 + $0x9c] sm:$0xf] %vm3126, %v2909
      %3167 = vst.msk [vmem:[%s145 + $0xa0] sm:$0xf] %vm3126, %v2910
      %3168 = vst.msk [vmem:[%s145 + $0xa4] sm:$0xf] %vm3126, %v2911
      %3169 = vst.msk [vmem:[%s145 + $0xa8] sm:$0xf] %vm3126, %v2912
      %3170 = vst.msk [vmem:[%s145 + $0xac] sm:$0xf] %vm3126, %v2913
      %3171 = vst.msk [vmem:[%s145 + $0xb0] sm:$0xf] %vm3126, %v2914
      %3172 = vst.msk [vmem:[%s145 + $0xb4] sm:$0xf] %vm3126, %v2915
      %3173 = vst.msk [vmem:[%s145 + $0xb8] sm:$0xf] %vm3126, %v2916
      %3174 = vst.msk [vmem:[%s145 + $0xbc] sm:$0xf] %vm3126, %v2917
      %3175 = vst.msk [vmem:[%s145 + $0xc0] sm:$0xf] %vm3126, %v2918
      %3176 = vst.msk [vmem:[%s145 + $0xc4] sm:$0xf] %vm3126, %v2919
      %3177 = vst.msk [vmem:[%s145 + $0xc8] sm:$0xf] %vm3126, %v2920
      %3178 = vst.msk [vmem:[%s145 + $0xcc] sm:$0xf] %vm3126, %v2921
      %3179 = vst.msk [vmem:[%s145 + $0xd0] sm:$0xf] %vm3126, %v2922
      %3180 = vst.msk [vmem:[%s145 + $0xd4] sm:$0xf] %vm3126, %v2923
      %3181 = vst.msk [vmem:[%s145 + $0xd8] sm:$0xf] %vm3126, %v2924
      %3182 = vst.msk [vmem:[%s145 + $0xdc] sm:$0xf] %vm3126, %v2925
      %3183 = vst.msk [vmem:[%s145 + $0xe0] sm:$0xf] %vm3126, %v2926
      %3184 = vst.msk [vmem:[%s145 + $0xe4] sm:$0xf] %vm3126, %v2927
      %3185 = vst.msk [vmem:[%s145 + $0xe8] sm:$0xf] %vm3126, %v2928
      %3186 = vst.msk [vmem:[%s145 + $0xec] sm:$0xf] %vm3126, %v2929
      %3187 = vst.msk [vmem:[%s145 + $0xf0] sm:$0xf] %vm3126, %v2930
      %3188 = vst.msk [vmem:[%s145 + $0xf4] sm:$0xf] %vm3126, %v2931
      %3189 = vst.msk [vmem:[%s145 + $0xf8] sm:$0xf] %vm3126, %v2932
      %3190 = vst.msk [vmem:[%s145 + $0xfc] sm:$0xf] %vm3126, %v2933
      %3191 = vst.msk [vmem:[%s145 + $0x100] sm:$0xf] %vm3126, %v2934
      %3192 = vst.msk [vmem:[%s145 + $0x104] sm:$0xf] %vm3126, %v2935
      %3193 = vst.msk [vmem:[%s145 + $0x108] sm:$0xf] %vm3126, %v2936
      %3194 = vst.msk [vmem:[%s145 + $0x10c] sm:$0xf] %vm3126, %v2937
      %3195 = vst.msk [vmem:[%s145 + $0x110] sm:$0xf] %vm3126, %v2938
      %3196 = vst.msk [vmem:[%s145 + $0x114] sm:$0xf] %vm3126, %v2939
      %3197 = vst.msk [vmem:[%s145 + $0x118] sm:$0xf] %vm3126, %v2940
      %3198 = vst.msk [vmem:[%s145 + $0x11c] sm:$0xf] %vm3126, %v2941
      %3199 = vst.msk [vmem:[%s145 + $0x120] sm:$0xf] %vm3126, %v2942
      %3200 = vst.msk [vmem:[%s145 + $0x124] sm:$0xf] %vm3126, %v2943
      %3201 = vst.msk [vmem:[%s145 + $0x128] sm:$0xf] %vm3126, %v2944
      %3202 = vst.msk [vmem:[%s145 + $0x12c] sm:$0xf] %vm3126, %v2945
      %3203 = vst.msk [vmem:[%s145 + $0x130] sm:$0xf] %vm3126, %v2946
      %3204 = vst.msk [vmem:[%s145 + $0x134] sm:$0xf] %vm3126, %v2947
      %3205 = vst.msk [vmem:[%s145 + $0x138] sm:$0xf] %vm3126, %v2948
      %3206 = vst.msk [vmem:[%s145 + $0x13c] sm:$0xf] %vm3126, %v2949
      %3207 = vst.msk [vmem:[%s145 + $0x140] sm:$0xf] %vm3126, %v2950
      %3208 = vst.msk [vmem:[%s145 + $0x144] sm:$0xf] %vm3126, %v2951
      %3209 = vst.msk [vmem:[%s145 + $0x148] sm:$0xf] %vm3126, %v2952
      %3210 = vst.msk [vmem:[%s145 + $0x14c] sm:$0xf] %vm3126, %v2953
      %3211 = vst.msk [vmem:[%s145 + $0x150] sm:$0xf] %vm3126, %v2954
      %3212 = vst.msk [vmem:[%s145 + $0x154] sm:$0xf] %vm3126, %v2955
      %3213 = vst.msk [vmem:[%s145 + $0x158] sm:$0xf] %vm3126, %v2956
      %3214 = vst.msk [vmem:[%s145 + $0x15c] sm:$0xf] %vm3126, %v2957
      %3215 = vst.msk [vmem:[%s145 + $0x160] sm:$0xf] %vm3126, %v2958
      %3216 = vst.msk [vmem:[%s145 + $0x164] sm:$0xf] %vm3126, %v2959
      %3217 = vst.msk [vmem:[%s145 + $0x168] sm:$0xf] %vm3126, %v2960
      %3218 = vst.msk [vmem:[%s145 + $0x16c] sm:$0xf] %vm3126, %v2961
      %3219 = vst.msk [vmem:[%s145 + $0x170] sm:$0xf] %vm3126, %v2962
      %3220 = vst.msk [vmem:[%s145 + $0x174] sm:$0xf] %vm3126, %v2963
      %3221 = vst.msk [vmem:[%s145 + $0x178] sm:$0xf] %vm3126, %v2964
      %3222 = vst.msk [vmem:[%s145 + $0x17c] sm:$0xf] %vm3126, %v2965
      %3223 = vst.msk [vmem:[%s145 + $0x180] sm:$0xf] %vm3126, %v2966
      %3224 = vst.msk [vmem:[%s145 + $0x184] sm:$0xf] %vm3126, %v2967
      %3225 = vst.msk [vmem:[%s145 + $0x188] sm:$0xf] %vm3126, %v2968
      %3226 = vst.msk [vmem:[%s145 + $0x18c] sm:$0xf] %vm3126, %v2969
      %3227 = vst.msk [vmem:[%s145 + $0x190] sm:$0xf] %vm3126, %v2970
      %3228 = vst.msk [vmem:[%s145 + $0x194] sm:$0xf] %vm3126, %v2971
      %3229 = vst.msk [vmem:[%s145 + $0x198] sm:$0xf] %vm3126, %v2972
      %3230 = vst.msk [vmem:[%s145 + $0x19c] sm:$0xf] %vm3126, %v2973
      %3231 = vst.msk [vmem:[%s145 + $0x1a0] sm:$0xf] %vm3126, %v2974
      %3232 = vst.msk [vmem:[%s145 + $0x1a4] sm:$0xf] %vm3126, %v2975
      %3233 = vst.msk [vmem:[%s145 + $0x1a8] sm:$0xf] %vm3126, %v2976
      %3234 = vst.msk [vmem:[%s145 + $0x1ac] sm:$0xf] %vm3126, %v2977
      %3235 = vst.msk [vmem:[%s145 + $0x1b0] sm:$0xf] %vm3126, %v2978
      %3236 = vst.msk [vmem:[%s145 + $0x1b4] sm:$0xf] %vm3126, %v2979
      %3237 = vst.msk [vmem:[%s145 + $0x1b8] sm:$0xf] %vm3126, %v2980
      %3238 = vst.msk [vmem:[%s145 + $0x1bc] sm:$0xf] %vm3126, %v2981
      %3239 = vst.msk [vmem:[%s145 + $0x1c0] sm:$0xf] %vm3126, %v2982
      %3240 = vst.msk [vmem:[%s145 + $0x1c4] sm:$0xf] %vm3126, %v2983
      %3241 = vst.msk [vmem:[%s145 + $0x1c8] sm:$0xf] %vm3126, %v2984
      %3242 = vst.msk [vmem:[%s145 + $0x1cc] sm:$0xf] %vm3126, %v2985
      %3243 = vst.msk [vmem:[%s145 + $0x1d0] sm:$0xf] %vm3126, %v2986
      %3244 = vst.msk [vmem:[%s145 + $0x1d4] sm:$0xf] %vm3126, %v2987
      %3245 = vst.msk [vmem:[%s145 + $0x1d8] sm:$0xf] %vm3126, %v2988
      %3246 = vst.msk [vmem:[%s145 + $0x1dc] sm:$0xf] %vm3126, %v2989
      %3247 = vst.msk [vmem:[%s145 + $0x1e0] sm:$0xf] %vm3126, %v2990
      %3248 = vst.msk [vmem:[%s145 + $0x1e4] sm:$0xf] %vm3126, %v2991
      %3249 = vst.msk [vmem:[%s145 + $0x1e8] sm:$0xf] %vm3126, %v2992
      %3250 = vst.msk [vmem:[%s145 + $0x1ec] sm:$0xf] %vm3126, %v2993
      %3251 = vst.msk [vmem:[%s145 + $0x1f0] sm:$0xf] %vm3126, %v2994
      %3252 = vst.msk [vmem:[%s145 + $0x1f4] sm:$0xf] %vm3126, %v2995
      %3253 = vst.msk [vmem:[%s145 + $0x1f8] sm:$0xf] %vm3126, %v2996
      %3254 = vst.msk [vmem:[%s145 + $0x1fc] sm:$0xf] %vm3126, %v2997
      %3255 = vst.msk [vmem:[%s145 + $0x200] sm:$0xf] %vm3126, %v2998
      %3256 = vst.msk [vmem:[%s145 + $0x204] sm:$0xf] %vm3126, %v2999
      %3257 = vst.msk [vmem:[%s145 + $0x208] sm:$0xf] %vm3126, %v3000
      %3258 = vst.msk [vmem:[%s145 + $0x20c] sm:$0xf] %vm3126, %v3001
      %3259 = vst.msk [vmem:[%s145 + $0x210] sm:$0xf] %vm3126, %v3002
      %3260 = vst.msk [vmem:[%s145 + $0x214] sm:$0xf] %vm3126, %v3003
      %3261 = vst.msk [vmem:[%s145 + $0x218] sm:$0xf] %vm3126, %v3004
      %3262 = vst.msk [vmem:[%s145 + $0x21c] sm:$0xf] %vm3126, %v3005
      %3263 = vst.msk [vmem:[%s145 + $0x220] sm:$0xf] %vm3126, %v3006
      %3264 = vst.msk [vmem:[%s145 + $0x224] sm:$0xf] %vm3126, %v3007
      %3265 = vst.msk [vmem:[%s145 + $0x228] sm:$0xf] %vm3126, %v3008
      %3266 = vst.msk [vmem:[%s145 + $0x22c] sm:$0xf] %vm3126, %v3009
      %3267 = vst.msk [vmem:[%s145 + $0x230] sm:$0xf] %vm3126, %v3010
      %3268 = vst.msk [vmem:[%s145 + $0x234] sm:$0xf] %vm3126, %v3011
      %3269 = vst.msk [vmem:[%s145 + $0x238] sm:$0xf] %vm3126, %v3012
      %3270 = vst.msk [vmem:[%s145 + $0x23c] sm:$0xf] %vm3126, %v3013
      %3271 = vst.msk [vmem:[%s145 + $0x240] sm:$0xf] %vm3126, %v3014
      %3272 = vst.msk [vmem:[%s145 + $0x244] sm:$0xf] %vm3126, %v3015
      %3273 = vst.msk [vmem:[%s145 + $0x248] sm:$0xf] %vm3126, %v3016
      %3274 = vst.msk [vmem:[%s145 + $0x24c] sm:$0xf] %vm3126, %v3017
      %3275 = vst.msk [vmem:[%s145 + $0x250] sm:$0xf] %vm3126, %v3018
      %3276 = vst.msk [vmem:[%s145 + $0x254] sm:$0xf] %vm3126, %v3019
      %3277 = vst.msk [vmem:[%s145 + $0x258] sm:$0xf] %vm3126, %v3020
      %3278 = vst.msk [vmem:[%s145 + $0x25c] sm:$0xf] %vm3126, %v3021
      %3279 = vst.msk [vmem:[%s145 + $0x260] sm:$0xf] %vm3126, %v3022
      %3280 = vst.msk [vmem:[%s145 + $0x264] sm:$0xf] %vm3126, %v3023
      %3281 = vst.msk [vmem:[%s145 + $0x268] sm:$0xf] %vm3126, %v3024
      %3282 = vst.msk [vmem:[%s145 + $0x26c] sm:$0xf] %vm3126, %v3025
      %3283 = vst.msk [vmem:[%s145 + $0x270] sm:$0xf] %vm3126, %v3026
      %3284 = vst.msk [vmem:[%s145 + $0x274] sm:$0xf] %vm3126, %v3027
      %3285 = vst.msk [vmem:[%s145 + $0x278] sm:$0xf] %vm3126, %v3028
      %3286 = vst.msk [vmem:[%s145 + $0x27c] sm:$0xf] %vm3126, %v3029
      %3287 = vst.msk [vmem:[%s145 + $0x280] sm:$0xf] %vm3126, %v3030
      %3288 = vst.msk [vmem:[%s145 + $0x284] sm:$0xf] %vm3126, %v3031
      %3289 = vst.msk [vmem:[%s145 + $0x288] sm:$0xf] %vm3126, %v3032
      %3290 = vst.msk [vmem:[%s145 + $0x28c] sm:$0xf] %vm3126, %v3033
      %3291 = vst.msk [vmem:[%s145 + $0x290] sm:$0xf] %vm3126, %v3034
      %3292 = vst.msk [vmem:[%s145 + $0x294] sm:$0xf] %vm3126, %v3035
      %3293 = vst.msk [vmem:[%s145 + $0x298] sm:$0xf] %vm3126, %v3036
      %3294 = vst.msk [vmem:[%s145 + $0x29c] sm:$0xf] %vm3126, %v3037
      %3295 = vst.msk [vmem:[%s145 + $0x2a0] sm:$0xf] %vm3126, %v3038
      %3296 = vst.msk [vmem:[%s145 + $0x2a4] sm:$0xf] %vm3126, %v3039
      %3297 = vst.msk [vmem:[%s145 + $0x2a8] sm:$0xf] %vm3126, %v3040
      %3298 = vst.msk [vmem:[%s145 + $0x2ac] sm:$0xf] %vm3126, %v3041
      %3299 = vst.msk [vmem:[%s145 + $0x2b0] sm:$0xf] %vm3126, %v3042
      %3300 = vst.msk [vmem:[%s145 + $0x2b4] sm:$0xf] %vm3126, %v3043
      %3301 = vst.msk [vmem:[%s145 + $0x2b8] sm:$0xf] %vm3126, %v3044
      %3302 = vst.msk [vmem:[%s145 + $0x2bc] sm:$0xf] %vm3126, %v3045
      %3303 = vst.msk [vmem:[%s145 + $0x2c0] sm:$0xf] %vm3126, %v3046
      %3304 = vst.msk [vmem:[%s145 + $0x2c4] sm:$0xf] %vm3126, %v3047
      %3305 = vst.msk [vmem:[%s145 + $0x2c8] sm:$0xf] %vm3126, %v3048
      %3306 = vst.msk [vmem:[%s145 + $0x2cc] sm:$0xf] %vm3126, %v3049
      %3307 = vst.msk [vmem:[%s145 + $0x2d0] sm:$0xf] %vm3126, %v3050
      %3308 = vst.msk [vmem:[%s145 + $0x2d4] sm:$0xf] %vm3126, %v3051
      %3309 = vst.msk [vmem:[%s145 + $0x2d8] sm:$0xf] %vm3126, %v3052
      %3310 = vst.msk [vmem:[%s145 + $0x2dc] sm:$0xf] %vm3126, %v3053
      %3311 = vst.msk [vmem:[%s145 + $0x2e0] sm:$0xf] %vm3126, %v3054
      %3312 = vst.msk [vmem:[%s145 + $0x2e4] sm:$0xf] %vm3126, %v3055
      %3313 = vst.msk [vmem:[%s145 + $0x2e8] sm:$0xf] %vm3126, %v3056
      %3314 = vst.msk [vmem:[%s145 + $0x2ec] sm:$0xf] %vm3126, %v3057
      %3315 = vst.msk [vmem:[%s145 + $0x2f0] sm:$0xf] %vm3126, %v3058
      %3316 = vst.msk [vmem:[%s145 + $0x2f4] sm:$0xf] %vm3126, %v3059
      %3317 = vst.msk [vmem:[%s145 + $0x2f8] sm:$0xf] %vm3126, %v3060
      %3318 = vst.msk [vmem:[%s145 + $0x2fc] sm:$0xf] %vm3126, %v3061
      %3319 = vst.msk [vmem:[%s145 + $0x300] sm:$0xf] %vm3126, %v3062
      %3320 = vst.msk [vmem:[%s145 + $0x304] sm:$0xf] %vm3126, %v3063
      %3321 = vst.msk [vmem:[%s145 + $0x308] sm:$0xf] %vm3126, %v3064
      %3322 = vst.msk [vmem:[%s145 + $0x30c] sm:$0xf] %vm3126, %v3065
      %3323 = vst.msk [vmem:[%s145 + $0x310] sm:$0xf] %vm3126, %v3066
      %3324 = vst.msk [vmem:[%s145 + $0x314] sm:$0xf] %vm3126, %v3067
      %3325 = vst.msk [vmem:[%s145 + $0x318] sm:$0xf] %vm3126, %v3068
      %3326 = vst.msk [vmem:[%s145 + $0x31c] sm:$0xf] %vm3126, %v3069
      %3327 = vst.msk [vmem:[%s145 + $0x320] sm:$0xf] %vm3126, %v3070
      %3328 = vst.msk [vmem:[%s145 + $0x324] sm:$0xf] %vm3126, %v3071
      %3329 = vst.msk [vmem:[%s145 + $0x328] sm:$0xf] %vm3126, %v3072
      %3330 = vst.msk [vmem:[%s145 + $0x32c] sm:$0xf] %vm3126, %v3073
      %3331 = vst.msk [vmem:[%s145 + $0x330] sm:$0xf] %vm3126, %v3074
      %3332 = vst.msk [vmem:[%s145 + $0x334] sm:$0xf] %vm3126, %v3075
      %3333 = vst.msk [vmem:[%s145 + $0x338] sm:$0xf] %vm3126, %v3076
      %3334 = vst.msk [vmem:[%s145 + $0x33c] sm:$0xf] %vm3126, %v3077
      %3335 = vst.msk [vmem:[%s145 + $0x340] sm:$0xf] %vm3126, %v3078
      %3336 = vst.msk [vmem:[%s145 + $0x344] sm:$0xf] %vm3126, %v3079
      %3337 = vst.msk [vmem:[%s145 + $0x348] sm:$0xf] %vm3126, %v3080
      %3338 = vst.msk [vmem:[%s145 + $0x34c] sm:$0xf] %vm3126, %v3081
      %3339 = vst.msk [vmem:[%s145 + $0x350] sm:$0xf] %vm3126, %v3082
      %3340 = vst.msk [vmem:[%s145 + $0x354] sm:$0xf] %vm3126, %v3083
      %3341 = vst.msk [vmem:[%s145 + $0x358] sm:$0xf] %vm3126, %v3084
      %3342 = vst.msk [vmem:[%s145 + $0x35c] sm:$0xf] %vm3126, %v3085
      %3343 = vst.msk [vmem:[%s145 + $0x360] sm:$0xf] %vm3126, %v3086
      %3344 = vst.msk [vmem:[%s145 + $0x364] sm:$0xf] %vm3126, %v3087
      %3345 = vst.msk [vmem:[%s145 + $0x368] sm:$0xf] %vm3126, %v3088
      %3346 = vst.msk [vmem:[%s145 + $0x36c] sm:$0xf] %vm3126, %v3089
      %3347 = vst.msk [vmem:[%s145 + $0x370] sm:$0xf] %vm3126, %v3090
      %3348 = vst.msk [vmem:[%s145 + $0x374] sm:$0xf] %vm3126, %v3091
      %3349 = vst.msk [vmem:[%s145 + $0x378] sm:$0xf] %vm3126, %v3092
      %3350 = vst.msk [vmem:[%s145 + $0x37c] sm:$0xf] %vm3126, %v3093
      %3351 = vst.msk [vmem:[%s145 + $0x380] sm:$0xf] %vm3126, %v3094
      %3352 = vst.msk [vmem:[%s145 + $0x384] sm:$0xf] %vm3126, %v3095
      %3353 = vst.msk [vmem:[%s145 + $0x388] sm:$0xf] %vm3126, %v3096
      %3354 = vst.msk [vmem:[%s145 + $0x38c] sm:$0xf] %vm3126, %v3097
      %3355 = vst.msk [vmem:[%s145 + $0x390] sm:$0xf] %vm3126, %v3098
      %3356 = vst.msk [vmem:[%s145 + $0x394] sm:$0xf] %vm3126, %v3099
      %3357 = vst.msk [vmem:[%s145 + $0x398] sm:$0xf] %vm3126, %v3100
      %3358 = vst.msk [vmem:[%s145 + $0x39c] sm:$0xf] %vm3126, %v3101
      %3359 = vst.msk [vmem:[%s145 + $0x3a0] sm:$0xf] %vm3126, %v3102
      %3360 = vst.msk [vmem:[%s145 + $0x3a4] sm:$0xf] %vm3126, %v3103
      %3361 = vst.msk [vmem:[%s145 + $0x3a8] sm:$0xf] %vm3126, %v3104
      %3362 = vst.msk [vmem:[%s145 + $0x3ac] sm:$0xf] %vm3126, %v3105
      %3363 = vst.msk [vmem:[%s145 + $0x3b0] sm:$0xf] %vm3126, %v3106
      %3364 = vst.msk [vmem:[%s145 + $0x3b4] sm:$0xf] %vm3126, %v3107
      %3365 = vst.msk [vmem:[%s145 + $0x3b8] sm:$0xf] %vm3126, %v3108
      %3366 = vst.msk [vmem:[%s145 + $0x3bc] sm:$0xf] %vm3126, %v3109
      %3367 = vst.msk [vmem:[%s145 + $0x3c0] sm:$0xf] %vm3126, %v3110
      %3368 = vst.msk [vmem:[%s145 + $0x3c4] sm:$0xf] %vm3126, %v3111
      %3369 = vst.msk [vmem:[%s145 + $0x3c8] sm:$0xf] %vm3126, %v3112
      %3370 = vst.msk [vmem:[%s145 + $0x3cc] sm:$0xf] %vm3126, %v3113
      %3371 = vst.msk [vmem:[%s145 + $0x3d0] sm:$0xf] %vm3126, %v3114
      %3372 = vst.msk [vmem:[%s145 + $0x3d4] sm:$0xf] %vm3126, %v3115
      %3373 = vst.msk [vmem:[%s145 + $0x3d8] sm:$0xf] %vm3126, %v3116
      %3374 = vst.msk [vmem:[%s145 + $0x3dc] sm:$0xf] %vm3126, %v3117
      %3375 = vst.msk [vmem:[%s145 + $0x3e0] sm:$0xf] %vm3126, %v3118
      %3376 = vst.msk [vmem:[%s145 + $0x3e4] sm:$0xf] %vm3126, %v3119
      %3377 = vst.msk [vmem:[%s145 + $0x3e8] sm:$0xf] %vm3126, %v3120
      %3378 = vst.msk [vmem:[%s145 + $0x3ec] sm:$0xf] %vm3126, %v3121
      %3379 = vst.msk [vmem:[%s145 + $0x3f0] sm:$0xf] %vm3126, %v3122
      %3380 = vst.msk [vmem:[%s145 + $0x3f4] sm:$0xf] %vm3126, %v3123
      %3381 = vst.msk [vmem:[%s145 + $0x3f8] sm:$0xf] %vm3126, %v3124
      %3382 = vst.msk [vmem:[%s145 + $0x3fc] sm:$0xf] %vm3126, %v3125
      %s3383 = smul.u32 256, %s13
      %p3384 = scmp.lt.s32.totalorder %s3383, 1023
      %s3385 = scalar_select %p3384, %s3383, 1023
      %s3386 = smul.addr %s3385, 4
      %s3387 = scalar_lea.vmem %s2, %s3386
      // Predicated region
      $region29: #{tpu_custom_call.1} parent=27 // pred_check
        %p3388 = pneg %p78
      $region30: #{tpu_custom_call.1} parent=27 // pred_check_branch
        %3390 = sbr.rel (%p3388) target = $region32
      $region31: #{tpu_custom_call.1} parent=27 // pred_region
        %s3391 = smul.u32 256, %s13
      $region32: #{tpu_custom_call.1} parent=27 // pred_fallthru
        _
    $region28: #{tpu_custom_call.1} parent=5 // pred_fallthru
      _
    %p3392 = scmp.le.s32.totalorder 2, %s8
    // Predicated region
    $region33: #{tpu_custom_call.1} parent=5 // pred_check
      %p3393 = pneg %p3392
    $region34: #{tpu_custom_call.1} parent=5 // pred_check_branch
      %3395 = sbr.rel (%p3393) target = $region36
    $region35: #{tpu_custom_call.1} parent=5 // pred_region
      %s3396 = ssub.s32 %s8, 2
      // Predicated region
      $region37: #{tpu_custom_call.1} parent=35 // pred_check
        %p3397 = pneg %p84
      $region38: #{tpu_custom_call.1} parent=35 // pred_check_branch
        %3399 = sbr.rel (%p3397) target = $region40
      $region39: #{tpu_custom_call.1} parent=35 // pred_region
        %s3400 = smul.u32 256, %s14
        %p3401 = scmp.lt.s32.totalorder %s3400, 1023
        %s3402 = scalar_select %p3401, %s3400, 1023
        %s3403 = smul.addr %s3402, 4
        %s3404 = scalar_lea.vmem %s2, %s3403
      $region40: #{tpu_custom_call.1} parent=35 // pred_fallthru
        _
    $region36: #{tpu_custom_call.1} parent=5 // pred_fallthru
      _
  $region6: #{tpu_custom_call.1} parent=0 // loop_footer
    %s12 = sadd.s32 1, %s8
  $region7: #{tpu_custom_call.1} parent=0 // loop_footer_branch
    %7 = sbr.rel target = $region3
  $region8: #{tpu_custom_call.1} parent=0 // loop_exit
    _

</llo_original>
